<compile_context>
chip_gen: v7x
topology: tpu7x:2x2x1
jax: 0.10.0
libtpu: 0.0.40
codegen_flags: <defaults>
</compile_context>

<pallas_src>
import jax
import jax.numpy as jnp
from jax.experimental import pallas as pl
from jax.experimental.pallas import tpu as pltpu

# ---------------- model sizes (small, synthetic) ----------------
VOCAB = 50          # vocab_size
HIDDEN = 32         # hidden_size (embedding dim == lstm input == lstm hidden)
OUT = 8             # out_size
NUM_LAYERS = 3
T_DIM = 2           # text.shape[0]  (time axis for nn.LSTM, batch_first=False)
B_DIM = 8           # text.shape[1]  (batch axis)
N_SEQ = 2           # independent sequences batched into one pallas_call (grid axis)

# misc packing layout (rows, 8-aligned sections to avoid sublane-shift relayouts)
WF_OFF = 8                      # rows WF_OFF : WF_OFF+H   -> final-linear weight^T, zero-padded
BF_OFF = WF_OFF + HIDDEN        # row  BF_OFF              -> final-linear bias, zero-padded
AVG_OFF = 48                    # rows AVG_OFF : AVG_OFF+T -> batch-averaging matrix (1/B)
MISC_ROWS = AVG_OFF + T_DIM


def _lstm_net_kernel(text_ref, e0_ref, w_ref, misc_ref, out_ref, x_ref):
    """One sequence per grid step; everything resident in VMEM.

    text_ref : (1, T*B, 1) int32   token ids, t-major
    e0_ref   : (V, 4H)     f32     emb @ Wih0 (i/f/o gate columns pre-scaled by 0.5)
    w_ref    : (L, 2H, 4H) f32     rows 0:H = Wih^T, rows H:2H = Whh^T (scaled columns)
    misc_ref : (ROWS, 4H)  f32     rows 0:L biases; WF/BF rows = final linear; AVG rows = mean matrix
    out_ref  : (1, T, 4H)  f32     lane-dense output (cols >= OUT are zero)
    x_ref    : (T*B, H)    f32     VMEM scratch: current layer's hidden states
    """
    TB = text_ref.shape[1]
    T = out_ref.shape[1]
    B = TB // T
    L, H2, H4 = w_ref.shape
    H = H2 // 2
    V = e0_ref.shape[0]
    prec = jax.lax.Precision.HIGHEST  # pinned: 1e-4 tolerance through 6-deep recurrence

    def run_layer(l, xg):
        # Only the hidden->gates matmul stays on the serial critical path.
        whh = w_ref[l, H:2 * H, :]                              # (H, 4H)
        h = jnp.zeros((B, H), jnp.float32)
        c = jnp.zeros((B, H), jnp.float32)
        for t in range(T):
            gates = xg[t * B:(t + 1) * B, :] + jnp.dot(
                h, whh, preferred_element_type=jnp.float32, precision=prec)  # (B, 4H)
            tnh = jnp.tanh(gates)                               # single full-vreg EUP push
            i_g = 0.5 * tnh[:, 0 * H:1 * H] + 0.5               # == sigmoid(unscaled gate)
            f_g = 0.5 * tnh[:, 1 * H:2 * H] + 0.5
            g_g = tnh[:, 2 * H:3 * H]
            o_g = 0.5 * tnh[:, 3 * H:4 * H] + 0.5
            c = f_g * c + i_g * g_g
            h = o_g * jnp.tanh(c)
            x_ref[t * B:(t + 1) * B, :] = h                     # no list/concat copies

    # ---- layer 0: fused embedding + input projection (one-hot x E0; no gather needed) ----
    # Note: out-of-range token ids (>= V) silently map to a zero row instead of erroring.
    idx = text_ref[0]                                           # (T*B, 1) int32
    iota = jax.lax.broadcasted_iota(jnp.int32, (TB, V), 1)      # (T*B, V)
    onehot = (iota == idx).astype(jnp.float32)
    xg0 = jnp.dot(onehot, e0_ref[...],
                  preferred_element_type=jnp.float32, precision=prec) + misc_ref[0:1, :]
    run_layer(0, xg0)

    # ---- layers 1..L-1: hoisted input projection + bias, then serial recurrence ----
    for l in range(1, L):
        x = x_ref[...]                                          # (T*B, H) previous layer output
        xg = jnp.dot(x, w_ref[l, 0:H, :],
                     preferred_element_type=jnp.float32, precision=prec) + misc_ref[l:l + 1, :]
        run_layer(l, xg)

    # ---- mean over batch (constant matmul), tanh, lane-dense final Linear ----
    avg = misc_ref[AVG_OFF:AVG_OFF + T, 0:TB]                   # (T, T*B), entries 1/B
    agg = jnp.dot(avg, x_ref[...], preferred_element_type=jnp.float32, precision=prec)
    z = jnp.tanh(agg)                                           # (T, H)
    wf = misc_ref[WF_OFF:WF_OFF + H, :]                         # (H, 4H), cols >= OUT are zero
    bf = misc_ref[BF_OFF:BF_OFF + 1, :]                         # (1, 4H)
    out_ref[0] = jnp.dot(z, wf, preferred_element_type=jnp.float32, precision=prec) + bf


def pack_params(emb, wih_t, whh_t, b, wf_t, bf):
    """Pack parameters into 3 VMEM-resident buffers (done once, outside the kernel)."""
    L, H, H4 = wih_t.shape
    O = wf_t.shape[1]
    prec = jax.lax.Precision.HIGHEST
    # Fold the sigmoid-as-tanh rescale (0.5) into the i/f/o gate columns of weights and biases.
    col_scale = jnp.concatenate([jnp.full((H,), 0.5), jnp.full((H,), 0.5),
                                 jnp.ones((H,)), jnp.full((H,), 0.5)]).astype(jnp.float32)
    wih_s = wih_t * col_scale
    whh_s = whh_t * col_scale
    b_s = b.reshape(L, H4) * col_scale
    # Fuse embedding table with layer-0 input projection.
    e0 = jnp.dot(emb, wih_s[0], precision=prec)                 # (V, 4H)
    w_all = jnp.concatenate([wih_s, whh_s], axis=1)             # (L, 2H, 4H); [0, 0:H] unused
    misc = jnp.zeros((MISC_ROWS, H4), jnp.float32)
    misc = misc.at[0:L, :].set(b_s)
    misc = misc.at[WF_OFF:WF_OFF + H, 0:O].set(wf_t)            # zero-padded to 128 lanes
    misc = misc.at[BF_OFF, 0:O].set(bf[0])
    avg = jnp.repeat(jnp.eye(T_DIM, dtype=jnp.float32), B_DIM, axis=1) / B_DIM  # (T, T*B)
    misc = misc.at[AVG_OFF:AVG_OFF + T_DIM, 0:T_DIM * B_DIM].set(avg)
    return e0, w_all, misc


@jax.jit
def lstm_net_pallas(text, e0, w_all, misc):
    """text: (N, T, B) int32 — N independent sequences processed in ONE pallas_call."""
    N, T, B = text.shape
    H4 = 4 * HIDDEN
    text_r = text.reshape(N, T * B, 1)                          # avoids any in-kernel reshape
    grid_spec = pltpu.PrefetchScalarGridSpec(
        num_scalar_prefetch=0,
        grid=(N,),
        in_specs=[
            pl.BlockSpec((1, T * B, 1), lambda n: (n, 0, 0)),               # per-sequence tokens
            pl.BlockSpec((VOCAB, H4), lambda n: (0, 0)),                    # fused emb/Wih0
            pl.BlockSpec((NUM_LAYERS, 2 * HIDDEN, H4), lambda n: (0, 0, 0)),  # stacked weights
            pl.BlockSpec((MISC_ROWS, H4), lambda n: (0, 0)),                # biases / linear / avg
        ],
        out_specs=pl.BlockSpec((1, T, H4), lambda n: (n, 0, 0)),            # lane-dense output
        scratch_shapes=[pltpu.VMEM((T * B, HIDDEN), jnp.float32)],
    )
    out_full = pl.pallas_call(
        _lstm_net_kernel,
        out_shape=jax.ShapeDtypeStruct((N, T, H4), jnp.float32),
        grid_spec=grid_spec,
        compiler_params=pltpu.CompilerParams(
            dimension_semantics=("parallel",)),   # shards independent sequences across v7x TCs
    )(text_r, e0, w_all, misc)
    return out_full[:, :, :OUT]                                 # slice lane padding outside


# ---------------- pure-JAX reference (same math, unpacked params) ----------------
def lstm_net_ref(text, emb, wih_t, whh_t, b, wf_t, bf):
    prec = jax.lax.Precision.HIGHEST
    T, B = text.shape
    H = emb.shape[1]
    layer_in = emb[text]                                        # (T, B, H)
    for l in range(NUM_LAYERS):
        h = jnp.zeros((B, H), jnp.float32)
        c = jnp.zeros((B, H), jnp.float32)
        outs = []
        for t in range(T):
            gates = (jnp.dot(layer_in[t], wih_t[l], precision=prec)
                     + jnp.dot(h, whh_t[l], precision=prec) + b[l, 0])
            i_g = jax.nn.sigmoid(gates[:, 0 * H:1 * H])
            f_g = jax.nn.sigmoid(gates[:, 1 * H:2 * H])
            g_g = jnp.tanh(gates[:, 2 * H:3 * H])
            o_g = jax.nn.sigmoid(gates[:, 3 * H:4 * H])
            c = f_g * c + i_g * g_g
            h = o_g * jnp.tanh(c)
            outs.append(h)
        layer_in = jnp.stack(outs, axis=0)
    agg = layer_in.mean(axis=1)                                 # (T, H)
    return jnp.dot(jnp.tanh(agg), wf_t, precision=prec) + bf[0]


if __name__ == "__main__":
    key = jax.random.PRNGKey(0)
    k_txt, k_emb, k_wih, k_whh, k_b, k_wf, k_bf = jax.random.split(key, 7)

    scale = 1.0 / jnp.sqrt(jnp.float32(HIDDEN))
    text = jax.random.randint(k_txt, (N_SEQ, T_DIM, B_DIM), 0, VOCAB, dtype=jnp.int32)
    emb = jax.random.normal(k_emb, (VOCAB, HIDDEN), jnp.float32)
    wih_t = jax.random.uniform(k_wih, (NUM_LAYERS, HIDDEN, 4 * HIDDEN), jnp.float32,
                               -scale, scale)
    whh_t = jax.random.uniform(k_whh, (NUM_LAYERS, HIDDEN, 4 * HIDDEN), jnp.float32,
                               -scale, scale)
    b = jax.random.uniform(k_b, (NUM_LAYERS, 1, 4 * HIDDEN), jnp.float32, -scale, scale)
    wf_t = jax.random.uniform(k_wf, (HIDDEN, OUT), jnp.float32, -scale, scale)
    bf = jax.random.uniform(k_bf, (1, OUT), jnp.float32, -scale, scale)

    # Pack once: fused embedding/Wih0 table, stacked recurrent weights, misc slab.
    e0, w_all, misc = jax.block_until_ready(pack_params(emb, wih_t, whh_t, b, wf_t, bf))

    out = jax.block_until_ready(lstm_net_pallas(text, e0, w_all, misc))   # (N, T, OUT)
    assert out.shape == (N_SEQ, T_DIM, OUT)

    for n in range(N_SEQ):
        ref = lstm_net_ref(text[n], emb, wih_t, whh_t, b, wf_t, bf)
        assert jnp.allclose(out[n], ref, atol=1e-4, rtol=1e-4), (n, out[n], ref)
    print("KERNEL_OK")
</pallas_src>

<mosaic_0001>
module attributes {stable_mosaic.version = 11 : i64} {
  func.func @_lstm_net_kernel(%arg0: i32, %arg1: memref<1x16x1xi32, #tpu.memory_space<vmem>>, %arg2: memref<50x128xf32, #tpu.memory_space<vmem>>, %arg3: memref<3x64x128xf32, #tpu.memory_space<vmem>>, %arg4: memref<50x128xf32, #tpu.memory_space<vmem>>, %arg5: memref<1x2x128xf32, #tpu.memory_space<vmem>>, %arg6: memref<16x32xf32, #tpu.memory_space<vmem>>) attributes {dimension_semantics = [#tpu.dimension_semantics<parallel>], iteration_bounds = array<i64: 2>, scalar_prefetch = 0 : i64, scratch_operands = 1 : i64, tpu.core_type = #tpu.core_type<tc>, window_params = [{transform_indices = @transform_0, window_bounds = array<i64: 1, 16, 1>}, {pipeline_mode = #tpu.pipeline_mode<synchronous>, transform_indices = @transform_1, window_bounds = array<i64: 50, 128>}, {pipeline_mode = #tpu.pipeline_mode<synchronous>, transform_indices = @transform_2, window_bounds = array<i64: 3, 64, 128>}, {pipeline_mode = #tpu.pipeline_mode<synchronous>, transform_indices = @transform_3, window_bounds = array<i64: 50, 128>}, {transform_indices = @transform_4, window_bounds = array<i64: 1, 2, 128>}]} {
    %c0 = arith.constant 0 : index
    %c0_0 = arith.constant 0 : index
    %c0_1 = arith.constant 0 : index
    %0 = vector.load %arg1[%c0, %c0_0, %c0_1] : memref<1x16x1xi32, #tpu.memory_space<vmem>>, vector<1x16x1xi32>
    %1 = vector.shape_cast %0 : vector<1x16x1xi32> to vector<16x1xi32>
    %2 = tpu.iota {dimensions = array<i32: 1>} : vector<16x50xi32>
    %3 = vector.broadcast %1 : vector<16x1xi32> to vector<16x50xi32>
    %4 = arith.cmpi eq, %2, %3 : vector<16x50xi32>
    %5 = arith.extui %4 : vector<16x50xi1> to vector<16x50xi32>
    %6 = arith.sitofp %5 : vector<16x50xi32> to vector<16x50xf32>
    %c0_2 = arith.constant 0 : index
    %c0_3 = arith.constant 0 : index
    %7 = vector.load %arg2[%c0_2, %c0_3] : memref<50x128xf32, #tpu.memory_space<vmem>>, vector<50x128xf32>
    %cst = arith.constant dense<0.000000e+00> : vector<16x128xf32>
    %8 = tpu.matmul %6, %7, %cst {dimension_numbers = #tpu.dot_dimension_numbers<[1], [0], [0], [1], [0, 0, 1, 1], [], []>, precision = #tpu.contract_precision<fp32>} : vector<16x50xf32>, vector<50x128xf32>, vector<16x128xf32> -> vector<16x128xf32>
    %c0_4 = arith.constant 0 : index
    %c0_5 = arith.constant 0 : index
    %9 = vector.load %arg4[%c0_4, %c0_5] : memref<50x128xf32, #tpu.memory_space<vmem>>, vector<1x128xf32>
    %10 = vector.broadcast %9 : vector<1x128xf32> to vector<16x128xf32>
    %11 = arith.addf %8, %10 : vector<16x128xf32>
    %c0_6 = arith.constant 0 : index
    %c32 = arith.constant 32 : index
    %c0_7 = arith.constant 0 : index
    %12 = vector.load %arg3[%c0_6, %c32, %c0_7] : memref<3x64x128xf32, #tpu.memory_space<vmem>>, vector<1x32x128xf32>
    %13 = vector.shape_cast %12 : vector<1x32x128xf32> to vector<32x128xf32>
    %cst_8 = arith.constant 0.000000e+00 : f32
    %14 = vector.broadcast %cst_8 : f32 to vector<8x32xf32>
    %cst_9 = arith.constant 0.000000e+00 : f32
    %15 = vector.broadcast %cst_9 : f32 to vector<8x32xf32>
    %16 = vector.extract_strided_slice %11 {offsets = [0, 0], sizes = [8, 128], strides = [1, 1]} : vector<16x128xf32> to vector<8x128xf32>
    %cst_10 = arith.constant dense<0.000000e+00> : vector<8x128xf32>
    %17 = tpu.matmul %14, %13, %cst_10 {dimension_numbers = #tpu.dot_dimension_numbers<[1], [0], [0], [1], [0, 0, 1, 1], [], []>, precision = #tpu.contract_precision<fp32>} : vector<8x32xf32>, vector<32x128xf32>, vector<8x128xf32> -> vector<8x128xf32>
    %18 = arith.addf %16, %17 : vector<8x128xf32>
    %19 = math.tanh %18 : vector<8x128xf32>
    %20 = vector.extract_strided_slice %19 {offsets = [0, 0], sizes = [8, 32], strides = [1, 1]} : vector<8x128xf32> to vector<8x32xf32>
    %cst_11 = arith.constant 5.000000e-01 : f32
    %21 = vector.broadcast %cst_11 : f32 to vector<8x32xf32>
    %22 = arith.mulf %21, %20 : vector<8x32xf32>
    %cst_12 = arith.constant 5.000000e-01 : f32
    %23 = vector.broadcast %cst_12 : f32 to vector<8x32xf32>
    %24 = arith.addf %22, %23 : vector<8x32xf32>
    %25 = vector.extract_strided_slice %19 {offsets = [0, 32], sizes = [8, 32], strides = [1, 1]} : vector<8x128xf32> to vector<8x32xf32>
    %cst_13 = arith.constant 5.000000e-01 : f32
    %26 = vector.broadcast %cst_13 : f32 to vector<8x32xf32>
    %27 = arith.mulf %26, %25 : vector<8x32xf32>
    %cst_14 = arith.constant 5.000000e-01 : f32
    %28 = vector.broadcast %cst_14 : f32 to vector<8x32xf32>
    %29 = arith.addf %27, %28 : vector<8x32xf32>
    %30 = vector.extract_strided_slice %19 {offsets = [0, 64], sizes = [8, 32], strides = [1, 1]} : vector<8x128xf32> to vector<8x32xf32>
    %31 = vector.extract_strided_slice %19 {offsets = [0, 96], sizes = [8, 32], strides = [1, 1]} : vector<8x128xf32> to vector<8x32xf32>
    %cst_15 = arith.constant 5.000000e-01 : f32
    %32 = vector.broadcast %cst_15 : f32 to vector<8x32xf32>
    %33 = arith.mulf %32, %31 : vector<8x32xf32>
    %cst_16 = arith.constant 5.000000e-01 : f32
    %34 = vector.broadcast %cst_16 : f32 to vector<8x32xf32>
    %35 = arith.addf %33, %34 : vector<8x32xf32>
    %36 = arith.mulf %29, %15 : vector<8x32xf32>
    %37 = arith.mulf %24, %30 : vector<8x32xf32>
    %38 = arith.addf %36, %37 : vector<8x32xf32>
    %39 = math.tanh %38 : vector<8x32xf32>
    %40 = arith.mulf %35, %39 : vector<8x32xf32>
    %c0_17 = arith.constant 0 : index
    %c0_18 = arith.constant 0 : index
    %41 = vector.load %arg6[%c0_17, %c0_18] : memref<16x32xf32, #tpu.memory_space<vmem>>, vector<8x32xf32>
    tpu.vector_store %arg6[%c0_17, %c0_18], %40 {strides = array<i32>} : memref<16x32xf32, #tpu.memory_space<vmem>>, vector<8x32xf32>,
    %42 = vector.extract_strided_slice %11 {offsets = [8, 0], sizes = [8, 128], strides = [1, 1]} : vector<16x128xf32> to vector<8x128xf32>
    %cst_19 = arith.constant dense<0.000000e+00> : vector<8x128xf32>
    %43 = tpu.matmul %40, %13, %cst_19 {dimension_numbers = #tpu.dot_dimension_numbers<[1], [0], [0], [1], [0, 0, 1, 1], [], []>, precision = #tpu.contract_precision<fp32>} : vector<8x32xf32>, vector<32x128xf32>, vector<8x128xf32> -> vector<8x128xf32>
    %44 = arith.addf %42, %43 : vector<8x128xf32>
    %45 = math.tanh %44 : vector<8x128xf32>
    %46 = vector.extract_strided_slice %45 {offsets = [0, 0], sizes = [8, 32], strides = [1, 1]} : vector<8x128xf32> to vector<8x32xf32>
    %cst_20 = arith.constant 5.000000e-01 : f32
    %47 = vector.broadcast %cst_20 : f32 to vector<8x32xf32>
    %48 = arith.mulf %47, %46 : vector<8x32xf32>
    %cst_21 = arith.constant 5.000000e-01 : f32
    %49 = vector.broadcast %cst_21 : f32 to vector<8x32xf32>
    %50 = arith.addf %48, %49 : vector<8x32xf32>
    %51 = vector.extract_strided_slice %45 {offsets = [0, 32], sizes = [8, 32], strides = [1, 1]} : vector<8x128xf32> to vector<8x32xf32>
    %cst_22 = arith.constant 5.000000e-01 : f32
    %52 = vector.broadcast %cst_22 : f32 to vector<8x32xf32>
    %53 = arith.mulf %52, %51 : vector<8x32xf32>
    %cst_23 = arith.constant 5.000000e-01 : f32
    %54 = vector.broadcast %cst_23 : f32 to vector<8x32xf32>
    %55 = arith.addf %53, %54 : vector<8x32xf32>
    %56 = vector.extract_strided_slice %45 {offsets = [0, 64], sizes = [8, 32], strides = [1, 1]} : vector<8x128xf32> to vector<8x32xf32>
    %57 = vector.extract_strided_slice %45 {offsets = [0, 96], sizes = [8, 32], strides = [1, 1]} : vector<8x128xf32> to vector<8x32xf32>
    %cst_24 = arith.constant 5.000000e-01 : f32
    %58 = vector.broadcast %cst_24 : f32 to vector<8x32xf32>
    %59 = arith.mulf %58, %57 : vector<8x32xf32>
    %cst_25 = arith.constant 5.000000e-01 : f32
    %60 = vector.broadcast %cst_25 : f32 to vector<8x32xf32>
    %61 = arith.addf %59, %60 : vector<8x32xf32>
    %62 = arith.mulf %55, %38 : vector<8x32xf32>
    %63 = arith.mulf %50, %56 : vector<8x32xf32>
    %64 = arith.addf %62, %63 : vector<8x32xf32>
    %65 = math.tanh %64 : vector<8x32xf32>
    %66 = arith.mulf %61, %65 : vector<8x32xf32>
    %c8 = arith.constant 8 : index
    %c0_26 = arith.constant 0 : index
    %67 = vector.load %arg6[%c8, %c0_26] : memref<16x32xf32, #tpu.memory_space<vmem>>, vector<8x32xf32>
    tpu.vector_store %arg6[%c8, %c0_26], %66 {strides = array<i32>} : memref<16x32xf32, #tpu.memory_space<vmem>>, vector<8x32xf32>,
    %c0_27 = arith.constant 0 : index
    %c0_28 = arith.constant 0 : index
    %68 = vector.load %arg6[%c0_27, %c0_28] : memref<16x32xf32, #tpu.memory_space<vmem>>, vector<16x32xf32>
    %c1 = arith.constant 1 : index
    %c0_29 = arith.constant 0 : index
    %c0_30 = arith.constant 0 : index
    %69 = vector.load %arg3[%c1, %c0_29, %c0_30] : memref<3x64x128xf32, #tpu.memory_space<vmem>>, vector<1x32x128xf32>
    %70 = vector.shape_cast %69 : vector<1x32x128xf32> to vector<32x128xf32>
    %cst_31 = arith.constant dense<0.000000e+00> : vector<16x128xf32>
    %71 = tpu.matmul %68, %70, %cst_31 {dimension_numbers = #tpu.dot_dimension_numbers<[1], [0], [0], [1], [0, 0, 1, 1], [], []>, precision = #tpu.contract_precision<fp32>} : vector<16x32xf32>, vector<32x128xf32>, vector<16x128xf32> -> vector<16x128xf32>
    %c1_32 = arith.constant 1 : index
    %c0_33 = arith.constant 0 : index
    %72 = vector.load %arg4[%c1_32, %c0_33] : memref<50x128xf32, #tpu.memory_space<vmem>>, vector<1x128xf32>
    %73 = vector.broadcast %72 : vector<1x128xf32> to vector<16x128xf32>
    %74 = arith.addf %71, %73 : vector<16x128xf32>
    %c1_34 = arith.constant 1 : index
    %c32_35 = arith.constant 32 : index
    %c0_36 = arith.constant 0 : index
    %75 = vector.load %arg3[%c1_34, %c32_35, %c0_36] : memref<3x64x128xf32, #tpu.memory_space<vmem>>, vector<1x32x128xf32>
    %76 = vector.shape_cast %75 : vector<1x32x128xf32> to vector<32x128xf32>
    %cst_37 = arith.constant 0.000000e+00 : f32
    %77 = vector.broadcast %cst_37 : f32 to vector<8x32xf32>
    %cst_38 = arith.constant 0.000000e+00 : f32
    %78 = vector.broadcast %cst_38 : f32 to vector<8x32xf32>
    %79 = vector.extract_strided_slice %74 {offsets = [0, 0], sizes = [8, 128], strides = [1, 1]} : vector<16x128xf32> to vector<8x128xf32>
    %cst_39 = arith.constant dense<0.000000e+00> : vector<8x128xf32>
    %80 = tpu.matmul %77, %76, %cst_39 {dimension_numbers = #tpu.dot_dimension_numbers<[1], [0], [0], [1], [0, 0, 1, 1], [], []>, precision = #tpu.contract_precision<fp32>} : vector<8x32xf32>, vector<32x128xf32>, vector<8x128xf32> -> vector<8x128xf32>
    %81 = arith.addf %79, %80 : vector<8x128xf32>
    %82 = math.tanh %81 : vector<8x128xf32>
    %83 = vector.extract_strided_slice %82 {offsets = [0, 0], sizes = [8, 32], strides = [1, 1]} : vector<8x128xf32> to vector<8x32xf32>
    %cst_40 = arith.constant 5.000000e-01 : f32
    %84 = vector.broadcast %cst_40 : f32 to vector<8x32xf32>
    %85 = arith.mulf %84, %83 : vector<8x32xf32>
    %cst_41 = arith.constant 5.000000e-01 : f32
    %86 = vector.broadcast %cst_41 : f32 to vector<8x32xf32>
    %87 = arith.addf %85, %86 : vector<8x32xf32>
    %88 = vector.extract_strided_slice %82 {offsets = [0, 32], sizes = [8, 32], strides = [1, 1]} : vector<8x128xf32> to vector<8x32xf32>
    %cst_42 = arith.constant 5.000000e-01 : f32
    %89 = vector.broadcast %cst_42 : f32 to vector<8x32xf32>
    %90 = arith.mulf %89, %88 : vector<8x32xf32>
    %cst_43 = arith.constant 5.000000e-01 : f32
    %91 = vector.broadcast %cst_43 : f32 to vector<8x32xf32>
    %92 = arith.addf %90, %91 : vector<8x32xf32>
    %93 = vector.extract_strided_slice %82 {offsets = [0, 64], sizes = [8, 32], strides = [1, 1]} : vector<8x128xf32> to vector<8x32xf32>
    %94 = vector.extract_strided_slice %82 {offsets = [0, 96], sizes = [8, 32], strides = [1, 1]} : vector<8x128xf32> to vector<8x32xf32>
    %cst_44 = arith.constant 5.000000e-01 : f32
    %95 = vector.broadcast %cst_44 : f32 to vector<8x32xf32>
    %96 = arith.mulf %95, %94 : vector<8x32xf32>
    %cst_45 = arith.constant 5.000000e-01 : f32
    %97 = vector.broadcast %cst_45 : f32 to vector<8x32xf32>
    %98 = arith.addf %96, %97 : vector<8x32xf32>
    %99 = arith.mulf %92, %78 : vector<8x32xf32>
    %100 = arith.mulf %87, %93 : vector<8x32xf32>
    %101 = arith.addf %99, %100 : vector<8x32xf32>
    %102 = math.tanh %101 : vector<8x32xf32>
    %103 = arith.mulf %98, %102 : vector<8x32xf32>
    %c0_46 = arith.constant 0 : index
    %c0_47 = arith.constant 0 : index
    %104 = vector.load %arg6[%c0_46, %c0_47] : memref<16x32xf32, #tpu.memory_space<vmem>>, vector<8x32xf32>
    tpu.vector_store %arg6[%c0_46, %c0_47], %103 {strides = array<i32>} : memref<16x32xf32, #tpu.memory_space<vmem>>, vector<8x32xf32>,
    %105 = vector.extract_strided_slice %74 {offsets = [8, 0], sizes = [8, 128], strides = [1, 1]} : vector<16x128xf32> to vector<8x128xf32>
    %cst_48 = arith.constant dense<0.000000e+00> : vector<8x128xf32>
    %106 = tpu.matmul %103, %76, %cst_48 {dimension_numbers = #tpu.dot_dimension_numbers<[1], [0], [0], [1], [0, 0, 1, 1], [], []>, precision = #tpu.contract_precision<fp32>} : vector<8x32xf32>, vector<32x128xf32>, vector<8x128xf32> -> vector<8x128xf32>
    %107 = arith.addf %105, %106 : vector<8x128xf32>
    %108 = math.tanh %107 : vector<8x128xf32>
    %109 = vector.extract_strided_slice %108 {offsets = [0, 0], sizes = [8, 32], strides = [1, 1]} : vector<8x128xf32> to vector<8x32xf32>
    %cst_49 = arith.constant 5.000000e-01 : f32
    %110 = vector.broadcast %cst_49 : f32 to vector<8x32xf32>
    %111 = arith.mulf %110, %109 : vector<8x32xf32>
    %cst_50 = arith.constant 5.000000e-01 : f32
    %112 = vector.broadcast %cst_50 : f32 to vector<8x32xf32>
    %113 = arith.addf %111, %112 : vector<8x32xf32>
    %114 = vector.extract_strided_slice %108 {offsets = [0, 32], sizes = [8, 32], strides = [1, 1]} : vector<8x128xf32> to vector<8x32xf32>
    %cst_51 = arith.constant 5.000000e-01 : f32
    %115 = vector.broadcast %cst_51 : f32 to vector<8x32xf32>
    %116 = arith.mulf %115, %114 : vector<8x32xf32>
    %cst_52 = arith.constant 5.000000e-01 : f32
    %117 = vector.broadcast %cst_52 : f32 to vector<8x32xf32>
    %118 = arith.addf %116, %117 : vector<8x32xf32>
    %119 = vector.extract_strided_slice %108 {offsets = [0, 64], sizes = [8, 32], strides = [1, 1]} : vector<8x128xf32> to vector<8x32xf32>
    %120 = vector.extract_strided_slice %108 {offsets = [0, 96], sizes = [8, 32], strides = [1, 1]} : vector<8x128xf32> to vector<8x32xf32>
    %cst_53 = arith.constant 5.000000e-01 : f32
    %121 = vector.broadcast %cst_53 : f32 to vector<8x32xf32>
    %122 = arith.mulf %121, %120 : vector<8x32xf32>
    %cst_54 = arith.constant 5.000000e-01 : f32
    %123 = vector.broadcast %cst_54 : f32 to vector<8x32xf32>
    %124 = arith.addf %122, %123 : vector<8x32xf32>
    %125 = arith.mulf %118, %101 : vector<8x32xf32>
    %126 = arith.mulf %113, %119 : vector<8x32xf32>
    %127 = arith.addf %125, %126 : vector<8x32xf32>
    %128 = math.tanh %127 : vector<8x32xf32>
    %129 = arith.mulf %124, %128 : vector<8x32xf32>
    %c8_55 = arith.constant 8 : index
    %c0_56 = arith.constant 0 : index
    %130 = vector.load %arg6[%c8_55, %c0_56] : memref<16x32xf32, #tpu.memory_space<vmem>>, vector<8x32xf32>
    tpu.vector_store %arg6[%c8_55, %c0_56], %129 {strides = array<i32>} : memref<16x32xf32, #tpu.memory_space<vmem>>, vector<8x32xf32>,
    %c0_57 = arith.constant 0 : index
    %c0_58 = arith.constant 0 : index
    %131 = vector.load %arg6[%c0_57, %c0_58] : memref<16x32xf32, #tpu.memory_space<vmem>>, vector<16x32xf32>
    %c2 = arith.constant 2 : index
    %c0_59 = arith.constant 0 : index
    %c0_60 = arith.constant 0 : index
    %132 = vector.load %arg3[%c2, %c0_59, %c0_60] : memref<3x64x128xf32, #tpu.memory_space<vmem>>, vector<1x32x128xf32>
    %133 = vector.shape_cast %132 : vector<1x32x128xf32> to vector<32x128xf32>
    %cst_61 = arith.constant dense<0.000000e+00> : vector<16x128xf32>
    %134 = tpu.matmul %131, %133, %cst_61 {dimension_numbers = #tpu.dot_dimension_numbers<[1], [0], [0], [1], [0, 0, 1, 1], [], []>, precision = #tpu.contract_precision<fp32>} : vector<16x32xf32>, vector<32x128xf32>, vector<16x128xf32> -> vector<16x128xf32>
    %c2_62 = arith.constant 2 : index
    %c0_63 = arith.constant 0 : index
    %135 = vector.load %arg4[%c2_62, %c0_63] : memref<50x128xf32, #tpu.memory_space<vmem>>, vector<1x128xf32>
    %136 = vector.broadcast %135 : vector<1x128xf32> to vector<16x128xf32>
    %137 = arith.addf %134, %136 : vector<16x128xf32>
    %c2_64 = arith.constant 2 : index
    %c32_65 = arith.constant 32 : index
    %c0_66 = arith.constant 0 : index
    %138 = vector.load %arg3[%c2_64, %c32_65, %c0_66] : memref<3x64x128xf32, #tpu.memory_space<vmem>>, vector<1x32x128xf32>
    %139 = vector.shape_cast %138 : vector<1x32x128xf32> to vector<32x128xf32>
    %cst_67 = arith.constant 0.000000e+00 : f32
    %140 = vector.broadcast %cst_67 : f32 to vector<8x32xf32>
    %cst_68 = arith.constant 0.000000e+00 : f32
    %141 = vector.broadcast %cst_68 : f32 to vector<8x32xf32>
    %142 = vector.extract_strided_slice %137 {offsets = [0, 0], sizes = [8, 128], strides = [1, 1]} : vector<16x128xf32> to vector<8x128xf32>
    %cst_69 = arith.constant dense<0.000000e+00> : vector<8x128xf32>
    %143 = tpu.matmul %140, %139, %cst_69 {dimension_numbers = #tpu.dot_dimension_numbers<[1], [0], [0], [1], [0, 0, 1, 1], [], []>, precision = #tpu.contract_precision<fp32>} : vector<8x32xf32>, vector<32x128xf32>, vector<8x128xf32> -> vector<8x128xf32>
    %144 = arith.addf %142, %143 : vector<8x128xf32>
    %145 = math.tanh %144 : vector<8x128xf32>
    %146 = vector.extract_strided_slice %145 {offsets = [0, 0], sizes = [8, 32], strides = [1, 1]} : vector<8x128xf32> to vector<8x32xf32>
    %cst_70 = arith.constant 5.000000e-01 : f32
    %147 = vector.broadcast %cst_70 : f32 to vector<8x32xf32>
    %148 = arith.mulf %147, %146 : vector<8x32xf32>
    %cst_71 = arith.constant 5.000000e-01 : f32
    %149 = vector.broadcast %cst_71 : f32 to vector<8x32xf32>
    %150 = arith.addf %148, %149 : vector<8x32xf32>
    %151 = vector.extract_strided_slice %145 {offsets = [0, 32], sizes = [8, 32], strides = [1, 1]} : vector<8x128xf32> to vector<8x32xf32>
    %cst_72 = arith.constant 5.000000e-01 : f32
    %152 = vector.broadcast %cst_72 : f32 to vector<8x32xf32>
    %153 = arith.mulf %152, %151 : vector<8x32xf32>
    %cst_73 = arith.constant 5.000000e-01 : f32
    %154 = vector.broadcast %cst_73 : f32 to vector<8x32xf32>
    %155 = arith.addf %153, %154 : vector<8x32xf32>
    %156 = vector.extract_strided_slice %145 {offsets = [0, 64], sizes = [8, 32], strides = [1, 1]} : vector<8x128xf32> to vector<8x32xf32>
    %157 = vector.extract_strided_slice %145 {offsets = [0, 96], sizes = [8, 32], strides = [1, 1]} : vector<8x128xf32> to vector<8x32xf32>
    %cst_74 = arith.constant 5.000000e-01 : f32
    %158 = vector.broadcast %cst_74 : f32 to vector<8x32xf32>
    %159 = arith.mulf %158, %157 : vector<8x32xf32>
    %cst_75 = arith.constant 5.000000e-01 : f32
    %160 = vector.broadcast %cst_75 : f32 to vector<8x32xf32>
    %161 = arith.addf %159, %160 : vector<8x32xf32>
    %162 = arith.mulf %155, %141 : vector<8x32xf32>
    %163 = arith.mulf %150, %156 : vector<8x32xf32>
    %164 = arith.addf %162, %163 : vector<8x32xf32>
    %165 = math.tanh %164 : vector<8x32xf32>
    %166 = arith.mulf %161, %165 : vector<8x32xf32>
    %c0_76 = arith.constant 0 : index
    %c0_77 = arith.constant 0 : index
    %167 = vector.load %arg6[%c0_76, %c0_77] : memref<16x32xf32, #tpu.memory_space<vmem>>, vector<8x32xf32>
    tpu.vector_store %arg6[%c0_76, %c0_77], %166 {strides = array<i32>} : memref<16x32xf32, #tpu.memory_space<vmem>>, vector<8x32xf32>,
    %168 = vector.extract_strided_slice %137 {offsets = [8, 0], sizes = [8, 128], strides = [1, 1]} : vector<16x128xf32> to vector<8x128xf32>
    %cst_78 = arith.constant dense<0.000000e+00> : vector<8x128xf32>
    %169 = tpu.matmul %166, %139, %cst_78 {dimension_numbers = #tpu.dot_dimension_numbers<[1], [0], [0], [1], [0, 0, 1, 1], [], []>, precision = #tpu.contract_precision<fp32>} : vector<8x32xf32>, vector<32x128xf32>, vector<8x128xf32> -> vector<8x128xf32>
    %170 = arith.addf %168, %169 : vector<8x128xf32>
    %171 = math.tanh %170 : vector<8x128xf32>
    %172 = vector.extract_strided_slice %171 {offsets = [0, 0], sizes = [8, 32], strides = [1, 1]} : vector<8x128xf32> to vector<8x32xf32>
    %cst_79 = arith.constant 5.000000e-01 : f32
    %173 = vector.broadcast %cst_79 : f32 to vector<8x32xf32>
    %174 = arith.mulf %173, %172 : vector<8x32xf32>
    %cst_80 = arith.constant 5.000000e-01 : f32
    %175 = vector.broadcast %cst_80 : f32 to vector<8x32xf32>
    %176 = arith.addf %174, %175 : vector<8x32xf32>
    %177 = vector.extract_strided_slice %171 {offsets = [0, 32], sizes = [8, 32], strides = [1, 1]} : vector<8x128xf32> to vector<8x32xf32>
    %cst_81 = arith.constant 5.000000e-01 : f32
    %178 = vector.broadcast %cst_81 : f32 to vector<8x32xf32>
    %179 = arith.mulf %178, %177 : vector<8x32xf32>
    %cst_82 = arith.constant 5.000000e-01 : f32
    %180 = vector.broadcast %cst_82 : f32 to vector<8x32xf32>
    %181 = arith.addf %179, %180 : vector<8x32xf32>
    %182 = vector.extract_strided_slice %171 {offsets = [0, 64], sizes = [8, 32], strides = [1, 1]} : vector<8x128xf32> to vector<8x32xf32>
    %183 = vector.extract_strided_slice %171 {offsets = [0, 96], sizes = [8, 32], strides = [1, 1]} : vector<8x128xf32> to vector<8x32xf32>
    %cst_83 = arith.constant 5.000000e-01 : f32
    %184 = vector.broadcast %cst_83 : f32 to vector<8x32xf32>
    %185 = arith.mulf %184, %183 : vector<8x32xf32>
    %cst_84 = arith.constant 5.000000e-01 : f32
    %186 = vector.broadcast %cst_84 : f32 to vector<8x32xf32>
    %187 = arith.addf %185, %186 : vector<8x32xf32>
    %188 = arith.mulf %181, %164 : vector<8x32xf32>
    %189 = arith.mulf %176, %182 : vector<8x32xf32>
    %190 = arith.addf %188, %189 : vector<8x32xf32>
    %191 = math.tanh %190 : vector<8x32xf32>
    %192 = arith.mulf %187, %191 : vector<8x32xf32>
    %c8_85 = arith.constant 8 : index
    %c0_86 = arith.constant 0 : index
    %193 = vector.load %arg6[%c8_85, %c0_86] : memref<16x32xf32, #tpu.memory_space<vmem>>, vector<8x32xf32>
    tpu.vector_store %arg6[%c8_85, %c0_86], %192 {strides = array<i32>} : memref<16x32xf32, #tpu.memory_space<vmem>>, vector<8x32xf32>,
    %c48 = arith.constant 48 : index
    %c0_87 = arith.constant 0 : index
    %194 = vector.load %arg4[%c48, %c0_87] : memref<50x128xf32, #tpu.memory_space<vmem>>, vector<2x16xf32>
    %c0_88 = arith.constant 0 : index
    %c0_89 = arith.constant 0 : index
    %195 = vector.load %arg6[%c0_88, %c0_89] : memref<16x32xf32, #tpu.memory_space<vmem>>, vector<16x32xf32>
    %cst_90 = arith.constant dense<0.000000e+00> : vector<2x32xf32>
    %196 = tpu.matmul %194, %195, %cst_90 {dimension_numbers = #tpu.dot_dimension_numbers<[1], [0], [0], [1], [0, 0, 1, 1], [], []>, precision = #tpu.contract_precision<fp32>} : vector<2x16xf32>, vector<16x32xf32>, vector<2x32xf32> -> vector<2x32xf32>
    %197 = math.tanh %196 : vector<2x32xf32>
    %c8_91 = arith.constant 8 : index
    %c0_92 = arith.constant 0 : index
    %198 = vector.load %arg4[%c8_91, %c0_92] : memref<50x128xf32, #tpu.memory_space<vmem>>, vector<32x128xf32>
    %c40 = arith.constant 40 : index
    %c0_93 = arith.constant 0 : index
    %199 = vector.load %arg4[%c40, %c0_93] : memref<50x128xf32, #tpu.memory_space<vmem>>, vector<1x128xf32>
    %cst_94 = arith.constant dense<0.000000e+00> : vector<2x128xf32>
    %200 = tpu.matmul %197, %198, %cst_94 {dimension_numbers = #tpu.dot_dimension_numbers<[1], [0], [0], [1], [0, 0, 1, 1], [], []>, precision = #tpu.contract_precision<fp32>} : vector<2x32xf32>, vector<32x128xf32>, vector<2x128xf32> -> vector<2x128xf32>
    %201 = vector.broadcast %199 : vector<1x128xf32> to vector<2x128xf32>
    %202 = arith.addf %200, %201 : vector<2x128xf32>
    %c0_95 = arith.constant 0 : index
    %c0_96 = arith.constant 0 : index
    %c0_97 = arith.constant 0 : index
    %203 = vector.load %arg5[%c0_95, %c0_96, %c0_97] : memref<1x2x128xf32, #tpu.memory_space<vmem>>, vector<1x2x128xf32>
    %204 = vector.shape_cast %203 : vector<1x2x128xf32> to vector<2x128xf32>
    %205 = vector.shape_cast %202 : vector<2x128xf32> to vector<1x2x128xf32>
    tpu.vector_store %arg5[%c0_95, %c0_96, %c0_97], %205 {strides = array<i32>} : memref<1x2x128xf32, #tpu.memory_space<vmem>>, vector<1x2x128xf32>,
    return
  }
  func.func @transform_0(%arg0: i32) -> (i32, i32, i32) {
    %c0_i32 = arith.constant 0 : i32
    %c0_i32_0 = arith.constant 0 : i32
    %c0_i32_1 = arith.constant 0 : i32
    return %arg0, %c0_i32, %c0_i32_0 : i32, i32, i32
  }
  func.func @transform_1(%arg0: i32) -> (i32, i32) {
    %c0_i32 = arith.constant 0 : i32
    %c0_i32_0 = arith.constant 0 : i32
    %c0_i32_1 = arith.constant 0 : i32
    return %c0_i32, %c0_i32_0 : i32, i32
  }
  func.func @transform_2(%arg0: i32) -> (i32, i32, i32) {
    %c0_i32 = arith.constant 0 : i32
    %c0_i32_0 = arith.constant 0 : i32
    %c0_i32_1 = arith.constant 0 : i32
    %c0_i32_2 = arith.constant 0 : i32
    return %c0_i32, %c0_i32_0, %c0_i32_1 : i32, i32, i32
  }
  func.func @transform_3(%arg0: i32) -> (i32, i32) {
    %c0_i32 = arith.constant 0 : i32
    %c0_i32_0 = arith.constant 0 : i32
    %c0_i32_1 = arith.constant 0 : i32
    return %c0_i32, %c0_i32_0 : i32, i32
  }
  func.func @transform_4(%arg0: i32) -> (i32, i32, i32) {
    %c0_i32 = arith.constant 0 : i32
    %c0_i32_0 = arith.constant 0 : i32
    %c0_i32_1 = arith.constant 0 : i32
    return %arg0, %c0_i32, %c0_i32_0 : i32, i32, i32
  }
}

</mosaic_0001>

<llo_original>
// kernel: lstm_net_pallas.1
$region0: #{lstm_net_pallas.1}
  #allocation0 [shape = 'u32[]', space=smem, size = 0x4, offset = 0x4, fixed_abs, tag = 'smem constant byte address 0x4 - core index']
  #allocation1 [shape = 'u32[144,128]{1,0:T(1,128)}', space=vmem, size = 0x12000, scoped, tag = 'internal scratch']
  #allocation2 [shape = 'f32[16,32]{1,0:T(8,128)}', space=vmem, size = 0x2000, scoped, tag = 'scratch operand']
  %s0 = inlined_call_operand.vmem [shape: s32[2,16,1], index: 0, kind: input, shape index: {}]
  %s1 = inlined_call_operand.hbm [shape: f32[50,128], index: 1, kind: input, shape index: {}]
  %s2 = inlined_call_operand.hbm [shape: f32[3,64,128], index: 2, kind: input, shape index: {}]
  %s3 = inlined_call_operand.hbm [shape: f32[50,128], index: 3, kind: input, shape index: {}]
  %s4 = inlined_call_operand.hbm [shape: f32[2,2,128], index: 4, kind: output, shape index: {}]
  %s5 = sld [smem:[#allocation0]]
  $region61: #{lstm_net_pallas.1} parent=0
    _
  %s7 = ssub.s32 1, %s5
  %s8 = scalar_select 0, %s7, %s5
  $region1: #{lstm_net_pallas.1} parent=0
    #allocation3 [shape = 'u8[28672]{0}', space=vmem, size = 0x7000, scoped, tag = 'input window, operand 1, single buffered']
    #allocation4 [shape = 's32[2]{0}', space=sflag, size = 0x8, scoped, tag = 'scoped memory for lstm_net_pallas.1']
    #allocation5 [shape = 's32[2]{0}', space=sflag, size = 0x8, scoped, tag = 'scoped memory for lstm_net_pallas.1']
    #allocation6 [shape = 'u8[98304]{0}', space=vmem, size = 0x18000, scoped, tag = 'input window, operand 2, single buffered']
    #allocation7 [shape = 's32[1]{0}', space=sflag, size = 0x4, scoped, tag = 'scoped memory for lstm_net_pallas.1']
    #allocation8 [shape = 'u8[28672]{0}', space=vmem, size = 0x7000, scoped, tag = 'input window, operand 3, single buffered']
    #allocation9 [shape = 'u8[2048]{0}', space=vmem, size = 0x800, scoped, tag = 'output window, operand 0']
    %9 = vsyncpa [#allocation4], 0
    %10 = vsyncpa [#allocation7], 0
    %11 = vsyncpa [#allocation5], 0
    %s12 = scalar_lea.sflag [#allocation5], 1
    %13 = vsyncpa %s12, 0
    loop: start=0, step=1, limit=4
    $region2: #{lstm_net_pallas.1} parent=1 // loop_pre_header
      _
    $region3: #{lstm_net_pallas.1} parent=1 // loop_header
      %s15 = sphi 0, %s19
      %p16 = scmp.ge.s32.totalorder %s15, 4
      %s25 = sphi 0, %s27
      %s28 = sphi 0, %s25
      %s29 = sphi 0, %s28
      %s45 = sphi 0, %s29
      %s49 = sphi 0, %s49
      %s51 = sphi 0, %s49
      %s52 = sphi 0, %s51
      %s66 = sphi 0, %s52
      %s70 = sphi 0, %s70
      %s72 = sphi 0, %s70
      %s73 = sphi 0, %s72
      %s87 = sphi 0, %s73
      %s91 = sphi 0, %s91
      %s93 = sphi 0, %s91
      %s94 = sphi 0, %s93
      %s108 = sphi 0, %s94
      %s114 = sphi 0, %s116
      %s117 = sphi 0, %s114
      %s118 = sphi 0, %s117
      %s134 = sphi 0, %s118
    $region4: #{lstm_net_pallas.1} parent=1 // loop_header_branch
      %18 = sbr.rel (%p16) target = $region8
    $region5: #{lstm_net_pallas.1} parent=1 // loop_body
      %s20 = ssub.s32 %s15, 1
      %s21 = ssub.s32 %s15, 2
      %s22 = sadd.s32 %s15, 1
      %s23 = ssub.s32 %s15, %s22
      %p24 = scmp.eq.s32.totalorder %s23, 0
      %s26 = sadd.s32 %s25, 1
      %s27 = scalar_select %p24, %s25, %s26
      %p30 = pneg %p24
      %p31 = scmp.eq.s32.totalorder %s15, 1
      %p32 = por %p30, %p31
      %p33 = scmp.ne.s32.totalorder %s25, %s28
      %p34 = scmp.eq.s32.totalorder %s15, 0
      %p35 = por %p33, %p34
      %p36 = scmp.ne.s32.totalorder %s25, %s28
      %p37 = scmp.eq.s32.totalorder %s20, 1
      %p38 = por %p36, %p37
      %p39 = scmp.ne.s32.totalorder %s28, %s29
      %p40 = scmp.eq.s32.totalorder %s20, 0
      %p41 = por %p39, %p40
      %p42 = scmp.ne.s32.totalorder %s28, %s29
      %p43 = scmp.eq.s32.totalorder %s21, 1
      %p44 = por %p42, %p43
      %p46 = scmp.ne.s32.totalorder %s29, %s45
      %p47 = scmp.eq.s32.totalorder %s21, 0
      %p48 = por %p46, %p47
      %s50 = sadd.s32 %s49, 1
      %p53 = scmp.eq.s32.totalorder %s15, 1
      %p54 = scmp.ne.s32.totalorder %s49, %s51
      %p55 = scmp.eq.s32.totalorder %s15, 0
      %p56 = por %p54, %p55
      %p57 = scmp.ne.s32.totalorder %s49, %s51
      %p58 = scmp.eq.s32.totalorder %s20, 1
      %p59 = por %p57, %p58
      %p60 = scmp.ne.s32.totalorder %s51, %s52
      %p61 = scmp.eq.s32.totalorder %s20, 0
      %p62 = por %p60, %p61
      %p63 = scmp.ne.s32.totalorder %s51, %s52
      %p64 = scmp.eq.s32.totalorder %s21, 1
      %p65 = por %p63, %p64
      %p67 = scmp.ne.s32.totalorder %s52, %s66
      %p68 = scmp.eq.s32.totalorder %s21, 0
      %p69 = por %p67, %p68
      %s71 = sadd.s32 %s70, 1
      %p74 = scmp.eq.s32.totalorder %s15, 1
      %p75 = scmp.ne.s32.totalorder %s70, %s72
      %p76 = scmp.eq.s32.totalorder %s15, 0
      %p77 = por %p75, %p76
      %p78 = scmp.ne.s32.totalorder %s70, %s72
      %p79 = scmp.eq.s32.totalorder %s20, 1
      %p80 = por %p78, %p79
      %p81 = scmp.ne.s32.totalorder %s72, %s73
      %p82 = scmp.eq.s32.totalorder %s20, 0
      %p83 = por %p81, %p82
      %p84 = scmp.ne.s32.totalorder %s72, %s73
      %p85 = scmp.eq.s32.totalorder %s21, 1
      %p86 = por %p84, %p85
      %p88 = scmp.ne.s32.totalorder %s73, %s87
      %p89 = scmp.eq.s32.totalorder %s21, 0
      %p90 = por %p88, %p89
      %s92 = sadd.s32 %s91, 1
      %p95 = scmp.eq.s32.totalorder %s15, 1
      %p96 = scmp.ne.s32.totalorder %s91, %s93
      %p97 = scmp.eq.s32.totalorder %s15, 0
      %p98 = por %p96, %p97
      %p99 = scmp.ne.s32.totalorder %s91, %s93
      %p100 = scmp.eq.s32.totalorder %s20, 1
      %p101 = por %p99, %p100
      %p102 = scmp.ne.s32.totalorder %s93, %s94
      %p103 = scmp.eq.s32.totalorder %s20, 0
      %p104 = por %p102, %p103
      %p105 = scmp.ne.s32.totalorder %s93, %s94
      %p106 = scmp.eq.s32.totalorder %s21, 1
      %p107 = por %p105, %p106
      %p109 = scmp.ne.s32.totalorder %s94, %s108
      %p110 = scmp.eq.s32.totalorder %s21, 0
      %p111 = por %p109, %p110
      %s112 = ssub.s32 %s15, %s22
      %p113 = scmp.eq.s32.totalorder %s112, 0
      %s115 = sadd.s32 %s114, 1
      %s116 = scalar_select %p113, %s114, %s115
      %p119 = pneg %p113
      %p120 = scmp.eq.s32.totalorder %s15, 1
      %p121 = por %p119, %p120
      %p122 = scmp.ne.s32.totalorder %s114, %s117
      %p123 = scmp.eq.s32.totalorder %s15, 0
      %p124 = por %p122, %p123
      %p125 = scmp.ne.s32.totalorder %s114, %s117
      %p126 = scmp.eq.s32.totalorder %s20, 1
      %p127 = por %p125, %p126
      %p128 = scmp.ne.s32.totalorder %s117, %s118
      %p129 = scmp.eq.s32.totalorder %s20, 0
      %p130 = por %p128, %p129
      %p131 = scmp.ne.s32.totalorder %s117, %s118
      %p132 = scmp.eq.s32.totalorder %s21, 1
      %p133 = por %p131, %p132
      %p135 = scmp.ne.s32.totalorder %s118, %s134
      %p136 = scmp.eq.s32.totalorder %s21, 0
      %p137 = por %p135, %p136
      %p138 = scmp.le.s32.totalorder 1, %s15
      %p139 = scmp.lt.s32.totalorder %s15, 3
      %p140 = pnand %p138, %p139
      %p141 = pneg %p140
      // Predicated region
      $region9: #{lstm_net_pallas.1} parent=5 // pred_check
        _
      $region10: #{lstm_net_pallas.1} parent=5 // pred_check_branch
        %143 = sbr.rel (%p140) target = $region12
      $region11: #{lstm_net_pallas.1} parent=5 // pred_region
        %s144 = ssub.s32 %s15, 1
        // Predicated region
        $region13: #{lstm_net_pallas.1} parent=11 // pred_check
          %p145 = pneg %p62
        $region14: #{lstm_net_pallas.1} parent=11 // pred_check_branch
          %147 = sbr.rel (%p145) target = $region16
        $region15: #{lstm_net_pallas.1} parent=11 // pred_region
          %s149 = ssub.s32 896, 896
          %150 = vsyncadd [#allocation4], %s149
          %s151 = sshll.u32 [#allocation3], 4
          %s152 = int_to_ptr.vmem [resolvable:$true] %s151
          %157 = dma.hbm_to_vmem [thread:$0]  %s1, 896, %s152, [#allocation4], 128, 128, 8
        $region16: #{lstm_net_pallas.1} parent=11 // pred_fallthru
          _
        // Predicated region
        $region17: #{lstm_net_pallas.1} parent=11 // pred_check
          %p158 = pneg %p83
        $region18: #{lstm_net_pallas.1} parent=11 // pred_check_branch
          %160 = sbr.rel (%p158) target = $region20
        $region19: #{lstm_net_pallas.1} parent=11 // pred_region
          %s162 = ssub.s32 3072, 3072
          %163 = vsyncadd [#allocation7], %s162
          %s164 = sshll.u32 [#allocation6], 4
          %s165 = int_to_ptr.vmem [resolvable:$true] %s164
          %170 = dma.hbm_to_vmem [thread:$0]  %s2, 3072, %s165, [#allocation7], 128, 128, 8
        $region20: #{lstm_net_pallas.1} parent=11 // pred_fallthru
          _
        // Predicated region
        $region21: #{lstm_net_pallas.1} parent=11 // pred_check
          %p171 = pneg %p104
        $region22: #{lstm_net_pallas.1} parent=11 // pred_check_branch
          %173 = sbr.rel (%p171) target = $region24
        $region23: #{lstm_net_pallas.1} parent=11 // pred_region
          %s175 = ssub.s32 896, 896
          %176 = vsyncadd [#allocation7], %s175
          %s177 = sshll.u32 [#allocation8], 4
          %s178 = int_to_ptr.vmem [resolvable:$true] %s177
          %183 = dma.hbm_to_vmem [thread:$0]  %s3, 896, %s178, [#allocation7], 128, 128, 8
        $region24: #{lstm_net_pallas.1} parent=11 // pred_fallthru
          _
      $region12: #{lstm_net_pallas.1} parent=5 // pred_fallthru
        _
      %p184 = scmp.lt.s32.totalorder %s15, 2
      // Predicated region
      $region25: #{lstm_net_pallas.1} parent=5 // pred_check
        %p185 = pneg %p184
      $region26: #{lstm_net_pallas.1} parent=5 // pred_check_branch
        %187 = sbr.rel (%p185) target = $region28
      $region27: #{lstm_net_pallas.1} parent=5 // pred_region
        // Predicated region
        $region29: #{lstm_net_pallas.1} parent=27 // pred_check
          %p188 = pneg %p35
        $region30: #{lstm_net_pallas.1} parent=27 // pred_check_branch
          %190 = sbr.rel (%p188) target = $region32
        $region31: #{lstm_net_pallas.1} parent=27 // pred_region
          %p191 = scmp.lt.s32.totalorder %s15, 1
          %s192 = scalar_select %p191, %s15, 1
          %s193 = smul.addr %s192, 2
          %s194 = smul.addr %s193, 8
          %s195 = scalar_lea.vmem %s0, %s194
        $region32: #{lstm_net_pallas.1} parent=27 // pred_fallthru
          _
      $region28: #{lstm_net_pallas.1} parent=5 // pred_fallthru
        _
      %p196 = scmp.le.s32.totalorder 1, %s15
      %p197 = scmp.lt.s32.totalorder %s15, 3
      %p198 = pnand %p196, %p197
      %p199 = pneg %p198
      // Predicated region
      $region33: #{lstm_net_pallas.1} parent=5 // pred_check
        _
      $region34: #{lstm_net_pallas.1} parent=5 // pred_check_branch
        %201 = sbr.rel (%p198) target = $region36
      $region35: #{lstm_net_pallas.1} parent=5 // pred_region
        %s202 = ssub.s32 %s15, 1
        // Predicated region
        $region37: #{lstm_net_pallas.1} parent=35 // pred_check
          %p203 = pneg %p62
        $region38: #{lstm_net_pallas.1} parent=35 // pred_check_branch
          %205 = sbr.rel (%p203) target = $region40
        $region39: #{lstm_net_pallas.1} parent=35 // pred_region
          %206 = dma.done [#allocation4], 896
        $region40: #{lstm_net_pallas.1} parent=35 // pred_fallthru
          _
        // Predicated region
        $region41: #{lstm_net_pallas.1} parent=35 // pred_check
          %p207 = pneg %p83
        $region42: #{lstm_net_pallas.1} parent=35 // pred_check_branch
          %209 = sbr.rel (%p207) target = $region44
        $region43: #{lstm_net_pallas.1} parent=35 // pred_region
          %210 = dma.done [#allocation7], 3072
        $region44: #{lstm_net_pallas.1} parent=35 // pred_fallthru
          _
        // Predicated region
        $region45: #{lstm_net_pallas.1} parent=35 // pred_check
          %p211 = pneg %p104
        $region46: #{lstm_net_pallas.1} parent=35 // pred_check_branch
          %213 = sbr.rel (%p211) target = $region48
        $region47: #{lstm_net_pallas.1} parent=35 // pred_region
          %214 = dma.done [#allocation7], 896
        $region48: #{lstm_net_pallas.1} parent=35 // pred_fallthru
          _
        %p215 = scmp.lt.s32.totalorder %s20, 1
        %s216 = scalar_select %p215, %s20, 1
        %s217 = smul.addr %s216, 2
        %s218 = smul.addr %s217, 8
        %s219 = scalar_lea.vmem %s0, %s218
        %p220 = pneg %p41
        %p221 = pneg %p38
        %p222 = pneg %p62
        %p223 = pneg %p59
        %p224 = pneg %p83
        %p225 = pneg %p80
        %p226 = pneg %p104
        %p227 = pneg %p101
        %p228 = pneg %p130
        %p229 = pneg %p127
        %s230 = sand.u32 %s117, 1
        %s231 = scalar_lea.sflag [#allocation5], %s230
        %s232 = sand.u32 %s117, 1
        %s233 = smul.addr %s232, 2
        %s234 = scalar_lea.vmem [#allocation9], %s233
        %p235 = scmp.lt.s32.totalorder %s20, 1
        %s236 = scalar_select %p235, %s20, 1
        %s237 = smul.addr %s236, 2
        %s238 = smul.addr %s237, 8
        %s239 = scalar_lea.vmem %s0, %s238
        %v240 = vld [vmem:[%s239] sm:$0xff]
        %v241 = vld [vmem:[%s239 + $0x8] sm:$0xff]
        %v242 = vlaneseq
        %v243 = vand.u32 %v242, 127
        %244 = vset.pattern.permute.xlu0 0
        %245 = vperm.xlu0 %244, %v240
        %v246 = vpop.permute.xlu0 %245
        %247 = vset.pattern.permute.xlu0 0
        %248 = vperm.xlu0 %247, %v241
        %v249 = vpop.permute.xlu0 %248
        %vm250 = vcmp.eq.s32.totalorder %v243, %v246
        %vm251 = vcmp.eq.s32.totalorder %v243, %v249
        %v252 = vsel %vm250, 1, 0
        %v253 = vsel %vm251, 1, 0
        %v254 = vcvt.s32.f32 %v252
        %v255 = vcvt.s32.f32 %v253
        %v256 = vld [vmem:[#allocation3] sm:$0xff]
        %v257 = vld [vmem:[#allocation3 + $0x8] sm:$0xff]
        %v258 = vld [vmem:[#allocation3 + $0x10] sm:$0xff]
        %v259 = vld [vmem:[#allocation3 + $0x18] sm:$0xff]
        %v260 = vld [vmem:[#allocation3 + $0x20] sm:$0xff]
        %v261 = vld [vmem:[#allocation3 + $0x28] sm:$0xff]
        %v262 = vld [vmem:[#allocation3 + $0x30] sm:$0x3]
        %v263 = vld [vmem:[#allocation8] sm:$0x1]
        %v264 = vlaneseq
        %v265 = vshrl.u32 %v264, 7
        %v266 = vsub.s32 0, %v265
        %v267 = vrot.slane %v263, %v266
        %vm268 = vcmask 408576
        %v270 = vsel %vm268, %v254, 0
        %v273 = vsel %vm268, %v255, 0
        %vm275 = vcmask 1041408
        %v277 = vsel %vm275, %v262, 0
        %279 = vmatprep.subr.mxu0 0.0
        %v280 = vand.u32 %v256, 4294901760
        %281 = vmatpush1.msra.mxu0 %v280
        %282 = vmatprep.subr.mxu0 0.0
        %v283 = vand.u32 %v257, 4294901760
        %284 = vmatpush1.msra.mxu0 %v283
        %285 = vmatprep.subr.mxu0 0.0
        %v286 = vand.u32 %v258, 4294901760
        %287 = vmatpush1.msra.mxu0 %v286
        %288 = vmatprep.subr.mxu0 0.0
        %v289 = vand.u32 %v259, 4294901760
        %290 = vmatpush1.msra.mxu0 %v289
        %291 = vmatprep.subr.mxu0 0.0
        %v292 = vand.u32 %v260, 4294901760
        %293 = vmatpush1.msra.mxu0 %v292
        %294 = vmatprep.subr.mxu0 0.0
        %v295 = vand.u32 %v261, 4294901760
        %296 = vmatpush1.msra.mxu0 %v295
        %297 = vmatprep.subr.mxu0 0.0
        %v298 = vand.u32 %v277, 4294901760
        %299 = vmatpush1.msra.mxu0 %v298
        %300 = vmatprep.subr.mxu0 0.0
        %301 = vmatpush1.msra.mxu0 0.0
        %302 = vmatprep.subr.mxu0 0.0
        %303 = vmatpush1.msra.mxu0 0.0
        %304 = vmatprep.subr.mxu0 0.0
        %305 = vmatpush1.msra.mxu0 0.0
        %306 = vmatprep.subr.mxu0 0.0
        %307 = vmatpush1.msra.mxu0 0.0
        %308 = vmatprep.subr.mxu0 0.0
        %309 = vmatpush1.msra.mxu0 0.0
        %310 = vmatprep.subr.mxu0 0.0
        %311 = vmatpush1.msra.mxu0 0.0
        %312 = vmatprep.subr.mxu0 0.0
        %313 = vmatpush1.msra.mxu0 0.0
        %314 = vmatprep.subr.mxu0 0.0
        %315 = vmatpush1.msra.mxu0 0.0
        %316 = vmatprep.subr.mxu0 0.0
        %317 = vmatpush1.msra.mxu0 0.0
        %318 = vmatprep.subr.mxu0 0.0
        %319 = vmatpush1.msra.mxu0 0.0
        %320 = vmatprep.subr.mxu0 0.0
        %321 = vmatpush1.msra.mxu0 0.0
        %322 = vmatprep.subr.mxu0 0.0
        %323 = vmatpush1.msra.mxu0 0.0
        %324 = vmatprep.subr.mxu0 0.0
        %325 = vmatpush1.msra.mxu0 0.0
        %326 = vmatprep.subr.mxu0 0.0
        %327 = vmatpush1.msra.mxu0 0.0
        %328 = vmatprep.subr.mxu0 0.0
        %329 = vmatpush1.msra.mxu0 0.0
        %330 = vmatprep.subr.mxu0 0.0
        %331 = vmatpush1.msra.mxu0 0.0
        %332 = vmatprep.subr.mxu0 0.0
        %333 = vmatpush1.msra.mxu0 0.0
        %334 = vmatprep.subr.mxu0 0.0
        %335 = vmatpush1.msra.mxu0 0.0
        %336 = vmatprep.subr.mxu0 0.0
        %337 = vmatpush1.msra.mxu0 0.0
        %338 = vmatprep.subr.mxu0 0.0
        %339 = vmatpush1.msra.mxu0 0.0
        %340 = vmatprep.subr.mxu0 0.0
        %341 = vmatpush1.msra.mxu0 0.0
        %342 = vmatprep.subr.mxu0 0.0
        %343 = vmatpush1.msra.mxu0 0.0
        %344 = vmatprep.subr.mxu0 0.0
        %345 = vmatpush1.msra.mxu0 0.0
        %346 = vmatprep.subr.mxu0 0.0
        %347 = vmatpush1.msra.mxu0 0.0
        %348 = vmatprep.subr.mxu0 0.0
        %349 = vmatpush1.msra.mxu0 0.0
        %350 = vmatprep.mubr.f32.mxu0 0.0
        %v351 = vand.u32 %v270, 4294901760
        %v352 = vsub.f32 %v270, %v351
        %v353 = vand.u32 %v352, 4294901760
        %v354 = vsub.f32 %v352, %v353
        %v355 = vand.u32 %v354, 4294901760
        %356 = vmatmul.mubr.f32.gmra.mrb[0].mxu0 %v355
        %v357 = vpop.f32.mrb[0].mxu0
        %v358 = vadd.f32 %v267, %v357
        %v359 = vpop.f32.mrb[0].mxu0
        %360 = vmatprep.mubr.f32.mxu0 0.0
        %v361 = vand.u32 %v273, 4294901760
        %v362 = vsub.f32 %v273, %v361
        %v363 = vand.u32 %v362, 4294901760
        %v364 = vsub.f32 %v362, %v363
        %v365 = vand.u32 %v364, 4294901760
        %366 = vmatmul.mubr.f32.gmra.mrb[0].mxu0 %v365
        %v367 = vpop.f32.mrb[0].mxu0
        %v368 = vadd.f32 %v267, %v367
        %v369 = vpop.f32.mrb[0].mxu0
        %370 = vdwg.mxu0
        %371 = vmatprep.subr.mxu0 0.0
        %v372 = vand.u32 %v256, 4294901760
        %v373 = vsub.f32 %v256, %v372
        %v374 = vand.u32 %v373, 4294901760
        %v375 = vsub.f32 %v373, %v374
        %v376 = vand.u32 %v375, 4294901760
        %377 = vmatpush1.msra.mxu0 %v376
        %378 = vmatprep.subr.mxu0 0.0
        %v379 = vand.u32 %v257, 4294901760
        %v380 = vsub.f32 %v257, %v379
        %v381 = vand.u32 %v380, 4294901760
        %v382 = vsub.f32 %v380, %v381
        %v383 = vand.u32 %v382, 4294901760
        %384 = vmatpush1.msra.mxu0 %v383
        %385 = vmatprep.subr.mxu0 0.0
        %v386 = vand.u32 %v258, 4294901760
        %v387 = vsub.f32 %v258, %v386
        %v388 = vand.u32 %v387, 4294901760
        %v389 = vsub.f32 %v387, %v388
        %v390 = vand.u32 %v389, 4294901760
        %391 = vmatpush1.msra.mxu0 %v390
        %392 = vmatprep.subr.mxu0 0.0
        %v393 = vand.u32 %v259, 4294901760
        %v394 = vsub.f32 %v259, %v393
        %v395 = vand.u32 %v394, 4294901760
        %v396 = vsub.f32 %v394, %v395
        %v397 = vand.u32 %v396, 4294901760
        %398 = vmatpush1.msra.mxu0 %v397
        %399 = vmatprep.subr.mxu0 0.0
        %v400 = vand.u32 %v260, 4294901760
        %v401 = vsub.f32 %v260, %v400
        %v402 = vand.u32 %v401, 4294901760
        %v403 = vsub.f32 %v401, %v402
        %v404 = vand.u32 %v403, 4294901760
        %405 = vmatpush1.msra.mxu0 %v404
        %406 = vmatprep.subr.mxu0 0.0
        %v407 = vand.u32 %v261, 4294901760
        %v408 = vsub.f32 %v261, %v407
        %v409 = vand.u32 %v408, 4294901760
        %v410 = vsub.f32 %v408, %v409
        %v411 = vand.u32 %v410, 4294901760
        %412 = vmatpush1.msra.mxu0 %v411
        %413 = vmatprep.subr.mxu0 0.0
        %v414 = vand.u32 %v277, 4294901760
        %v415 = vsub.f32 %v277, %v414
        %v416 = vand.u32 %v415, 4294901760
        %v417 = vsub.f32 %v415, %v416
        %v418 = vand.u32 %v417, 4294901760
        %419 = vmatpush1.msra.mxu0 %v418
        %420 = vmatprep.subr.mxu0 0.0
        %421 = vmatpush1.msra.mxu0 0.0
        %422 = vmatprep.subr.mxu0 0.0
        %423 = vmatpush1.msra.mxu0 0.0
        %424 = vmatprep.subr.mxu0 0.0
        %425 = vmatpush1.msra.mxu0 0.0
        %426 = vmatprep.subr.mxu0 0.0
        %427 = vmatpush1.msra.mxu0 0.0
        %428 = vmatprep.subr.mxu0 0.0
        %429 = vmatpush1.msra.mxu0 0.0
        %430 = vmatprep.subr.mxu0 0.0
        %431 = vmatpush1.msra.mxu0 0.0
        %432 = vmatprep.subr.mxu0 0.0
        %433 = vmatpush1.msra.mxu0 0.0
        %434 = vmatprep.subr.mxu0 0.0
        %435 = vmatpush1.msra.mxu0 0.0
        %436 = vmatprep.subr.mxu0 0.0
        %437 = vmatpush1.msra.mxu0 0.0
        %438 = vmatprep.subr.mxu0 0.0
        %439 = vmatpush1.msra.mxu0 0.0
        %440 = vmatprep.subr.mxu0 0.0
        %441 = vmatpush1.msra.mxu0 0.0
        %442 = vmatprep.subr.mxu0 0.0
        %443 = vmatpush1.msra.mxu0 0.0
        %444 = vmatprep.subr.mxu0 0.0
        %445 = vmatpush1.msra.mxu0 0.0
        %446 = vmatprep.subr.mxu0 0.0
        %447 = vmatpush1.msra.mxu0 0.0
        %448 = vmatprep.subr.mxu0 0.0
        %449 = vmatpush1.msra.mxu0 0.0
        %450 = vmatprep.subr.mxu0 0.0
        %451 = vmatpush1.msra.mxu0 0.0
        %452 = vmatprep.subr.mxu0 0.0
        %453 = vmatpush1.msra.mxu0 0.0
        %454 = vmatprep.subr.mxu0 0.0
        %455 = vmatpush1.msra.mxu0 0.0
        %456 = vmatprep.subr.mxu0 0.0
        %457 = vmatpush1.msra.mxu0 0.0
        %458 = vmatprep.subr.mxu0 0.0
        %459 = vmatpush1.msra.mxu0 0.0
        %460 = vmatprep.subr.mxu0 0.0
        %461 = vmatpush1.msra.mxu0 0.0
        %462 = vmatprep.subr.mxu0 0.0
        %463 = vmatpush1.msra.mxu0 0.0
        %464 = vmatprep.subr.mxu0 0.0
        %465 = vmatpush1.msra.mxu0 0.0
        %466 = vmatprep.subr.mxu0 0.0
        %467 = vmatpush1.msra.mxu0 0.0
        %468 = vmatprep.subr.mxu0 0.0
        %469 = vmatpush1.msra.mxu0 0.0
        %470 = vmatprep.mubr.f32.mxu0 0.0
        %v471 = vand.u32 %v270, 4294901760
        %472 = vmatmul.mubr.f32.gmra.mrb[0].mxu0 %v471
        %v473 = vpop.f32.mrb[0].mxu0
        %v474 = vadd.f32 %v358, %v473
        %v475 = vpop.f32.mrb[0].mxu0
        %476 = vmatprep.mubr.f32.mxu0 0.0
        %v477 = vand.u32 %v273, 4294901760
        %478 = vmatmul.mubr.f32.gmra.mrb[0].mxu0 %v477
        %v479 = vpop.f32.mrb[0].mxu0
        %v480 = vadd.f32 %v368, %v479
        %v481 = vpop.f32.mrb[0].mxu0
        %482 = vdwg.mxu0
        %483 = vmatprep.subr.mxu0 0.0
        %v484 = vand.u32 %v256, 4294901760
        %v485 = vsub.f32 %v256, %v484
        %486 = vmatpush1.msra.mxu0 %v485
        %487 = vmatprep.subr.mxu0 0.0
        %v488 = vand.u32 %v257, 4294901760
        %v489 = vsub.f32 %v257, %v488
        %490 = vmatpush1.msra.mxu0 %v489
        %491 = vmatprep.subr.mxu0 0.0
        %v492 = vand.u32 %v258, 4294901760
        %v493 = vsub.f32 %v258, %v492
        %494 = vmatpush1.msra.mxu0 %v493
        %495 = vmatprep.subr.mxu0 0.0
        %v496 = vand.u32 %v259, 4294901760
        %v497 = vsub.f32 %v259, %v496
        %498 = vmatpush1.msra.mxu0 %v497
        %499 = vmatprep.subr.mxu0 0.0
        %v500 = vand.u32 %v260, 4294901760
        %v501 = vsub.f32 %v260, %v500
        %502 = vmatpush1.msra.mxu0 %v501
        %503 = vmatprep.subr.mxu0 0.0
        %v504 = vand.u32 %v261, 4294901760
        %v505 = vsub.f32 %v261, %v504
        %506 = vmatpush1.msra.mxu0 %v505
        %507 = vmatprep.subr.mxu0 0.0
        %v508 = vand.u32 %v277, 4294901760
        %v509 = vsub.f32 %v277, %v508
        %510 = vmatpush1.msra.mxu0 %v509
        %511 = vmatprep.subr.mxu0 0.0
        %512 = vmatpush1.msra.mxu0 0.0
        %513 = vmatprep.subr.mxu0 0.0
        %514 = vmatpush1.msra.mxu0 0.0
        %515 = vmatprep.subr.mxu0 0.0
        %516 = vmatpush1.msra.mxu0 0.0
        %517 = vmatprep.subr.mxu0 0.0
        %518 = vmatpush1.msra.mxu0 0.0
        %519 = vmatprep.subr.mxu0 0.0
        %520 = vmatpush1.msra.mxu0 0.0
        %521 = vmatprep.subr.mxu0 0.0
        %522 = vmatpush1.msra.mxu0 0.0
        %523 = vmatprep.subr.mxu0 0.0
        %524 = vmatpush1.msra.mxu0 0.0
        %525 = vmatprep.subr.mxu0 0.0
        %526 = vmatpush1.msra.mxu0 0.0
        %527 = vmatprep.subr.mxu0 0.0
        %528 = vmatpush1.msra.mxu0 0.0
        %529 = vmatprep.subr.mxu0 0.0
        %530 = vmatpush1.msra.mxu0 0.0
        %531 = vmatprep.subr.mxu0 0.0
        %532 = vmatpush1.msra.mxu0 0.0
        %533 = vmatprep.subr.mxu0 0.0
        %534 = vmatpush1.msra.mxu0 0.0
        %535 = vmatprep.subr.mxu0 0.0
        %536 = vmatpush1.msra.mxu0 0.0
        %537 = vmatprep.subr.mxu0 0.0
        %538 = vmatpush1.msra.mxu0 0.0
        %539 = vmatprep.subr.mxu0 0.0
        %540 = vmatpush1.msra.mxu0 0.0
        %541 = vmatprep.subr.mxu0 0.0
        %542 = vmatpush1.msra.mxu0 0.0
        %543 = vmatprep.subr.mxu0 0.0
        %544 = vmatpush1.msra.mxu0 0.0
        %545 = vmatprep.subr.mxu0 0.0
        %546 = vmatpush1.msra.mxu0 0.0
        %547 = vmatprep.subr.mxu0 0.0
        %548 = vmatpush1.msra.mxu0 0.0
        %549 = vmatprep.subr.mxu0 0.0
        %550 = vmatpush1.msra.mxu0 0.0
        %551 = vmatprep.subr.mxu0 0.0
        %552 = vmatpush1.msra.mxu0 0.0
        %553 = vmatprep.subr.mxu0 0.0
        %554 = vmatpush1.msra.mxu0 0.0
        %555 = vmatprep.subr.mxu0 0.0
        %556 = vmatpush1.msra.mxu0 0.0
        %557 = vmatprep.subr.mxu0 0.0
        %558 = vmatpush1.msra.mxu0 0.0
        %559 = vmatprep.subr.mxu0 0.0
        %560 = vmatpush1.msra.mxu0 0.0
        %561 = vmatprep.mubr.f32.mxu0 0.0
        %v562 = vand.u32 %v270, 4294901760
        %v563 = vsub.f32 %v270, %v562
        %564 = vmatmul.mubr.f32.gmra.mrb[0].mxu0 %v563
        %v565 = vpop.f32.mrb[0].mxu0
        %v566 = vadd.f32 %v474, %v565
        %v567 = vpop.f32.mrb[0].mxu0
        %568 = vmatprep.mubr.f32.mxu0 0.0
        %v569 = vand.u32 %v273, 4294901760
        %v570 = vsub.f32 %v273, %v569
        %571 = vmatmul.mubr.f32.gmra.mrb[0].mxu0 %v570
        %v572 = vpop.f32.mrb[0].mxu0
        %v573 = vadd.f32 %v480, %v572
        %v574 = vpop.f32.mrb[0].mxu0
        %575 = vdwg.mxu0
        %576 = vmatprep.subr.mxu0 0.0
        %v577 = vand.u32 %v256, 4294901760
        %578 = vmatpush1.msra.mxu0 %v577
        %579 = vmatprep.subr.mxu0 0.0
        %v580 = vand.u32 %v257, 4294901760
        %581 = vmatpush1.msra.mxu0 %v580
        %582 = vmatprep.subr.mxu0 0.0
        %v583 = vand.u32 %v258, 4294901760
        %584 = vmatpush1.msra.mxu0 %v583
        %585 = vmatprep.subr.mxu0 0.0
        %v586 = vand.u32 %v259, 4294901760
        %587 = vmatpush1.msra.mxu0 %v586
        %588 = vmatprep.subr.mxu0 0.0
        %v589 = vand.u32 %v260, 4294901760
        %590 = vmatpush1.msra.mxu0 %v589
        %591 = vmatprep.subr.mxu0 0.0
        %v592 = vand.u32 %v261, 4294901760
        %593 = vmatpush1.msra.mxu0 %v592
        %594 = vmatprep.subr.mxu0 0.0
        %v595 = vand.u32 %v277, 4294901760
        %596 = vmatpush1.msra.mxu0 %v595
        %597 = vmatprep.subr.mxu0 0.0
        %598 = vmatpush1.msra.mxu0 0.0
        %599 = vmatprep.subr.mxu0 0.0
        %600 = vmatpush1.msra.mxu0 0.0
        %601 = vmatprep.subr.mxu0 0.0
        %602 = vmatpush1.msra.mxu0 0.0
        %603 = vmatprep.subr.mxu0 0.0
        %604 = vmatpush1.msra.mxu0 0.0
        %605 = vmatprep.subr.mxu0 0.0
        %606 = vmatpush1.msra.mxu0 0.0
        %607 = vmatprep.subr.mxu0 0.0
        %608 = vmatpush1.msra.mxu0 0.0
        %609 = vmatprep.subr.mxu0 0.0
        %610 = vmatpush1.msra.mxu0 0.0
        %611 = vmatprep.subr.mxu0 0.0
        %612 = vmatpush1.msra.mxu0 0.0
        %613 = vmatprep.subr.mxu0 0.0
        %614 = vmatpush1.msra.mxu0 0.0
        %615 = vmatprep.subr.mxu0 0.0
        %616 = vmatpush1.msra.mxu0 0.0
        %617 = vmatprep.subr.mxu0 0.0
        %618 = vmatpush1.msra.mxu0 0.0
        %619 = vmatprep.subr.mxu0 0.0
        %620 = vmatpush1.msra.mxu0 0.0
        %621 = vmatprep.subr.mxu0 0.0
        %622 = vmatpush1.msra.mxu0 0.0
        %623 = vmatprep.subr.mxu0 0.0
        %624 = vmatpush1.msra.mxu0 0.0
        %625 = vmatprep.subr.mxu0 0.0
        %626 = vmatpush1.msra.mxu0 0.0
        %627 = vmatprep.subr.mxu0 0.0
        %628 = vmatpush1.msra.mxu0 0.0
        %629 = vmatprep.subr.mxu0 0.0
        %630 = vmatpush1.msra.mxu0 0.0
        %631 = vmatprep.subr.mxu0 0.0
        %632 = vmatpush1.msra.mxu0 0.0
        %633 = vmatprep.subr.mxu0 0.0
        %634 = vmatpush1.msra.mxu0 0.0
        %635 = vmatprep.subr.mxu0 0.0
        %636 = vmatpush1.msra.mxu0 0.0
        %637 = vmatprep.subr.mxu0 0.0
        %638 = vmatpush1.msra.mxu0 0.0
        %639 = vmatprep.subr.mxu0 0.0
        %640 = vmatpush1.msra.mxu0 0.0
        %641 = vmatprep.subr.mxu0 0.0
        %642 = vmatpush1.msra.mxu0 0.0
        %643 = vmatprep.subr.mxu0 0.0
        %644 = vmatpush1.msra.mxu0 0.0
        %645 = vmatprep.subr.mxu0 0.0
        %646 = vmatpush1.msra.mxu0 0.0
        %647 = vmatprep.mubr.f32.mxu0 0.0
        %v648 = vand.u32 %v270, 4294901760
        %v649 = vsub.f32 %v270, %v648
        %v650 = vand.u32 %v649, 4294901760
        %651 = vmatmul.mubr.f32.gmra.mrb[0].mxu0 %v650
        %v652 = vpop.f32.mrb[0].mxu0
        %v653 = vadd.f32 %v566, %v652
        %v654 = vpop.f32.mrb[0].mxu0
        %655 = vmatprep.mubr.f32.mxu0 0.0
        %v656 = vand.u32 %v273, 4294901760
        %v657 = vsub.f32 %v273, %v656
        %v658 = vand.u32 %v657, 4294901760
        %659 = vmatmul.mubr.f32.gmra.mrb[0].mxu0 %v658
        %v660 = vpop.f32.mrb[0].mxu0
        %v661 = vadd.f32 %v573, %v660
        %v662 = vpop.f32.mrb[0].mxu0
        %663 = vdwg.mxu0
        %664 = vmatprep.subr.mxu0 0.0
        %v665 = vand.u32 %v256, 4294901760
        %v666 = vsub.f32 %v256, %v665
        %v667 = vand.u32 %v666, 4294901760
        %668 = vmatpush1.msra.mxu0 %v667
        %669 = vmatprep.subr.mxu0 0.0
        %v670 = vand.u32 %v257, 4294901760
        %v671 = vsub.f32 %v257, %v670
        %v672 = vand.u32 %v671, 4294901760
        %673 = vmatpush1.msra.mxu0 %v672
        %674 = vmatprep.subr.mxu0 0.0
        %v675 = vand.u32 %v258, 4294901760
        %v676 = vsub.f32 %v258, %v675
        %v677 = vand.u32 %v676, 4294901760
        %678 = vmatpush1.msra.mxu0 %v677
        %679 = vmatprep.subr.mxu0 0.0
        %v680 = vand.u32 %v259, 4294901760
        %v681 = vsub.f32 %v259, %v680
        %v682 = vand.u32 %v681, 4294901760
        %683 = vmatpush1.msra.mxu0 %v682
        %684 = vmatprep.subr.mxu0 0.0
        %v685 = vand.u32 %v260, 4294901760
        %v686 = vsub.f32 %v260, %v685
        %v687 = vand.u32 %v686, 4294901760
        %688 = vmatpush1.msra.mxu0 %v687
        %689 = vmatprep.subr.mxu0 0.0
        %v690 = vand.u32 %v261, 4294901760
        %v691 = vsub.f32 %v261, %v690
        %v692 = vand.u32 %v691, 4294901760
        %693 = vmatpush1.msra.mxu0 %v692
        %694 = vmatprep.subr.mxu0 0.0
        %v695 = vand.u32 %v277, 4294901760
        %v696 = vsub.f32 %v277, %v695
        %v697 = vand.u32 %v696, 4294901760
        %698 = vmatpush1.msra.mxu0 %v697
        %699 = vmatprep.subr.mxu0 0.0
        %700 = vmatpush1.msra.mxu0 0.0
        %701 = vmatprep.subr.mxu0 0.0
        %702 = vmatpush1.msra.mxu0 0.0
        %703 = vmatprep.subr.mxu0 0.0
        %704 = vmatpush1.msra.mxu0 0.0
        %705 = vmatprep.subr.mxu0 0.0
        %706 = vmatpush1.msra.mxu0 0.0
        %707 = vmatprep.subr.mxu0 0.0
        %708 = vmatpush1.msra.mxu0 0.0
        %709 = vmatprep.subr.mxu0 0.0
        %710 = vmatpush1.msra.mxu0 0.0
        %711 = vmatprep.subr.mxu0 0.0
        %712 = vmatpush1.msra.mxu0 0.0
        %713 = vmatprep.subr.mxu0 0.0
        %714 = vmatpush1.msra.mxu0 0.0
        %715 = vmatprep.subr.mxu0 0.0
        %716 = vmatpush1.msra.mxu0 0.0
        %717 = vmatprep.subr.mxu0 0.0
        %718 = vmatpush1.msra.mxu0 0.0
        %719 = vmatprep.subr.mxu0 0.0
        %720 = vmatpush1.msra.mxu0 0.0
        %721 = vmatprep.subr.mxu0 0.0
        %722 = vmatpush1.msra.mxu0 0.0
        %723 = vmatprep.subr.mxu0 0.0
        %724 = vmatpush1.msra.mxu0 0.0
        %725 = vmatprep.subr.mxu0 0.0
        %726 = vmatpush1.msra.mxu0 0.0
        %727 = vmatprep.subr.mxu0 0.0
        %728 = vmatpush1.msra.mxu0 0.0
        %729 = vmatprep.subr.mxu0 0.0
        %730 = vmatpush1.msra.mxu0 0.0
        %731 = vmatprep.subr.mxu0 0.0
        %732 = vmatpush1.msra.mxu0 0.0
        %733 = vmatprep.subr.mxu0 0.0
        %734 = vmatpush1.msra.mxu0 0.0
        %735 = vmatprep.subr.mxu0 0.0
        %736 = vmatpush1.msra.mxu0 0.0
        %737 = vmatprep.subr.mxu0 0.0
        %738 = vmatpush1.msra.mxu0 0.0
        %739 = vmatprep.subr.mxu0 0.0
        %740 = vmatpush1.msra.mxu0 0.0
        %741 = vmatprep.subr.mxu0 0.0
        %742 = vmatpush1.msra.mxu0 0.0
        %743 = vmatprep.subr.mxu0 0.0
        %744 = vmatpush1.msra.mxu0 0.0
        %745 = vmatprep.subr.mxu0 0.0
        %746 = vmatpush1.msra.mxu0 0.0
        %747 = vmatprep.subr.mxu0 0.0
        %748 = vmatpush1.msra.mxu0 0.0
        %749 = vmatprep.mubr.f32.mxu0 0.0
        %v750 = vand.u32 %v270, 4294901760
        %751 = vmatmul.mubr.f32.gmra.mrb[0].mxu0 %v750
        %v752 = vpop.f32.mrb[0].mxu0
        %v753 = vadd.f32 %v653, %v752
        %v754 = vpop.f32.mrb[0].mxu0
        %755 = vmatprep.mubr.f32.mxu0 0.0
        %v756 = vand.u32 %v273, 4294901760
        %757 = vmatmul.mubr.f32.gmra.mrb[0].mxu0 %v756
        %v758 = vpop.f32.mrb[0].mxu0
        %v759 = vadd.f32 %v661, %v758
        %v760 = vpop.f32.mrb[0].mxu0
        %761 = vdwg.mxu0
        %762 = vmatprep.subr.mxu0 0.0
        %v763 = vand.u32 %v256, 4294901760
        %764 = vmatpush1.msra.mxu0 %v763
        %765 = vmatprep.subr.mxu0 0.0
        %v766 = vand.u32 %v257, 4294901760
        %767 = vmatpush1.msra.mxu0 %v766
        %768 = vmatprep.subr.mxu0 0.0
        %v769 = vand.u32 %v258, 4294901760
        %770 = vmatpush1.msra.mxu0 %v769
        %771 = vmatprep.subr.mxu0 0.0
        %v772 = vand.u32 %v259, 4294901760
        %773 = vmatpush1.msra.mxu0 %v772
        %774 = vmatprep.subr.mxu0 0.0
        %v775 = vand.u32 %v260, 4294901760
        %776 = vmatpush1.msra.mxu0 %v775
        %777 = vmatprep.subr.mxu0 0.0
        %v778 = vand.u32 %v261, 4294901760
        %779 = vmatpush1.msra.mxu0 %v778
        %780 = vmatprep.subr.mxu0 0.0
        %v781 = vand.u32 %v277, 4294901760
        %782 = vmatpush1.msra.mxu0 %v781
        %783 = vmatprep.subr.mxu0 0.0
        %784 = vmatpush1.msra.mxu0 0.0
        %785 = vmatprep.subr.mxu0 0.0
        %786 = vmatpush1.msra.mxu0 0.0
        %787 = vmatprep.subr.mxu0 0.0
        %788 = vmatpush1.msra.mxu0 0.0
        %789 = vmatprep.subr.mxu0 0.0
        %790 = vmatpush1.msra.mxu0 0.0
        %791 = vmatprep.subr.mxu0 0.0
        %792 = vmatpush1.msra.mxu0 0.0
        %793 = vmatprep.subr.mxu0 0.0
        %794 = vmatpush1.msra.mxu0 0.0
        %795 = vmatprep.subr.mxu0 0.0
        %796 = vmatpush1.msra.mxu0 0.0
        %797 = vmatprep.subr.mxu0 0.0
        %798 = vmatpush1.msra.mxu0 0.0
        %799 = vmatprep.subr.mxu0 0.0
        %800 = vmatpush1.msra.mxu0 0.0
        %801 = vmatprep.subr.mxu0 0.0
        %802 = vmatpush1.msra.mxu0 0.0
        %803 = vmatprep.subr.mxu0 0.0
        %804 = vmatpush1.msra.mxu0 0.0
        %805 = vmatprep.subr.mxu0 0.0
        %806 = vmatpush1.msra.mxu0 0.0
        %807 = vmatprep.subr.mxu0 0.0
        %808 = vmatpush1.msra.mxu0 0.0
        %809 = vmatprep.subr.mxu0 0.0
        %810 = vmatpush1.msra.mxu0 0.0
        %811 = vmatprep.subr.mxu0 0.0
        %812 = vmatpush1.msra.mxu0 0.0
        %813 = vmatprep.subr.mxu0 0.0
        %814 = vmatpush1.msra.mxu0 0.0
        %815 = vmatprep.subr.mxu0 0.0
        %816 = vmatpush1.msra.mxu0 0.0
        %817 = vmatprep.subr.mxu0 0.0
        %818 = vmatpush1.msra.mxu0 0.0
        %819 = vmatprep.subr.mxu0 0.0
        %820 = vmatpush1.msra.mxu0 0.0
        %821 = vmatprep.subr.mxu0 0.0
        %822 = vmatpush1.msra.mxu0 0.0
        %823 = vmatprep.subr.mxu0 0.0
        %824 = vmatpush1.msra.mxu0 0.0
        %825 = vmatprep.subr.mxu0 0.0
        %826 = vmatpush1.msra.mxu0 0.0
        %827 = vmatprep.subr.mxu0 0.0
        %828 = vmatpush1.msra.mxu0 0.0
        %829 = vmatprep.subr.mxu0 0.0
        %830 = vmatpush1.msra.mxu0 0.0
        %831 = vmatprep.subr.mxu0 0.0
        %832 = vmatpush1.msra.mxu0 0.0
        %833 = vmatprep.mubr.f32.mxu0 0.0
        %v834 = vand.u32 %v270, 4294901760
        %835 = vmatmul.mubr.f32.gmra.mrb[0].mxu0 %v834
        %v836 = vpop.f32.mrb[0].mxu0
        %v837 = vadd.f32 %v753, %v836
        %v838 = vpop.f32.mrb[0].mxu0
        %839 = vmatprep.mubr.f32.mxu0 0.0
        %v840 = vand.u32 %v273, 4294901760
        %841 = vmatmul.mubr.f32.gmra.mrb[0].mxu0 %v840
        %v842 = vpop.f32.mrb[0].mxu0
        %v843 = vadd.f32 %v759, %v842
        %v844 = vpop.f32.mrb[0].mxu0
        %845 = vdwg.mxu0
        %v846 = vld [vmem:[#allocation6 + $0x20] sm:$0xff]
        %v847 = vld [vmem:[#allocation6 + $0x28] sm:$0xff]
        %v848 = vld [vmem:[#allocation6 + $0x30] sm:$0xff]
        %v849 = vld [vmem:[#allocation6 + $0x38] sm:$0xff]
        %vm850 = vcmask 261120
        %v852 = vsel %vm850, 0.0, 0
        %854 = vmatprep.subr.mxu0 0.0
        %v855 = vand.u32 %v846, 4294901760
        %856 = vmatpush1.msra.mxu0 %v855
        %857 = vmatprep.subr.mxu0 0.0
        %v858 = vand.u32 %v847, 4294901760
        %859 = vmatpush1.msra.mxu0 %v858
        %860 = vmatprep.subr.mxu0 0.0
        %v861 = vand.u32 %v848, 4294901760
        %862 = vmatpush1.msra.mxu0 %v861
        %863 = vmatprep.subr.mxu0 0.0
        %v864 = vand.u32 %v849, 4294901760
        %865 = vmatpush1.msra.mxu0 %v864
        %866 = vmatprep.subr.mxu0 0.0
        %867 = vmatpush1.msra.mxu0 0.0
        %868 = vmatprep.subr.mxu0 0.0
        %869 = vmatpush1.msra.mxu0 0.0
        %870 = vmatprep.subr.mxu0 0.0
        %871 = vmatpush1.msra.mxu0 0.0
        %872 = vmatprep.subr.mxu0 0.0
        %873 = vmatpush1.msra.mxu0 0.0
        %874 = vmatprep.subr.mxu0 0.0
        %875 = vmatpush1.msra.mxu0 0.0
        %876 = vmatprep.subr.mxu0 0.0
        %877 = vmatpush1.msra.mxu0 0.0
        %878 = vmatprep.subr.mxu0 0.0
        %879 = vmatpush1.msra.mxu0 0.0
        %880 = vmatprep.subr.mxu0 0.0
        %881 = vmatpush1.msra.mxu0 0.0
        %882 = vmatprep.subr.mxu0 0.0
        %883 = vmatpush1.msra.mxu0 0.0
        %884 = vmatprep.subr.mxu0 0.0
        %885 = vmatpush1.msra.mxu0 0.0
        %886 = vmatprep.subr.mxu0 0.0
        %887 = vmatpush1.msra.mxu0 0.0
        %888 = vmatprep.subr.mxu0 0.0
        %889 = vmatpush1.msra.mxu0 0.0
        %890 = vmatprep.subr.mxu0 0.0
        %891 = vmatpush1.msra.mxu0 0.0
        %892 = vmatprep.subr.mxu0 0.0
        %893 = vmatpush1.msra.mxu0 0.0
        %894 = vmatprep.subr.mxu0 0.0
        %895 = vmatpush1.msra.mxu0 0.0
        %896 = vmatprep.subr.mxu0 0.0
        %897 = vmatpush1.msra.mxu0 0.0
        %898 = vmatprep.subr.mxu0 0.0
        %899 = vmatpush1.msra.mxu0 0.0
        %900 = vmatprep.subr.mxu0 0.0
        %901 = vmatpush1.msra.mxu0 0.0
        %902 = vmatprep.subr.mxu0 0.0
        %903 = vmatpush1.msra.mxu0 0.0
        %904 = vmatprep.subr.mxu0 0.0
        %905 = vmatpush1.msra.mxu0 0.0
        %906 = vmatprep.subr.mxu0 0.0
        %907 = vmatpush1.msra.mxu0 0.0
        %908 = vmatprep.subr.mxu0 0.0
        %909 = vmatpush1.msra.mxu0 0.0
        %910 = vmatprep.subr.mxu0 0.0
        %911 = vmatpush1.msra.mxu0 0.0
        %912 = vmatprep.subr.mxu0 0.0
        %913 = vmatpush1.msra.mxu0 0.0
        %914 = vmatprep.subr.mxu0 0.0
        %915 = vmatpush1.msra.mxu0 0.0
        %916 = vmatprep.subr.mxu0 0.0
        %917 = vmatpush1.msra.mxu0 0.0
        %918 = vmatprep.subr.mxu0 0.0
        %919 = vmatpush1.msra.mxu0 0.0
        %920 = vmatprep.subr.mxu0 0.0
        %921 = vmatpush1.msra.mxu0 0.0
        %922 = vmatprep.mubr.f32.mxu0 0.0
        %v923 = vand.u32 %v852, 4294901760
        %v924 = vsub.f32 %v852, %v923
        %v925 = vand.u32 %v924, 4294901760
        %v926 = vsub.f32 %v924, %v925
        %v927 = vand.u32 %v926, 4294901760
        %928 = vmatmul.mubr.f32.gmra.mrb[0].mxu0 %v927
        %v929 = vpop.f32.mrb[0].mxu0
        %v930 = vadd.f32 0.0, %v929
        %v931 = vpop.f32.mrb[0].mxu0
        %932 = vdwg.mxu0
        %933 = vmatprep.subr.mxu0 0.0
        %v934 = vand.u32 %v846, 4294901760
        %v935 = vsub.f32 %v846, %v934
        %v936 = vand.u32 %v935, 4294901760
        %v937 = vsub.f32 %v935, %v936
        %v938 = vand.u32 %v937, 4294901760
        %939 = vmatpush1.msra.mxu0 %v938
        %940 = vmatprep.subr.mxu0 0.0
        %v941 = vand.u32 %v847, 4294901760
        %v942 = vsub.f32 %v847, %v941
        %v943 = vand.u32 %v942, 4294901760
        %v944 = vsub.f32 %v942, %v943
        %v945 = vand.u32 %v944, 4294901760
        %946 = vmatpush1.msra.mxu0 %v945
        %947 = vmatprep.subr.mxu0 0.0
        %v948 = vand.u32 %v848, 4294901760
        %v949 = vsub.f32 %v848, %v948
        %v950 = vand.u32 %v949, 4294901760
        %v951 = vsub.f32 %v949, %v950
        %v952 = vand.u32 %v951, 4294901760
        %953 = vmatpush1.msra.mxu0 %v952
        %954 = vmatprep.subr.mxu0 0.0
        %v955 = vand.u32 %v849, 4294901760
        %v956 = vsub.f32 %v849, %v955
        %v957 = vand.u32 %v956, 4294901760
        %v958 = vsub.f32 %v956, %v957
        %v959 = vand.u32 %v958, 4294901760
        %960 = vmatpush1.msra.mxu0 %v959
        %961 = vmatprep.subr.mxu0 0.0
        %962 = vmatpush1.msra.mxu0 0.0
        %963 = vmatprep.subr.mxu0 0.0
        %964 = vmatpush1.msra.mxu0 0.0
        %965 = vmatprep.subr.mxu0 0.0
        %966 = vmatpush1.msra.mxu0 0.0
        %967 = vmatprep.subr.mxu0 0.0
        %968 = vmatpush1.msra.mxu0 0.0
        %969 = vmatprep.subr.mxu0 0.0
        %970 = vmatpush1.msra.mxu0 0.0
        %971 = vmatprep.subr.mxu0 0.0
        %972 = vmatpush1.msra.mxu0 0.0
        %973 = vmatprep.subr.mxu0 0.0
        %974 = vmatpush1.msra.mxu0 0.0
        %975 = vmatprep.subr.mxu0 0.0
        %976 = vmatpush1.msra.mxu0 0.0
        %977 = vmatprep.subr.mxu0 0.0
        %978 = vmatpush1.msra.mxu0 0.0
        %979 = vmatprep.subr.mxu0 0.0
        %980 = vmatpush1.msra.mxu0 0.0
        %981 = vmatprep.subr.mxu0 0.0
        %982 = vmatpush1.msra.mxu0 0.0
        %983 = vmatprep.subr.mxu0 0.0
        %984 = vmatpush1.msra.mxu0 0.0
        %985 = vmatprep.subr.mxu0 0.0
        %986 = vmatpush1.msra.mxu0 0.0
        %987 = vmatprep.subr.mxu0 0.0
        %988 = vmatpush1.msra.mxu0 0.0
        %989 = vmatprep.subr.mxu0 0.0
        %990 = vmatpush1.msra.mxu0 0.0
        %991 = vmatprep.subr.mxu0 0.0
        %992 = vmatpush1.msra.mxu0 0.0
        %993 = vmatprep.subr.mxu0 0.0
        %994 = vmatpush1.msra.mxu0 0.0
        %995 = vmatprep.subr.mxu0 0.0
        %996 = vmatpush1.msra.mxu0 0.0
        %997 = vmatprep.subr.mxu0 0.0
        %998 = vmatpush1.msra.mxu0 0.0
        %999 = vmatprep.subr.mxu0 0.0
        %1000 = vmatpush1.msra.mxu0 0.0
        %1001 = vmatprep.subr.mxu0 0.0
        %1002 = vmatpush1.msra.mxu0 0.0
        %1003 = vmatprep.subr.mxu0 0.0
        %1004 = vmatpush1.msra.mxu0 0.0
        %1005 = vmatprep.subr.mxu0 0.0
        %1006 = vmatpush1.msra.mxu0 0.0
        %1007 = vmatprep.subr.mxu0 0.0
        %1008 = vmatpush1.msra.mxu0 0.0
        %1009 = vmatprep.subr.mxu0 0.0
        %1010 = vmatpush1.msra.mxu0 0.0
        %1011 = vmatprep.subr.mxu0 0.0
        %1012 = vmatpush1.msra.mxu0 0.0
        %1013 = vmatprep.subr.mxu0 0.0
        %1014 = vmatpush1.msra.mxu0 0.0
        %1015 = vmatprep.subr.mxu0 0.0
        %1016 = vmatpush1.msra.mxu0 0.0
        %1017 = vmatprep.mubr.f32.mxu0 0.0
        %v1018 = vand.u32 %v852, 4294901760
        %1019 = vmatmul.mubr.f32.gmra.mrb[0].mxu0 %v1018
        %v1020 = vpop.f32.mrb[0].mxu0
        %v1021 = vadd.f32 %v930, %v1020
        %v1022 = vpop.f32.mrb[0].mxu0
        %1023 = vdwg.mxu0
        %1024 = vmatprep.subr.mxu0 0.0
        %v1025 = vand.u32 %v846, 4294901760
        %v1026 = vsub.f32 %v846, %v1025
        %1027 = vmatpush1.msra.mxu0 %v1026
        %1028 = vmatprep.subr.mxu0 0.0
        %v1029 = vand.u32 %v847, 4294901760
        %v1030 = vsub.f32 %v847, %v1029
        %1031 = vmatpush1.msra.mxu0 %v1030
        %1032 = vmatprep.subr.mxu0 0.0
        %v1033 = vand.u32 %v848, 4294901760
        %v1034 = vsub.f32 %v848, %v1033
        %1035 = vmatpush1.msra.mxu0 %v1034
        %1036 = vmatprep.subr.mxu0 0.0
        %v1037 = vand.u32 %v849, 4294901760
        %v1038 = vsub.f32 %v849, %v1037
        %1039 = vmatpush1.msra.mxu0 %v1038
        %1040 = vmatprep.subr.mxu0 0.0
        %1041 = vmatpush1.msra.mxu0 0.0
        %1042 = vmatprep.subr.mxu0 0.0
        %1043 = vmatpush1.msra.mxu0 0.0
        %1044 = vmatprep.subr.mxu0 0.0
        %1045 = vmatpush1.msra.mxu0 0.0
        %1046 = vmatprep.subr.mxu0 0.0
        %1047 = vmatpush1.msra.mxu0 0.0
        %1048 = vmatprep.subr.mxu0 0.0
        %1049 = vmatpush1.msra.mxu0 0.0
        %1050 = vmatprep.subr.mxu0 0.0
        %1051 = vmatpush1.msra.mxu0 0.0
        %1052 = vmatprep.subr.mxu0 0.0
        %1053 = vmatpush1.msra.mxu0 0.0
        %1054 = vmatprep.subr.mxu0 0.0
        %1055 = vmatpush1.msra.mxu0 0.0
        %1056 = vmatprep.subr.mxu0 0.0
        %1057 = vmatpush1.msra.mxu0 0.0
        %1058 = vmatprep.subr.mxu0 0.0
        %1059 = vmatpush1.msra.mxu0 0.0
        %1060 = vmatprep.subr.mxu0 0.0
        %1061 = vmatpush1.msra.mxu0 0.0
        %1062 = vmatprep.subr.mxu0 0.0
        %1063 = vmatpush1.msra.mxu0 0.0
        %1064 = vmatprep.subr.mxu0 0.0
        %1065 = vmatpush1.msra.mxu0 0.0
        %1066 = vmatprep.subr.mxu0 0.0
        %1067 = vmatpush1.msra.mxu0 0.0
        %1068 = vmatprep.subr.mxu0 0.0
        %1069 = vmatpush1.msra.mxu0 0.0
        %1070 = vmatprep.subr.mxu0 0.0
        %1071 = vmatpush1.msra.mxu0 0.0
        %1072 = vmatprep.subr.mxu0 0.0
        %1073 = vmatpush1.msra.mxu0 0.0
        %1074 = vmatprep.subr.mxu0 0.0
        %1075 = vmatpush1.msra.mxu0 0.0
        %1076 = vmatprep.subr.mxu0 0.0
        %1077 = vmatpush1.msra.mxu0 0.0
        %1078 = vmatprep.subr.mxu0 0.0
        %1079 = vmatpush1.msra.mxu0 0.0
        %1080 = vmatprep.subr.mxu0 0.0
        %1081 = vmatpush1.msra.mxu0 0.0
        %1082 = vmatprep.subr.mxu0 0.0
        %1083 = vmatpush1.msra.mxu0 0.0
        %1084 = vmatprep.subr.mxu0 0.0
        %1085 = vmatpush1.msra.mxu0 0.0
        %1086 = vmatprep.subr.mxu0 0.0
        %1087 = vmatpush1.msra.mxu0 0.0
        %1088 = vmatprep.subr.mxu0 0.0
        %1089 = vmatpush1.msra.mxu0 0.0
        %1090 = vmatprep.subr.mxu0 0.0
        %1091 = vmatpush1.msra.mxu0 0.0
        %1092 = vmatprep.subr.mxu0 0.0
        %1093 = vmatpush1.msra.mxu0 0.0
        %1094 = vmatprep.subr.mxu0 0.0
        %1095 = vmatpush1.msra.mxu0 0.0
        %1096 = vmatprep.mubr.f32.mxu0 0.0
        %v1097 = vand.u32 %v852, 4294901760
        %v1098 = vsub.f32 %v852, %v1097
        %1099 = vmatmul.mubr.f32.gmra.mrb[0].mxu0 %v1098
        %v1100 = vpop.f32.mrb[0].mxu0
        %v1101 = vadd.f32 %v1021, %v1100
        %v1102 = vpop.f32.mrb[0].mxu0
        %1103 = vdwg.mxu0
        %1104 = vmatprep.subr.mxu0 0.0
        %v1105 = vand.u32 %v846, 4294901760
        %1106 = vmatpush1.msra.mxu0 %v1105
        %1107 = vmatprep.subr.mxu0 0.0
        %v1108 = vand.u32 %v847, 4294901760
        %1109 = vmatpush1.msra.mxu0 %v1108
        %1110 = vmatprep.subr.mxu0 0.0
        %v1111 = vand.u32 %v848, 4294901760
        %1112 = vmatpush1.msra.mxu0 %v1111
        %1113 = vmatprep.subr.mxu0 0.0
        %v1114 = vand.u32 %v849, 4294901760
        %1115 = vmatpush1.msra.mxu0 %v1114
        %1116 = vmatprep.subr.mxu0 0.0
        %1117 = vmatpush1.msra.mxu0 0.0
        %1118 = vmatprep.subr.mxu0 0.0
        %1119 = vmatpush1.msra.mxu0 0.0
        %1120 = vmatprep.subr.mxu0 0.0
        %1121 = vmatpush1.msra.mxu0 0.0
        %1122 = vmatprep.subr.mxu0 0.0
        %1123 = vmatpush1.msra.mxu0 0.0
        %1124 = vmatprep.subr.mxu0 0.0
        %1125 = vmatpush1.msra.mxu0 0.0
        %1126 = vmatprep.subr.mxu0 0.0
        %1127 = vmatpush1.msra.mxu0 0.0
        %1128 = vmatprep.subr.mxu0 0.0
        %1129 = vmatpush1.msra.mxu0 0.0
        %1130 = vmatprep.subr.mxu0 0.0
        %1131 = vmatpush1.msra.mxu0 0.0
        %1132 = vmatprep.subr.mxu0 0.0
        %1133 = vmatpush1.msra.mxu0 0.0
        %1134 = vmatprep.subr.mxu0 0.0
        %1135 = vmatpush1.msra.mxu0 0.0
        %1136 = vmatprep.subr.mxu0 0.0
        %1137 = vmatpush1.msra.mxu0 0.0
        %1138 = vmatprep.subr.mxu0 0.0
        %1139 = vmatpush1.msra.mxu0 0.0
        %1140 = vmatprep.subr.mxu0 0.0
        %1141 = vmatpush1.msra.mxu0 0.0
        %1142 = vmatprep.subr.mxu0 0.0
        %1143 = vmatpush1.msra.mxu0 0.0
        %1144 = vmatprep.subr.mxu0 0.0
        %1145 = vmatpush1.msra.mxu0 0.0
        %1146 = vmatprep.subr.mxu0 0.0
        %1147 = vmatpush1.msra.mxu0 0.0
        %1148 = vmatprep.subr.mxu0 0.0
        %1149 = vmatpush1.msra.mxu0 0.0
        %1150 = vmatprep.subr.mxu0 0.0
        %1151 = vmatpush1.msra.mxu0 0.0
        %1152 = vmatprep.subr.mxu0 0.0
        %1153 = vmatpush1.msra.mxu0 0.0
        %1154 = vmatprep.subr.mxu0 0.0
        %1155 = vmatpush1.msra.mxu0 0.0
        %1156 = vmatprep.subr.mxu0 0.0
        %1157 = vmatpush1.msra.mxu0 0.0
        %1158 = vmatprep.subr.mxu0 0.0
        %1159 = vmatpush1.msra.mxu0 0.0
        %1160 = vmatprep.subr.mxu0 0.0
        %1161 = vmatpush1.msra.mxu0 0.0
        %1162 = vmatprep.subr.mxu0 0.0
        %1163 = vmatpush1.msra.mxu0 0.0
        %1164 = vmatprep.subr.mxu0 0.0
        %1165 = vmatpush1.msra.mxu0 0.0
        %1166 = vmatprep.subr.mxu0 0.0
        %1167 = vmatpush1.msra.mxu0 0.0
        %1168 = vmatprep.subr.mxu0 0.0
        %1169 = vmatpush1.msra.mxu0 0.0
        %1170 = vmatprep.subr.mxu0 0.0
        %1171 = vmatpush1.msra.mxu0 0.0
        %1172 = vmatprep.mubr.f32.mxu0 0.0
        %v1173 = vand.u32 %v852, 4294901760
        %v1174 = vsub.f32 %v852, %v1173
        %v1175 = vand.u32 %v1174, 4294901760
        %1176 = vmatmul.mubr.f32.gmra.mrb[0].mxu0 %v1175
        %v1177 = vpop.f32.mrb[0].mxu0
        %v1178 = vadd.f32 %v1101, %v1177
        %v1179 = vpop.f32.mrb[0].mxu0
        %1180 = vdwg.mxu0
        %1181 = vmatprep.subr.mxu0 0.0
        %v1182 = vand.u32 %v846, 4294901760
        %v1183 = vsub.f32 %v846, %v1182
        %v1184 = vand.u32 %v1183, 4294901760
        %1185 = vmatpush1.msra.mxu0 %v1184
        %1186 = vmatprep.subr.mxu0 0.0
        %v1187 = vand.u32 %v847, 4294901760
        %v1188 = vsub.f32 %v847, %v1187
        %v1189 = vand.u32 %v1188, 4294901760
        %1190 = vmatpush1.msra.mxu0 %v1189
        %1191 = vmatprep.subr.mxu0 0.0
        %v1192 = vand.u32 %v848, 4294901760
        %v1193 = vsub.f32 %v848, %v1192
        %v1194 = vand.u32 %v1193, 4294901760
        %1195 = vmatpush1.msra.mxu0 %v1194
        %1196 = vmatprep.subr.mxu0 0.0
        %v1197 = vand.u32 %v849, 4294901760
        %v1198 = vsub.f32 %v849, %v1197
        %v1199 = vand.u32 %v1198, 4294901760
        %1200 = vmatpush1.msra.mxu0 %v1199
        %1201 = vmatprep.subr.mxu0 0.0
        %1202 = vmatpush1.msra.mxu0 0.0
        %1203 = vmatprep.subr.mxu0 0.0
        %1204 = vmatpush1.msra.mxu0 0.0
        %1205 = vmatprep.subr.mxu0 0.0
        %1206 = vmatpush1.msra.mxu0 0.0
        %1207 = vmatprep.subr.mxu0 0.0
        %1208 = vmatpush1.msra.mxu0 0.0
        %1209 = vmatprep.subr.mxu0 0.0
        %1210 = vmatpush1.msra.mxu0 0.0
        %1211 = vmatprep.subr.mxu0 0.0
        %1212 = vmatpush1.msra.mxu0 0.0
        %1213 = vmatprep.subr.mxu0 0.0
        %1214 = vmatpush1.msra.mxu0 0.0
        %1215 = vmatprep.subr.mxu0 0.0
        %1216 = vmatpush1.msra.mxu0 0.0
        %1217 = vmatprep.subr.mxu0 0.0
        %1218 = vmatpush1.msra.mxu0 0.0
        %1219 = vmatprep.subr.mxu0 0.0
        %1220 = vmatpush1.msra.mxu0 0.0
        %1221 = vmatprep.subr.mxu0 0.0
        %1222 = vmatpush1.msra.mxu0 0.0
        %1223 = vmatprep.subr.mxu0 0.0
        %1224 = vmatpush1.msra.mxu0 0.0
        %1225 = vmatprep.subr.mxu0 0.0
        %1226 = vmatpush1.msra.mxu0 0.0
        %1227 = vmatprep.subr.mxu0 0.0
        %1228 = vmatpush1.msra.mxu0 0.0
        %1229 = vmatprep.subr.mxu0 0.0
        %1230 = vmatpush1.msra.mxu0 0.0
        %1231 = vmatprep.subr.mxu0 0.0
        %1232 = vmatpush1.msra.mxu0 0.0
        %1233 = vmatprep.subr.mxu0 0.0
        %1234 = vmatpush1.msra.mxu0 0.0
        %1235 = vmatprep.subr.mxu0 0.0
        %1236 = vmatpush1.msra.mxu0 0.0
        %1237 = vmatprep.subr.mxu0 0.0
        %1238 = vmatpush1.msra.mxu0 0.0
        %1239 = vmatprep.subr.mxu0 0.0
        %1240 = vmatpush1.msra.mxu0 0.0
        %1241 = vmatprep.subr.mxu0 0.0
        %1242 = vmatpush1.msra.mxu0 0.0
        %1243 = vmatprep.subr.mxu0 0.0
        %1244 = vmatpush1.msra.mxu0 0.0
        %1245 = vmatprep.subr.mxu0 0.0
        %1246 = vmatpush1.msra.mxu0 0.0
        %1247 = vmatprep.subr.mxu0 0.0
        %1248 = vmatpush1.msra.mxu0 0.0
        %1249 = vmatprep.subr.mxu0 0.0
        %1250 = vmatpush1.msra.mxu0 0.0
        %1251 = vmatprep.subr.mxu0 0.0
        %1252 = vmatpush1.msra.mxu0 0.0
        %1253 = vmatprep.subr.mxu0 0.0
        %1254 = vmatpush1.msra.mxu0 0.0
        %1255 = vmatprep.subr.mxu0 0.0
        %1256 = vmatpush1.msra.mxu0 0.0
        %1257 = vmatprep.mubr.f32.mxu0 0.0
        %v1258 = vand.u32 %v852, 4294901760
        %1259 = vmatmul.mubr.f32.gmra.mrb[0].mxu0 %v1258
        %v1260 = vpop.f32.mrb[0].mxu0
        %v1261 = vadd.f32 %v1178, %v1260
        %v1262 = vpop.f32.mrb[0].mxu0
        %1263 = vdwg.mxu0
        %1264 = vmatprep.subr.mxu0 0.0
        %v1265 = vand.u32 %v846, 4294901760
        %1266 = vmatpush1.msra.mxu0 %v1265
        %1267 = vmatprep.subr.mxu0 0.0
        %v1268 = vand.u32 %v847, 4294901760
        %1269 = vmatpush1.msra.mxu0 %v1268
        %1270 = vmatprep.subr.mxu0 0.0
        %v1271 = vand.u32 %v848, 4294901760
        %1272 = vmatpush1.msra.mxu0 %v1271
        %1273 = vmatprep.subr.mxu0 0.0
        %v1274 = vand.u32 %v849, 4294901760
        %1275 = vmatpush1.msra.mxu0 %v1274
        %1276 = vmatprep.subr.mxu0 0.0
        %1277 = vmatpush1.msra.mxu0 0.0
        %1278 = vmatprep.subr.mxu0 0.0
        %1279 = vmatpush1.msra.mxu0 0.0
        %1280 = vmatprep.subr.mxu0 0.0
        %1281 = vmatpush1.msra.mxu0 0.0
        %1282 = vmatprep.subr.mxu0 0.0
        %1283 = vmatpush1.msra.mxu0 0.0
        %1284 = vmatprep.subr.mxu0 0.0
        %1285 = vmatpush1.msra.mxu0 0.0
        %1286 = vmatprep.subr.mxu0 0.0
        %1287 = vmatpush1.msra.mxu0 0.0
        %1288 = vmatprep.subr.mxu0 0.0
        %1289 = vmatpush1.msra.mxu0 0.0
        %1290 = vmatprep.subr.mxu0 0.0
        %1291 = vmatpush1.msra.mxu0 0.0
        %1292 = vmatprep.subr.mxu0 0.0
        %1293 = vmatpush1.msra.mxu0 0.0
        %1294 = vmatprep.subr.mxu0 0.0
        %1295 = vmatpush1.msra.mxu0 0.0
        %1296 = vmatprep.subr.mxu0 0.0
        %1297 = vmatpush1.msra.mxu0 0.0
        %1298 = vmatprep.subr.mxu0 0.0
        %1299 = vmatpush1.msra.mxu0 0.0
        %1300 = vmatprep.subr.mxu0 0.0
        %1301 = vmatpush1.msra.mxu0 0.0
        %1302 = vmatprep.subr.mxu0 0.0
        %1303 = vmatpush1.msra.mxu0 0.0
        %1304 = vmatprep.subr.mxu0 0.0
        %1305 = vmatpush1.msra.mxu0 0.0
        %1306 = vmatprep.subr.mxu0 0.0
        %1307 = vmatpush1.msra.mxu0 0.0
        %1308 = vmatprep.subr.mxu0 0.0
        %1309 = vmatpush1.msra.mxu0 0.0
        %1310 = vmatprep.subr.mxu0 0.0
        %1311 = vmatpush1.msra.mxu0 0.0
        %1312 = vmatprep.subr.mxu0 0.0
        %1313 = vmatpush1.msra.mxu0 0.0
        %1314 = vmatprep.subr.mxu0 0.0
        %1315 = vmatpush1.msra.mxu0 0.0
        %1316 = vmatprep.subr.mxu0 0.0
        %1317 = vmatpush1.msra.mxu0 0.0
        %1318 = vmatprep.subr.mxu0 0.0
        %1319 = vmatpush1.msra.mxu0 0.0
        %1320 = vmatprep.subr.mxu0 0.0
        %1321 = vmatpush1.msra.mxu0 0.0
        %1322 = vmatprep.subr.mxu0 0.0
        %1323 = vmatpush1.msra.mxu0 0.0
        %1324 = vmatprep.subr.mxu0 0.0
        %1325 = vmatpush1.msra.mxu0 0.0
        %1326 = vmatprep.subr.mxu0 0.0
        %1327 = vmatpush1.msra.mxu0 0.0
        %1328 = vmatprep.subr.mxu0 0.0
        %1329 = vmatpush1.msra.mxu0 0.0
        %1330 = vmatprep.subr.mxu0 0.0
        %1331 = vmatpush1.msra.mxu0 0.0
        %1332 = vmatprep.mubr.f32.mxu0 0.0
        %v1333 = vand.u32 %v852, 4294901760
        %1334 = vmatmul.mubr.f32.gmra.mrb[0].mxu0 %v1333
        %v1335 = vpop.f32.mrb[0].mxu0
        %v1336 = vadd.f32 %v1261, %v1335
        %v1337 = vpop.f32.mrb[0].mxu0
        %1338 = vdwg.mxu0
        %v1339 = vadd.f32 %v837, %v1336
        %v1340 = vtanh.pop %v1339
        %v1341 = vmul.f32 %v1340, 0.5
        %v1342 = vadd.f32 %v1341, 0.5
        %v1343 = vmul.f32 %v1342, 0.0
        %1345 = vrot.lane.b32.xlu0 %v1340, 64
        %v1346 = vpop.permute.xlu0 %1345
        %v1348 = vmul.f32 %v1342, %v1346
        %1350 = vrot.lane.b32.xlu0 %v1348, 32
        %v1351 = vpop.permute.xlu0 %1350
        %v1353 = vadd.f32 %v1343, %v1351
        %v1354 = vtanh.pop %v1353
        %1356 = vrot.lane.b32.xlu0 %v1354, 64
        %v1357 = vpop.permute.xlu0 %1356
        %v1359 = vmul.f32 %v1342, %v1357
        %1361 = vrot.lane.b32.xlu0 %v1359, 32
        %v1362 = vpop.permute.xlu0 %1361
        %1364 = vst.msk [vmem:[#allocation2] sm:$0xff] %vm850, %v1362
        %v1365 = vsel %vm850, %v1362, 0
        %1367 = vmatprep.subr.mxu0 0.0
        %v1368 = vand.u32 %v846, 4294901760
        %1369 = vmatpush1.msra.mxu0 %v1368
        %1370 = vmatprep.subr.mxu0 0.0
        %v1371 = vand.u32 %v847, 4294901760
        %1372 = vmatpush1.msra.mxu0 %v1371
        %1373 = vmatprep.subr.mxu0 0.0
        %v1374 = vand.u32 %v848, 4294901760
        %1375 = vmatpush1.msra.mxu0 %v1374
        %1376 = vmatprep.subr.mxu0 0.0
        %v1377 = vand.u32 %v849, 4294901760
        %1378 = vmatpush1.msra.mxu0 %v1377
        %1379 = vmatprep.subr.mxu0 0.0
        %1380 = vmatpush1.msra.mxu0 0.0
        %1381 = vmatprep.subr.mxu0 0.0
        %1382 = vmatpush1.msra.mxu0 0.0
        %1383 = vmatprep.subr.mxu0 0.0
        %1384 = vmatpush1.msra.mxu0 0.0
        %1385 = vmatprep.subr.mxu0 0.0
        %1386 = vmatpush1.msra.mxu0 0.0
        %1387 = vmatprep.subr.mxu0 0.0
        %1388 = vmatpush1.msra.mxu0 0.0
        %1389 = vmatprep.subr.mxu0 0.0
        %1390 = vmatpush1.msra.mxu0 0.0
        %1391 = vmatprep.subr.mxu0 0.0
        %1392 = vmatpush1.msra.mxu0 0.0
        %1393 = vmatprep.subr.mxu0 0.0
        %1394 = vmatpush1.msra.mxu0 0.0
        %1395 = vmatprep.subr.mxu0 0.0
        %1396 = vmatpush1.msra.mxu0 0.0
        %1397 = vmatprep.subr.mxu0 0.0
        %1398 = vmatpush1.msra.mxu0 0.0
        %1399 = vmatprep.subr.mxu0 0.0
        %1400 = vmatpush1.msra.mxu0 0.0
        %1401 = vmatprep.subr.mxu0 0.0
        %1402 = vmatpush1.msra.mxu0 0.0
        %1403 = vmatprep.subr.mxu0 0.0
        %1404 = vmatpush1.msra.mxu0 0.0
        %1405 = vmatprep.subr.mxu0 0.0
        %1406 = vmatpush1.msra.mxu0 0.0
        %1407 = vmatprep.subr.mxu0 0.0
        %1408 = vmatpush1.msra.mxu0 0.0
        %1409 = vmatprep.subr.mxu0 0.0
        %1410 = vmatpush1.msra.mxu0 0.0
        %1411 = vmatprep.subr.mxu0 0.0
        %1412 = vmatpush1.msra.mxu0 0.0
        %1413 = vmatprep.subr.mxu0 0.0
        %1414 = vmatpush1.msra.mxu0 0.0
        %1415 = vmatprep.subr.mxu0 0.0
        %1416 = vmatpush1.msra.mxu0 0.0
        %1417 = vmatprep.subr.mxu0 0.0
        %1418 = vmatpush1.msra.mxu0 0.0
        %1419 = vmatprep.subr.mxu0 0.0
        %1420 = vmatpush1.msra.mxu0 0.0
        %1421 = vmatprep.subr.mxu0 0.0
        %1422 = vmatpush1.msra.mxu0 0.0
        %1423 = vmatprep.subr.mxu0 0.0
        %1424 = vmatpush1.msra.mxu0 0.0
        %1425 = vmatprep.subr.mxu0 0.0
        %1426 = vmatpush1.msra.mxu0 0.0
        %1427 = vmatprep.subr.mxu0 0.0
        %1428 = vmatpush1.msra.mxu0 0.0
        %1429 = vmatprep.subr.mxu0 0.0
        %1430 = vmatpush1.msra.mxu0 0.0
        %1431 = vmatprep.subr.mxu0 0.0
        %1432 = vmatpush1.msra.mxu0 0.0
        %1433 = vmatprep.subr.mxu0 0.0
        %1434 = vmatpush1.msra.mxu0 0.0
        %1435 = vmatprep.mubr.f32.mxu0 0.0
        %v1436 = vand.u32 %v1365, 4294901760
        %v1437 = vsub.f32 %v1365, %v1436
        %v1438 = vand.u32 %v1437, 4294901760
        %v1439 = vsub.f32 %v1437, %v1438
        %v1440 = vand.u32 %v1439, 4294901760
        %1441 = vmatmul.mubr.f32.gmra.mrb[0].mxu0 %v1440
        %v1442 = vpop.f32.mrb[0].mxu0
        %v1443 = vadd.f32 0.0, %v1442
        %v1444 = vpop.f32.mrb[0].mxu0
        %1445 = vdwg.mxu0
        %1446 = vmatprep.subr.mxu0 0.0
        %v1447 = vand.u32 %v846, 4294901760
        %v1448 = vsub.f32 %v846, %v1447
        %v1449 = vand.u32 %v1448, 4294901760
        %v1450 = vsub.f32 %v1448, %v1449
        %v1451 = vand.u32 %v1450, 4294901760
        %1452 = vmatpush1.msra.mxu0 %v1451
        %1453 = vmatprep.subr.mxu0 0.0
        %v1454 = vand.u32 %v847, 4294901760
        %v1455 = vsub.f32 %v847, %v1454
        %v1456 = vand.u32 %v1455, 4294901760
        %v1457 = vsub.f32 %v1455, %v1456
        %v1458 = vand.u32 %v1457, 4294901760
        %1459 = vmatpush1.msra.mxu0 %v1458
        %1460 = vmatprep.subr.mxu0 0.0
        %v1461 = vand.u32 %v848, 4294901760
        %v1462 = vsub.f32 %v848, %v1461
        %v1463 = vand.u32 %v1462, 4294901760
        %v1464 = vsub.f32 %v1462, %v1463
        %v1465 = vand.u32 %v1464, 4294901760
        %1466 = vmatpush1.msra.mxu0 %v1465
        %1467 = vmatprep.subr.mxu0 0.0
        %v1468 = vand.u32 %v849, 4294901760
        %v1469 = vsub.f32 %v849, %v1468
        %v1470 = vand.u32 %v1469, 4294901760
        %v1471 = vsub.f32 %v1469, %v1470
        %v1472 = vand.u32 %v1471, 4294901760
        %1473 = vmatpush1.msra.mxu0 %v1472
        %1474 = vmatprep.subr.mxu0 0.0
        %1475 = vmatpush1.msra.mxu0 0.0
        %1476 = vmatprep.subr.mxu0 0.0
        %1477 = vmatpush1.msra.mxu0 0.0
        %1478 = vmatprep.subr.mxu0 0.0
        %1479 = vmatpush1.msra.mxu0 0.0
        %1480 = vmatprep.subr.mxu0 0.0
        %1481 = vmatpush1.msra.mxu0 0.0
        %1482 = vmatprep.subr.mxu0 0.0
        %1483 = vmatpush1.msra.mxu0 0.0
        %1484 = vmatprep.subr.mxu0 0.0
        %1485 = vmatpush1.msra.mxu0 0.0
        %1486 = vmatprep.subr.mxu0 0.0
        %1487 = vmatpush1.msra.mxu0 0.0
        %1488 = vmatprep.subr.mxu0 0.0
        %1489 = vmatpush1.msra.mxu0 0.0
        %1490 = vmatprep.subr.mxu0 0.0
        %1491 = vmatpush1.msra.mxu0 0.0
        %1492 = vmatprep.subr.mxu0 0.0
        %1493 = vmatpush1.msra.mxu0 0.0
        %1494 = vmatprep.subr.mxu0 0.0
        %1495 = vmatpush1.msra.mxu0 0.0
        %1496 = vmatprep.subr.mxu0 0.0
        %1497 = vmatpush1.msra.mxu0 0.0
        %1498 = vmatprep.subr.mxu0 0.0
        %1499 = vmatpush1.msra.mxu0 0.0
        %1500 = vmatprep.subr.mxu0 0.0
        %1501 = vmatpush1.msra.mxu0 0.0
        %1502 = vmatprep.subr.mxu0 0.0
        %1503 = vmatpush1.msra.mxu0 0.0
        %1504 = vmatprep.subr.mxu0 0.0
        %1505 = vmatpush1.msra.mxu0 0.0
        %1506 = vmatprep.subr.mxu0 0.0
        %1507 = vmatpush1.msra.mxu0 0.0
        %1508 = vmatprep.subr.mxu0 0.0
        %1509 = vmatpush1.msra.mxu0 0.0
        %1510 = vmatprep.subr.mxu0 0.0
        %1511 = vmatpush1.msra.mxu0 0.0
        %1512 = vmatprep.subr.mxu0 0.0
        %1513 = vmatpush1.msra.mxu0 0.0
        %1514 = vmatprep.subr.mxu0 0.0
        %1515 = vmatpush1.msra.mxu0 0.0
        %1516 = vmatprep.subr.mxu0 0.0
        %1517 = vmatpush1.msra.mxu0 0.0
        %1518 = vmatprep.subr.mxu0 0.0
        %1519 = vmatpush1.msra.mxu0 0.0
        %1520 = vmatprep.subr.mxu0 0.0
        %1521 = vmatpush1.msra.mxu0 0.0
        %1522 = vmatprep.subr.mxu0 0.0
        %1523 = vmatpush1.msra.mxu0 0.0
        %1524 = vmatprep.subr.mxu0 0.0
        %1525 = vmatpush1.msra.mxu0 0.0
        %1526 = vmatprep.subr.mxu0 0.0
        %1527 = vmatpush1.msra.mxu0 0.0
        %1528 = vmatprep.subr.mxu0 0.0
        %1529 = vmatpush1.msra.mxu0 0.0
        %1530 = vmatprep.mubr.f32.mxu0 0.0
        %v1531 = vand.u32 %v1365, 4294901760
        %1532 = vmatmul.mubr.f32.gmra.mrb[0].mxu0 %v1531
        %v1533 = vpop.f32.mrb[0].mxu0
        %v1534 = vadd.f32 %v1443, %v1533
        %v1535 = vpop.f32.mrb[0].mxu0
        %1536 = vdwg.mxu0
        %1537 = vmatprep.subr.mxu0 0.0
        %v1538 = vand.u32 %v846, 4294901760
        %v1539 = vsub.f32 %v846, %v1538
        %1540 = vmatpush1.msra.mxu0 %v1539
        %1541 = vmatprep.subr.mxu0 0.0
        %v1542 = vand.u32 %v847, 4294901760
        %v1543 = vsub.f32 %v847, %v1542
        %1544 = vmatpush1.msra.mxu0 %v1543
        %1545 = vmatprep.subr.mxu0 0.0
        %v1546 = vand.u32 %v848, 4294901760
        %v1547 = vsub.f32 %v848, %v1546
        %1548 = vmatpush1.msra.mxu0 %v1547
        %1549 = vmatprep.subr.mxu0 0.0
        %v1550 = vand.u32 %v849, 4294901760
        %v1551 = vsub.f32 %v849, %v1550
        %1552 = vmatpush1.msra.mxu0 %v1551
        %1553 = vmatprep.subr.mxu0 0.0
        %1554 = vmatpush1.msra.mxu0 0.0
        %1555 = vmatprep.subr.mxu0 0.0
        %1556 = vmatpush1.msra.mxu0 0.0
        %1557 = vmatprep.subr.mxu0 0.0
        %1558 = vmatpush1.msra.mxu0 0.0
        %1559 = vmatprep.subr.mxu0 0.0
        %1560 = vmatpush1.msra.mxu0 0.0
        %1561 = vmatprep.subr.mxu0 0.0
        %1562 = vmatpush1.msra.mxu0 0.0
        %1563 = vmatprep.subr.mxu0 0.0
        %1564 = vmatpush1.msra.mxu0 0.0
        %1565 = vmatprep.subr.mxu0 0.0
        %1566 = vmatpush1.msra.mxu0 0.0
        %1567 = vmatprep.subr.mxu0 0.0
        %1568 = vmatpush1.msra.mxu0 0.0
        %1569 = vmatprep.subr.mxu0 0.0
        %1570 = vmatpush1.msra.mxu0 0.0
        %1571 = vmatprep.subr.mxu0 0.0
        %1572 = vmatpush1.msra.mxu0 0.0
        %1573 = vmatprep.subr.mxu0 0.0
        %1574 = vmatpush1.msra.mxu0 0.0
        %1575 = vmatprep.subr.mxu0 0.0
        %1576 = vmatpush1.msra.mxu0 0.0
        %1577 = vmatprep.subr.mxu0 0.0
        %1578 = vmatpush1.msra.mxu0 0.0
        %1579 = vmatprep.subr.mxu0 0.0
        %1580 = vmatpush1.msra.mxu0 0.0
        %1581 = vmatprep.subr.mxu0 0.0
        %1582 = vmatpush1.msra.mxu0 0.0
        %1583 = vmatprep.subr.mxu0 0.0
        %1584 = vmatpush1.msra.mxu0 0.0
        %1585 = vmatprep.subr.mxu0 0.0
        %1586 = vmatpush1.msra.mxu0 0.0
        %1587 = vmatprep.subr.mxu0 0.0
        %1588 = vmatpush1.msra.mxu0 0.0
        %1589 = vmatprep.subr.mxu0 0.0
        %1590 = vmatpush1.msra.mxu0 0.0
        %1591 = vmatprep.subr.mxu0 0.0
        %1592 = vmatpush1.msra.mxu0 0.0
        %1593 = vmatprep.subr.mxu0 0.0
        %1594 = vmatpush1.msra.mxu0 0.0
        %1595 = vmatprep.subr.mxu0 0.0
        %1596 = vmatpush1.msra.mxu0 0.0
        %1597 = vmatprep.subr.mxu0 0.0
        %1598 = vmatpush1.msra.mxu0 0.0
        %1599 = vmatprep.subr.mxu0 0.0
        %1600 = vmatpush1.msra.mxu0 0.0
        %1601 = vmatprep.subr.mxu0 0.0
        %1602 = vmatpush1.msra.mxu0 0.0
        %1603 = vmatprep.subr.mxu0 0.0
        %1604 = vmatpush1.msra.mxu0 0.0
        %1605 = vmatprep.subr.mxu0 0.0
        %1606 = vmatpush1.msra.mxu0 0.0
        %1607 = vmatprep.subr.mxu0 0.0
        %1608 = vmatpush1.msra.mxu0 0.0
        %1609 = vmatprep.mubr.f32.mxu0 0.0
        %v1610 = vand.u32 %v1365, 4294901760
        %v1611 = vsub.f32 %v1365, %v1610
        %1612 = vmatmul.mubr.f32.gmra.mrb[0].mxu0 %v1611
        %v1613 = vpop.f32.mrb[0].mxu0
        %v1614 = vadd.f32 %v1534, %v1613
        %v1615 = vpop.f32.mrb[0].mxu0
        %1616 = vdwg.mxu0
        %1617 = vmatprep.subr.mxu0 0.0
        %v1618 = vand.u32 %v846, 4294901760
        %1619 = vmatpush1.msra.mxu0 %v1618
        %1620 = vmatprep.subr.mxu0 0.0
        %v1621 = vand.u32 %v847, 4294901760
        %1622 = vmatpush1.msra.mxu0 %v1621
        %1623 = vmatprep.subr.mxu0 0.0
        %v1624 = vand.u32 %v848, 4294901760
        %1625 = vmatpush1.msra.mxu0 %v1624
        %1626 = vmatprep.subr.mxu0 0.0
        %v1627 = vand.u32 %v849, 4294901760
        %1628 = vmatpush1.msra.mxu0 %v1627
        %1629 = vmatprep.subr.mxu0 0.0
        %1630 = vmatpush1.msra.mxu0 0.0
        %1631 = vmatprep.subr.mxu0 0.0
        %1632 = vmatpush1.msra.mxu0 0.0
        %1633 = vmatprep.subr.mxu0 0.0
        %1634 = vmatpush1.msra.mxu0 0.0
        %1635 = vmatprep.subr.mxu0 0.0
        %1636 = vmatpush1.msra.mxu0 0.0
        %1637 = vmatprep.subr.mxu0 0.0
        %1638 = vmatpush1.msra.mxu0 0.0
        %1639 = vmatprep.subr.mxu0 0.0
        %1640 = vmatpush1.msra.mxu0 0.0
        %1641 = vmatprep.subr.mxu0 0.0
        %1642 = vmatpush1.msra.mxu0 0.0
        %1643 = vmatprep.subr.mxu0 0.0
        %1644 = vmatpush1.msra.mxu0 0.0
        %1645 = vmatprep.subr.mxu0 0.0
        %1646 = vmatpush1.msra.mxu0 0.0
        %1647 = vmatprep.subr.mxu0 0.0
        %1648 = vmatpush1.msra.mxu0 0.0
        %1649 = vmatprep.subr.mxu0 0.0
        %1650 = vmatpush1.msra.mxu0 0.0
        %1651 = vmatprep.subr.mxu0 0.0
        %1652 = vmatpush1.msra.mxu0 0.0
        %1653 = vmatprep.subr.mxu0 0.0
        %1654 = vmatpush1.msra.mxu0 0.0
        %1655 = vmatprep.subr.mxu0 0.0
        %1656 = vmatpush1.msra.mxu0 0.0
        %1657 = vmatprep.subr.mxu0 0.0
        %1658 = vmatpush1.msra.mxu0 0.0
        %1659 = vmatprep.subr.mxu0 0.0
        %1660 = vmatpush1.msra.mxu0 0.0
        %1661 = vmatprep.subr.mxu0 0.0
        %1662 = vmatpush1.msra.mxu0 0.0
        %1663 = vmatprep.subr.mxu0 0.0
        %1664 = vmatpush1.msra.mxu0 0.0
        %1665 = vmatprep.subr.mxu0 0.0
        %1666 = vmatpush1.msra.mxu0 0.0
        %1667 = vmatprep.subr.mxu0 0.0
        %1668 = vmatpush1.msra.mxu0 0.0
        %1669 = vmatprep.subr.mxu0 0.0
        %1670 = vmatpush1.msra.mxu0 0.0
        %1671 = vmatprep.subr.mxu0 0.0
        %1672 = vmatpush1.msra.mxu0 0.0
        %1673 = vmatprep.subr.mxu0 0.0
        %1674 = vmatpush1.msra.mxu0 0.0
        %1675 = vmatprep.subr.mxu0 0.0
        %1676 = vmatpush1.msra.mxu0 0.0
        %1677 = vmatprep.subr.mxu0 0.0
        %1678 = vmatpush1.msra.mxu0 0.0
        %1679 = vmatprep.subr.mxu0 0.0
        %1680 = vmatpush1.msra.mxu0 0.0
        %1681 = vmatprep.subr.mxu0 0.0
        %1682 = vmatpush1.msra.mxu0 0.0
        %1683 = vmatprep.subr.mxu0 0.0
        %1684 = vmatpush1.msra.mxu0 0.0
        %1685 = vmatprep.mubr.f32.mxu0 0.0
        %v1686 = vand.u32 %v1365, 4294901760
        %v1687 = vsub.f32 %v1365, %v1686
        %v1688 = vand.u32 %v1687, 4294901760
        %1689 = vmatmul.mubr.f32.gmra.mrb[0].mxu0 %v1688
        %v1690 = vpop.f32.mrb[0].mxu0
        %v1691 = vadd.f32 %v1614, %v1690
        %v1692 = vpop.f32.mrb[0].mxu0
        %1693 = vdwg.mxu0
        %1694 = vmatprep.subr.mxu0 0.0
        %v1695 = vand.u32 %v846, 4294901760
        %v1696 = vsub.f32 %v846, %v1695
        %v1697 = vand.u32 %v1696, 4294901760
        %1698 = vmatpush1.msra.mxu0 %v1697
        %1699 = vmatprep.subr.mxu0 0.0
        %v1700 = vand.u32 %v847, 4294901760
        %v1701 = vsub.f32 %v847, %v1700
        %v1702 = vand.u32 %v1701, 4294901760
        %1703 = vmatpush1.msra.mxu0 %v1702
        %1704 = vmatprep.subr.mxu0 0.0
        %v1705 = vand.u32 %v848, 4294901760
        %v1706 = vsub.f32 %v848, %v1705
        %v1707 = vand.u32 %v1706, 4294901760
        %1708 = vmatpush1.msra.mxu0 %v1707
        %1709 = vmatprep.subr.mxu0 0.0
        %v1710 = vand.u32 %v849, 4294901760
        %v1711 = vsub.f32 %v849, %v1710
        %v1712 = vand.u32 %v1711, 4294901760
        %1713 = vmatpush1.msra.mxu0 %v1712
        %1714 = vmatprep.subr.mxu0 0.0
        %1715 = vmatpush1.msra.mxu0 0.0
        %1716 = vmatprep.subr.mxu0 0.0
        %1717 = vmatpush1.msra.mxu0 0.0
        %1718 = vmatprep.subr.mxu0 0.0
        %1719 = vmatpush1.msra.mxu0 0.0
        %1720 = vmatprep.subr.mxu0 0.0
        %1721 = vmatpush1.msra.mxu0 0.0
        %1722 = vmatprep.subr.mxu0 0.0
        %1723 = vmatpush1.msra.mxu0 0.0
        %1724 = vmatprep.subr.mxu0 0.0
        %1725 = vmatpush1.msra.mxu0 0.0
        %1726 = vmatprep.subr.mxu0 0.0
        %1727 = vmatpush1.msra.mxu0 0.0
        %1728 = vmatprep.subr.mxu0 0.0
        %1729 = vmatpush1.msra.mxu0 0.0
        %1730 = vmatprep.subr.mxu0 0.0
        %1731 = vmatpush1.msra.mxu0 0.0
        %1732 = vmatprep.subr.mxu0 0.0
        %1733 = vmatpush1.msra.mxu0 0.0
        %1734 = vmatprep.subr.mxu0 0.0
        %1735 = vmatpush1.msra.mxu0 0.0
        %1736 = vmatprep.subr.mxu0 0.0
        %1737 = vmatpush1.msra.mxu0 0.0
        %1738 = vmatprep.subr.mxu0 0.0
        %1739 = vmatpush1.msra.mxu0 0.0
        %1740 = vmatprep.subr.mxu0 0.0
        %1741 = vmatpush1.msra.mxu0 0.0
        %1742 = vmatprep.subr.mxu0 0.0
        %1743 = vmatpush1.msra.mxu0 0.0
        %1744 = vmatprep.subr.mxu0 0.0
        %1745 = vmatpush1.msra.mxu0 0.0
        %1746 = vmatprep.subr.mxu0 0.0
        %1747 = vmatpush1.msra.mxu0 0.0
        %1748 = vmatprep.subr.mxu0 0.0
        %1749 = vmatpush1.msra.mxu0 0.0
        %1750 = vmatprep.subr.mxu0 0.0
        %1751 = vmatpush1.msra.mxu0 0.0
        %1752 = vmatprep.subr.mxu0 0.0
        %1753 = vmatpush1.msra.mxu0 0.0
        %1754 = vmatprep.subr.mxu0 0.0
        %1755 = vmatpush1.msra.mxu0 0.0
        %1756 = vmatprep.subr.mxu0 0.0
        %1757 = vmatpush1.msra.mxu0 0.0
        %1758 = vmatprep.subr.mxu0 0.0
        %1759 = vmatpush1.msra.mxu0 0.0
        %1760 = vmatprep.subr.mxu0 0.0
        %1761 = vmatpush1.msra.mxu0 0.0
        %1762 = vmatprep.subr.mxu0 0.0
        %1763 = vmatpush1.msra.mxu0 0.0
        %1764 = vmatprep.subr.mxu0 0.0
        %1765 = vmatpush1.msra.mxu0 0.0
        %1766 = vmatprep.subr.mxu0 0.0
        %1767 = vmatpush1.msra.mxu0 0.0
        %1768 = vmatprep.subr.mxu0 0.0
        %1769 = vmatpush1.msra.mxu0 0.0
        %1770 = vmatprep.mubr.f32.mxu0 0.0
        %v1771 = vand.u32 %v1365, 4294901760
        %1772 = vmatmul.mubr.f32.gmra.mrb[0].mxu0 %v1771
        %v1773 = vpop.f32.mrb[0].mxu0
        %v1774 = vadd.f32 %v1691, %v1773
        %v1775 = vpop.f32.mrb[0].mxu0
        %1776 = vdwg.mxu0
        %1777 = vmatprep.subr.mxu0 0.0
        %v1778 = vand.u32 %v846, 4294901760
        %1779 = vmatpush1.msra.mxu0 %v1778
        %1780 = vmatprep.subr.mxu0 0.0
        %v1781 = vand.u32 %v847, 4294901760
        %1782 = vmatpush1.msra.mxu0 %v1781
        %1783 = vmatprep.subr.mxu0 0.0
        %v1784 = vand.u32 %v848, 4294901760
        %1785 = vmatpush1.msra.mxu0 %v1784
        %1786 = vmatprep.subr.mxu0 0.0
        %v1787 = vand.u32 %v849, 4294901760
        %1788 = vmatpush1.msra.mxu0 %v1787
        %1789 = vmatprep.subr.mxu0 0.0
        %1790 = vmatpush1.msra.mxu0 0.0
        %1791 = vmatprep.subr.mxu0 0.0
        %1792 = vmatpush1.msra.mxu0 0.0
        %1793 = vmatprep.subr.mxu0 0.0
        %1794 = vmatpush1.msra.mxu0 0.0
        %1795 = vmatprep.subr.mxu0 0.0
        %1796 = vmatpush1.msra.mxu0 0.0
        %1797 = vmatprep.subr.mxu0 0.0
        %1798 = vmatpush1.msra.mxu0 0.0
        %1799 = vmatprep.subr.mxu0 0.0
        %1800 = vmatpush1.msra.mxu0 0.0
        %1801 = vmatprep.subr.mxu0 0.0
        %1802 = vmatpush1.msra.mxu0 0.0
        %1803 = vmatprep.subr.mxu0 0.0
        %1804 = vmatpush1.msra.mxu0 0.0
        %1805 = vmatprep.subr.mxu0 0.0
        %1806 = vmatpush1.msra.mxu0 0.0
        %1807 = vmatprep.subr.mxu0 0.0
        %1808 = vmatpush1.msra.mxu0 0.0
        %1809 = vmatprep.subr.mxu0 0.0
        %1810 = vmatpush1.msra.mxu0 0.0
        %1811 = vmatprep.subr.mxu0 0.0
        %1812 = vmatpush1.msra.mxu0 0.0
        %1813 = vmatprep.subr.mxu0 0.0
        %1814 = vmatpush1.msra.mxu0 0.0
        %1815 = vmatprep.subr.mxu0 0.0
        %1816 = vmatpush1.msra.mxu0 0.0
        %1817 = vmatprep.subr.mxu0 0.0
        %1818 = vmatpush1.msra.mxu0 0.0
        %1819 = vmatprep.subr.mxu0 0.0
        %1820 = vmatpush1.msra.mxu0 0.0
        %1821 = vmatprep.subr.mxu0 0.0
        %1822 = vmatpush1.msra.mxu0 0.0
        %1823 = vmatprep.subr.mxu0 0.0
        %1824 = vmatpush1.msra.mxu0 0.0
        %1825 = vmatprep.subr.mxu0 0.0
        %1826 = vmatpush1.msra.mxu0 0.0
        %1827 = vmatprep.subr.mxu0 0.0
        %1828 = vmatpush1.msra.mxu0 0.0
        %1829 = vmatprep.subr.mxu0 0.0
        %1830 = vmatpush1.msra.mxu0 0.0
        %1831 = vmatprep.subr.mxu0 0.0
        %1832 = vmatpush1.msra.mxu0 0.0
        %1833 = vmatprep.subr.mxu0 0.0
        %1834 = vmatpush1.msra.mxu0 0.0
        %1835 = vmatprep.subr.mxu0 0.0
        %1836 = vmatpush1.msra.mxu0 0.0
        %1837 = vmatprep.subr.mxu0 0.0
        %1838 = vmatpush1.msra.mxu0 0.0
        %1839 = vmatprep.subr.mxu0 0.0
        %1840 = vmatpush1.msra.mxu0 0.0
        %1841 = vmatprep.subr.mxu0 0.0
        %1842 = vmatpush1.msra.mxu0 0.0
        %1843 = vmatprep.subr.mxu0 0.0
        %1844 = vmatpush1.msra.mxu0 0.0
        %1845 = vmatprep.mubr.f32.mxu0 0.0
        %v1846 = vand.u32 %v1365, 4294901760
        %1847 = vmatmul.mubr.f32.gmra.mrb[0].mxu0 %v1846
        %v1848 = vpop.f32.mrb[0].mxu0
        %v1849 = vadd.f32 %v1774, %v1848
        %v1850 = vpop.f32.mrb[0].mxu0
        %1851 = vdwg.mxu0
        %v1852 = vadd.f32 %v843, %v1849
        %v1853 = vtanh.pop %v1852
        %v1854 = vmul.f32 %v1853, 0.5
        %v1855 = vadd.f32 %v1854, 0.5
        %v1856 = vmul.f32 %v1855, %v1353
        %1858 = vrot.lane.b32.xlu0 %v1853, 64
        %v1859 = vpop.permute.xlu0 %1858
        %v1861 = vmul.f32 %v1855, %v1859
        %1863 = vrot.lane.b32.xlu0 %v1861, 32
        %v1864 = vpop.permute.xlu0 %1863
        %v1866 = vadd.f32 %v1856, %v1864
        %v1867 = vtanh.pop %v1866
        %1869 = vrot.lane.b32.xlu0 %v1867, 64
        %v1870 = vpop.permute.xlu0 %1869
        %v1872 = vmul.f32 %v1855, %v1870
        %1874 = vrot.lane.b32.xlu0 %v1872, 32
        %v1875 = vpop.permute.xlu0 %1874
        %1877 = vst.msk [vmem:[#allocation2 + $0x8] sm:$0xff] %vm850, %v1875
        %v1878 = vld [vmem:[#allocation2] sm:$0xff]
        %v1879 = vld [vmem:[#allocation2 + $0x8] sm:$0xff]
        %s1880 = scalar_lea.vmem [#allocation6], 64
        %v1881 = vld [vmem:[%s1880] sm:$0xff]
        %v1882 = vld [vmem:[%s1880 + $0x8] sm:$0xff]
        %v1883 = vld [vmem:[%s1880 + $0x10] sm:$0xff]
        %v1884 = vld [vmem:[%s1880 + $0x18] sm:$0xff]
        %v1885 = vld [vmem:[#allocation8 + $0x1] sm:$0x1]
        %v1886 = vlaneseq
        %v1887 = vshrl.u32 %v1886, 7
        %v1888 = vsub.s32 0, %v1887
        %v1889 = vrot.slane %v1885, %v1888
        %v1891 = vsel %vm850, %v1878, 0
        %v1894 = vsel %vm850, %v1879, 0
        %1896 = vmatprep.subr.mxu0 0.0
        %v1897 = vand.u32 %v1881, 4294901760
        %1898 = vmatpush1.msra.mxu0 %v1897
        %1899 = vmatprep.subr.mxu0 0.0
        %v1900 = vand.u32 %v1882, 4294901760
        %1901 = vmatpush1.msra.mxu0 %v1900
        %1902 = vmatprep.subr.mxu0 0.0
        %v1903 = vand.u32 %v1883, 4294901760
        %1904 = vmatpush1.msra.mxu0 %v1903
        %1905 = vmatprep.subr.mxu0 0.0
        %v1906 = vand.u32 %v1884, 4294901760
        %1907 = vmatpush1.msra.mxu0 %v1906
        %1908 = vmatprep.subr.mxu0 0.0
        %1909 = vmatpush1.msra.mxu0 0.0
        %1910 = vmatprep.subr.mxu0 0.0
        %1911 = vmatpush1.msra.mxu0 0.0
        %1912 = vmatprep.subr.mxu0 0.0
        %1913 = vmatpush1.msra.mxu0 0.0
        %1914 = vmatprep.subr.mxu0 0.0
        %1915 = vmatpush1.msra.mxu0 0.0
        %1916 = vmatprep.subr.mxu0 0.0
        %1917 = vmatpush1.msra.mxu0 0.0
        %1918 = vmatprep.subr.mxu0 0.0
        %1919 = vmatpush1.msra.mxu0 0.0
        %1920 = vmatprep.subr.mxu0 0.0
        %1921 = vmatpush1.msra.mxu0 0.0
        %1922 = vmatprep.subr.mxu0 0.0
        %1923 = vmatpush1.msra.mxu0 0.0
        %1924 = vmatprep.subr.mxu0 0.0
        %1925 = vmatpush1.msra.mxu0 0.0
        %1926 = vmatprep.subr.mxu0 0.0
        %1927 = vmatpush1.msra.mxu0 0.0
        %1928 = vmatprep.subr.mxu0 0.0
        %1929 = vmatpush1.msra.mxu0 0.0
        %1930 = vmatprep.subr.mxu0 0.0
        %1931 = vmatpush1.msra.mxu0 0.0
        %1932 = vmatprep.subr.mxu0 0.0
        %1933 = vmatpush1.msra.mxu0 0.0
        %1934 = vmatprep.subr.mxu0 0.0
        %1935 = vmatpush1.msra.mxu0 0.0
        %1936 = vmatprep.subr.mxu0 0.0
        %1937 = vmatpush1.msra.mxu0 0.0
        %1938 = vmatprep.subr.mxu0 0.0
        %1939 = vmatpush1.msra.mxu0 0.0
        %1940 = vmatprep.subr.mxu0 0.0
        %1941 = vmatpush1.msra.mxu0 0.0
        %1942 = vmatprep.subr.mxu0 0.0
        %1943 = vmatpush1.msra.mxu0 0.0
        %1944 = vmatprep.subr.mxu0 0.0
        %1945 = vmatpush1.msra.mxu0 0.0
        %1946 = vmatprep.subr.mxu0 0.0
        %1947 = vmatpush1.msra.mxu0 0.0
        %1948 = vmatprep.subr.mxu0 0.0
        %1949 = vmatpush1.msra.mxu0 0.0
        %1950 = vmatprep.subr.mxu0 0.0
        %1951 = vmatpush1.msra.mxu0 0.0
        %1952 = vmatprep.subr.mxu0 0.0
        %1953 = vmatpush1.msra.mxu0 0.0
        %1954 = vmatprep.subr.mxu0 0.0
        %1955 = vmatpush1.msra.mxu0 0.0
        %1956 = vmatprep.subr.mxu0 0.0
        %1957 = vmatpush1.msra.mxu0 0.0
        %1958 = vmatprep.subr.mxu0 0.0
        %1959 = vmatpush1.msra.mxu0 0.0
        %1960 = vmatprep.subr.mxu0 0.0
        %1961 = vmatpush1.msra.mxu0 0.0
        %1962 = vmatprep.subr.mxu0 0.0
        %1963 = vmatpush1.msra.mxu0 0.0
        %1964 = vmatprep.mubr.f32.mxu0 0.0
        %v1965 = vand.u32 %v1891, 4294901760
        %v1966 = vsub.f32 %v1891, %v1965
        %v1967 = vand.u32 %v1966, 4294901760
        %v1968 = vsub.f32 %v1966, %v1967
        %v1969 = vand.u32 %v1968, 4294901760
        %1970 = vmatmul.mubr.f32.gmra.mrb[0].mxu0 %v1969
        %v1971 = vpop.f32.mrb[0].mxu0
        %v1972 = vadd.f32 %v1889, %v1971
        %v1973 = vpop.f32.mrb[0].mxu0
        %1974 = vmatprep.mubr.f32.mxu0 0.0
        %v1975 = vand.u32 %v1894, 4294901760
        %v1976 = vsub.f32 %v1894, %v1975
        %v1977 = vand.u32 %v1976, 4294901760
        %v1978 = vsub.f32 %v1976, %v1977
        %v1979 = vand.u32 %v1978, 4294901760
        %1980 = vmatmul.mubr.f32.gmra.mrb[0].mxu0 %v1979
        %v1981 = vpop.f32.mrb[0].mxu0
        %v1982 = vadd.f32 %v1889, %v1981
        %v1983 = vpop.f32.mrb[0].mxu0
        %1984 = vdwg.mxu0
        %1985 = vmatprep.subr.mxu0 0.0
        %v1986 = vand.u32 %v1881, 4294901760
        %v1987 = vsub.f32 %v1881, %v1986
        %v1988 = vand.u32 %v1987, 4294901760
        %v1989 = vsub.f32 %v1987, %v1988
        %v1990 = vand.u32 %v1989, 4294901760
        %1991 = vmatpush1.msra.mxu0 %v1990
        %1992 = vmatprep.subr.mxu0 0.0
        %v1993 = vand.u32 %v1882, 4294901760
        %v1994 = vsub.f32 %v1882, %v1993
        %v1995 = vand.u32 %v1994, 4294901760
        %v1996 = vsub.f32 %v1994, %v1995
        %v1997 = vand.u32 %v1996, 4294901760
        %1998 = vmatpush1.msra.mxu0 %v1997
        %1999 = vmatprep.subr.mxu0 0.0
        %v2000 = vand.u32 %v1883, 4294901760
        %v2001 = vsub.f32 %v1883, %v2000
        %v2002 = vand.u32 %v2001, 4294901760
        %v2003 = vsub.f32 %v2001, %v2002
        %v2004 = vand.u32 %v2003, 4294901760
        %2005 = vmatpush1.msra.mxu0 %v2004
        %2006 = vmatprep.subr.mxu0 0.0
        %v2007 = vand.u32 %v1884, 4294901760
        %v2008 = vsub.f32 %v1884, %v2007
        %v2009 = vand.u32 %v2008, 4294901760
        %v2010 = vsub.f32 %v2008, %v2009
        %v2011 = vand.u32 %v2010, 4294901760
        %2012 = vmatpush1.msra.mxu0 %v2011
        %2013 = vmatprep.subr.mxu0 0.0
        %2014 = vmatpush1.msra.mxu0 0.0
        %2015 = vmatprep.subr.mxu0 0.0
        %2016 = vmatpush1.msra.mxu0 0.0
        %2017 = vmatprep.subr.mxu0 0.0
        %2018 = vmatpush1.msra.mxu0 0.0
        %2019 = vmatprep.subr.mxu0 0.0
        %2020 = vmatpush1.msra.mxu0 0.0
        %2021 = vmatprep.subr.mxu0 0.0
        %2022 = vmatpush1.msra.mxu0 0.0
        %2023 = vmatprep.subr.mxu0 0.0
        %2024 = vmatpush1.msra.mxu0 0.0
        %2025 = vmatprep.subr.mxu0 0.0
        %2026 = vmatpush1.msra.mxu0 0.0
        %2027 = vmatprep.subr.mxu0 0.0
        %2028 = vmatpush1.msra.mxu0 0.0
        %2029 = vmatprep.subr.mxu0 0.0
        %2030 = vmatpush1.msra.mxu0 0.0
        %2031 = vmatprep.subr.mxu0 0.0
        %2032 = vmatpush1.msra.mxu0 0.0
        %2033 = vmatprep.subr.mxu0 0.0
        %2034 = vmatpush1.msra.mxu0 0.0
        %2035 = vmatprep.subr.mxu0 0.0
        %2036 = vmatpush1.msra.mxu0 0.0
        %2037 = vmatprep.subr.mxu0 0.0
        %2038 = vmatpush1.msra.mxu0 0.0
        %2039 = vmatprep.subr.mxu0 0.0
        %2040 = vmatpush1.msra.mxu0 0.0
        %2041 = vmatprep.subr.mxu0 0.0
        %2042 = vmatpush1.msra.mxu0 0.0
        %2043 = vmatprep.subr.mxu0 0.0
        %2044 = vmatpush1.msra.mxu0 0.0
        %2045 = vmatprep.subr.mxu0 0.0
        %2046 = vmatpush1.msra.mxu0 0.0
        %2047 = vmatprep.subr.mxu0 0.0
        %2048 = vmatpush1.msra.mxu0 0.0
        %2049 = vmatprep.subr.mxu0 0.0
        %2050 = vmatpush1.msra.mxu0 0.0
        %2051 = vmatprep.subr.mxu0 0.0
        %2052 = vmatpush1.msra.mxu0 0.0
        %2053 = vmatprep.subr.mxu0 0.0
        %2054 = vmatpush1.msra.mxu0 0.0
        %2055 = vmatprep.subr.mxu0 0.0
        %2056 = vmatpush1.msra.mxu0 0.0
        %2057 = vmatprep.subr.mxu0 0.0
        %2058 = vmatpush1.msra.mxu0 0.0
        %2059 = vmatprep.subr.mxu0 0.0
        %2060 = vmatpush1.msra.mxu0 0.0
        %2061 = vmatprep.subr.mxu0 0.0
        %2062 = vmatpush1.msra.mxu0 0.0
        %2063 = vmatprep.subr.mxu0 0.0
        %2064 = vmatpush1.msra.mxu0 0.0
        %2065 = vmatprep.subr.mxu0 0.0
        %2066 = vmatpush1.msra.mxu0 0.0
        %2067 = vmatprep.subr.mxu0 0.0
        %2068 = vmatpush1.msra.mxu0 0.0
        %2069 = vmatprep.mubr.f32.mxu0 0.0
        %v2070 = vand.u32 %v1891, 4294901760
        %2071 = vmatmul.mubr.f32.gmra.mrb[0].mxu0 %v2070
        %v2072 = vpop.f32.mrb[0].mxu0
        %v2073 = vadd.f32 %v1972, %v2072
        %v2074 = vpop.f32.mrb[0].mxu0
        %2075 = vmatprep.mubr.f32.mxu0 0.0
        %v2076 = vand.u32 %v1894, 4294901760
        %2077 = vmatmul.mubr.f32.gmra.mrb[0].mxu0 %v2076
        %v2078 = vpop.f32.mrb[0].mxu0
        %v2079 = vadd.f32 %v1982, %v2078
        %v2080 = vpop.f32.mrb[0].mxu0
        %2081 = vdwg.mxu0
        %2082 = vmatprep.subr.mxu0 0.0
        %v2083 = vand.u32 %v1881, 4294901760
        %v2084 = vsub.f32 %v1881, %v2083
        %2085 = vmatpush1.msra.mxu0 %v2084
        %2086 = vmatprep.subr.mxu0 0.0
        %v2087 = vand.u32 %v1882, 4294901760
        %v2088 = vsub.f32 %v1882, %v2087
        %2089 = vmatpush1.msra.mxu0 %v2088
        %2090 = vmatprep.subr.mxu0 0.0
        %v2091 = vand.u32 %v1883, 4294901760
        %v2092 = vsub.f32 %v1883, %v2091
        %2093 = vmatpush1.msra.mxu0 %v2092
        %2094 = vmatprep.subr.mxu0 0.0
        %v2095 = vand.u32 %v1884, 4294901760
        %v2096 = vsub.f32 %v1884, %v2095
        %2097 = vmatpush1.msra.mxu0 %v2096
        %2098 = vmatprep.subr.mxu0 0.0
        %2099 = vmatpush1.msra.mxu0 0.0
        %2100 = vmatprep.subr.mxu0 0.0
        %2101 = vmatpush1.msra.mxu0 0.0
        %2102 = vmatprep.subr.mxu0 0.0
        %2103 = vmatpush1.msra.mxu0 0.0
        %2104 = vmatprep.subr.mxu0 0.0
        %2105 = vmatpush1.msra.mxu0 0.0
        %2106 = vmatprep.subr.mxu0 0.0
        %2107 = vmatpush1.msra.mxu0 0.0
        %2108 = vmatprep.subr.mxu0 0.0
        %2109 = vmatpush1.msra.mxu0 0.0
        %2110 = vmatprep.subr.mxu0 0.0
        %2111 = vmatpush1.msra.mxu0 0.0
        %2112 = vmatprep.subr.mxu0 0.0
        %2113 = vmatpush1.msra.mxu0 0.0
        %2114 = vmatprep.subr.mxu0 0.0
        %2115 = vmatpush1.msra.mxu0 0.0
        %2116 = vmatprep.subr.mxu0 0.0
        %2117 = vmatpush1.msra.mxu0 0.0
        %2118 = vmatprep.subr.mxu0 0.0
        %2119 = vmatpush1.msra.mxu0 0.0
        %2120 = vmatprep.subr.mxu0 0.0
        %2121 = vmatpush1.msra.mxu0 0.0
        %2122 = vmatprep.subr.mxu0 0.0
        %2123 = vmatpush1.msra.mxu0 0.0
        %2124 = vmatprep.subr.mxu0 0.0
        %2125 = vmatpush1.msra.mxu0 0.0
        %2126 = vmatprep.subr.mxu0 0.0
        %2127 = vmatpush1.msra.mxu0 0.0
        %2128 = vmatprep.subr.mxu0 0.0
        %2129 = vmatpush1.msra.mxu0 0.0
        %2130 = vmatprep.subr.mxu0 0.0
        %2131 = vmatpush1.msra.mxu0 0.0
        %2132 = vmatprep.subr.mxu0 0.0
        %2133 = vmatpush1.msra.mxu0 0.0
        %2134 = vmatprep.subr.mxu0 0.0
        %2135 = vmatpush1.msra.mxu0 0.0
        %2136 = vmatprep.subr.mxu0 0.0
        %2137 = vmatpush1.msra.mxu0 0.0
        %2138 = vmatprep.subr.mxu0 0.0
        %2139 = vmatpush1.msra.mxu0 0.0
        %2140 = vmatprep.subr.mxu0 0.0
        %2141 = vmatpush1.msra.mxu0 0.0
        %2142 = vmatprep.subr.mxu0 0.0
        %2143 = vmatpush1.msra.mxu0 0.0
        %2144 = vmatprep.subr.mxu0 0.0
        %2145 = vmatpush1.msra.mxu0 0.0
        %2146 = vmatprep.subr.mxu0 0.0
        %2147 = vmatpush1.msra.mxu0 0.0
        %2148 = vmatprep.subr.mxu0 0.0
        %2149 = vmatpush1.msra.mxu0 0.0
        %2150 = vmatprep.subr.mxu0 0.0
        %2151 = vmatpush1.msra.mxu0 0.0
        %2152 = vmatprep.subr.mxu0 0.0
        %2153 = vmatpush1.msra.mxu0 0.0
        %2154 = vmatprep.mubr.f32.mxu0 0.0
        %v2155 = vand.u32 %v1891, 4294901760
        %v2156 = vsub.f32 %v1891, %v2155
        %2157 = vmatmul.mubr.f32.gmra.mrb[0].mxu0 %v2156
        %v2158 = vpop.f32.mrb[0].mxu0
        %v2159 = vadd.f32 %v2073, %v2158
        %v2160 = vpop.f32.mrb[0].mxu0
        %2161 = vmatprep.mubr.f32.mxu0 0.0
        %v2162 = vand.u32 %v1894, 4294901760
        %v2163 = vsub.f32 %v1894, %v2162
        %2164 = vmatmul.mubr.f32.gmra.mrb[0].mxu0 %v2163
        %v2165 = vpop.f32.mrb[0].mxu0
        %v2166 = vadd.f32 %v2079, %v2165
        %v2167 = vpop.f32.mrb[0].mxu0
        %2168 = vdwg.mxu0
        %2169 = vmatprep.subr.mxu0 0.0
        %v2170 = vand.u32 %v1881, 4294901760
        %2171 = vmatpush1.msra.mxu0 %v2170
        %2172 = vmatprep.subr.mxu0 0.0
        %v2173 = vand.u32 %v1882, 4294901760
        %2174 = vmatpush1.msra.mxu0 %v2173
        %2175 = vmatprep.subr.mxu0 0.0
        %v2176 = vand.u32 %v1883, 4294901760
        %2177 = vmatpush1.msra.mxu0 %v2176
        %2178 = vmatprep.subr.mxu0 0.0
        %v2179 = vand.u32 %v1884, 4294901760
        %2180 = vmatpush1.msra.mxu0 %v2179
        %2181 = vmatprep.subr.mxu0 0.0
        %2182 = vmatpush1.msra.mxu0 0.0
        %2183 = vmatprep.subr.mxu0 0.0
        %2184 = vmatpush1.msra.mxu0 0.0
        %2185 = vmatprep.subr.mxu0 0.0
        %2186 = vmatpush1.msra.mxu0 0.0
        %2187 = vmatprep.subr.mxu0 0.0
        %2188 = vmatpush1.msra.mxu0 0.0
        %2189 = vmatprep.subr.mxu0 0.0
        %2190 = vmatpush1.msra.mxu0 0.0
        %2191 = vmatprep.subr.mxu0 0.0
        %2192 = vmatpush1.msra.mxu0 0.0
        %2193 = vmatprep.subr.mxu0 0.0
        %2194 = vmatpush1.msra.mxu0 0.0
        %2195 = vmatprep.subr.mxu0 0.0
        %2196 = vmatpush1.msra.mxu0 0.0
        %2197 = vmatprep.subr.mxu0 0.0
        %2198 = vmatpush1.msra.mxu0 0.0
        %2199 = vmatprep.subr.mxu0 0.0
        %2200 = vmatpush1.msra.mxu0 0.0
        %2201 = vmatprep.subr.mxu0 0.0
        %2202 = vmatpush1.msra.mxu0 0.0
        %2203 = vmatprep.subr.mxu0 0.0
        %2204 = vmatpush1.msra.mxu0 0.0
        %2205 = vmatprep.subr.mxu0 0.0
        %2206 = vmatpush1.msra.mxu0 0.0
        %2207 = vmatprep.subr.mxu0 0.0
        %2208 = vmatpush1.msra.mxu0 0.0
        %2209 = vmatprep.subr.mxu0 0.0
        %2210 = vmatpush1.msra.mxu0 0.0
        %2211 = vmatprep.subr.mxu0 0.0
        %2212 = vmatpush1.msra.mxu0 0.0
        %2213 = vmatprep.subr.mxu0 0.0
        %2214 = vmatpush1.msra.mxu0 0.0
        %2215 = vmatprep.subr.mxu0 0.0
        %2216 = vmatpush1.msra.mxu0 0.0
        %2217 = vmatprep.subr.mxu0 0.0
        %2218 = vmatpush1.msra.mxu0 0.0
        %2219 = vmatprep.subr.mxu0 0.0
        %2220 = vmatpush1.msra.mxu0 0.0
        %2221 = vmatprep.subr.mxu0 0.0
        %2222 = vmatpush1.msra.mxu0 0.0
        %2223 = vmatprep.subr.mxu0 0.0
        %2224 = vmatpush1.msra.mxu0 0.0
        %2225 = vmatprep.subr.mxu0 0.0
        %2226 = vmatpush1.msra.mxu0 0.0
        %2227 = vmatprep.subr.mxu0 0.0
        %2228 = vmatpush1.msra.mxu0 0.0
        %2229 = vmatprep.subr.mxu0 0.0
        %2230 = vmatpush1.msra.mxu0 0.0
        %2231 = vmatprep.subr.mxu0 0.0
        %2232 = vmatpush1.msra.mxu0 0.0
        %2233 = vmatprep.subr.mxu0 0.0
        %2234 = vmatpush1.msra.mxu0 0.0
        %2235 = vmatprep.subr.mxu0 0.0
        %2236 = vmatpush1.msra.mxu0 0.0
        %2237 = vmatprep.mubr.f32.mxu0 0.0
        %v2238 = vand.u32 %v1891, 4294901760
        %v2239 = vsub.f32 %v1891, %v2238
        %v2240 = vand.u32 %v2239, 4294901760
        %2241 = vmatmul.mubr.f32.gmra.mrb[0].mxu0 %v2240
        %v2242 = vpop.f32.mrb[0].mxu0
        %v2243 = vadd.f32 %v2159, %v2242
        %v2244 = vpop.f32.mrb[0].mxu0
        %2245 = vmatprep.mubr.f32.mxu0 0.0
        %v2246 = vand.u32 %v1894, 4294901760
        %v2247 = vsub.f32 %v1894, %v2246
        %v2248 = vand.u32 %v2247, 4294901760
        %2249 = vmatmul.mubr.f32.gmra.mrb[0].mxu0 %v2248
        %v2250 = vpop.f32.mrb[0].mxu0
        %v2251 = vadd.f32 %v2166, %v2250
        %v2252 = vpop.f32.mrb[0].mxu0
        %2253 = vdwg.mxu0
        %2254 = vmatprep.subr.mxu0 0.0
        %v2255 = vand.u32 %v1881, 4294901760
        %v2256 = vsub.f32 %v1881, %v2255
        %v2257 = vand.u32 %v2256, 4294901760
        %2258 = vmatpush1.msra.mxu0 %v2257
        %2259 = vmatprep.subr.mxu0 0.0
        %v2260 = vand.u32 %v1882, 4294901760
        %v2261 = vsub.f32 %v1882, %v2260
        %v2262 = vand.u32 %v2261, 4294901760
        %2263 = vmatpush1.msra.mxu0 %v2262
        %2264 = vmatprep.subr.mxu0 0.0
        %v2265 = vand.u32 %v1883, 4294901760
        %v2266 = vsub.f32 %v1883, %v2265
        %v2267 = vand.u32 %v2266, 4294901760
        %2268 = vmatpush1.msra.mxu0 %v2267
        %2269 = vmatprep.subr.mxu0 0.0
        %v2270 = vand.u32 %v1884, 4294901760
        %v2271 = vsub.f32 %v1884, %v2270
        %v2272 = vand.u32 %v2271, 4294901760
        %2273 = vmatpush1.msra.mxu0 %v2272
        %2274 = vmatprep.subr.mxu0 0.0
        %2275 = vmatpush1.msra.mxu0 0.0
        %2276 = vmatprep.subr.mxu0 0.0
        %2277 = vmatpush1.msra.mxu0 0.0
        %2278 = vmatprep.subr.mxu0 0.0
        %2279 = vmatpush1.msra.mxu0 0.0
        %2280 = vmatprep.subr.mxu0 0.0
        %2281 = vmatpush1.msra.mxu0 0.0
        %2282 = vmatprep.subr.mxu0 0.0
        %2283 = vmatpush1.msra.mxu0 0.0
        %2284 = vmatprep.subr.mxu0 0.0
        %2285 = vmatpush1.msra.mxu0 0.0
        %2286 = vmatprep.subr.mxu0 0.0
        %2287 = vmatpush1.msra.mxu0 0.0
        %2288 = vmatprep.subr.mxu0 0.0
        %2289 = vmatpush1.msra.mxu0 0.0
        %2290 = vmatprep.subr.mxu0 0.0
        %2291 = vmatpush1.msra.mxu0 0.0
        %2292 = vmatprep.subr.mxu0 0.0
        %2293 = vmatpush1.msra.mxu0 0.0
        %2294 = vmatprep.subr.mxu0 0.0
        %2295 = vmatpush1.msra.mxu0 0.0
        %2296 = vmatprep.subr.mxu0 0.0
        %2297 = vmatpush1.msra.mxu0 0.0
        %2298 = vmatprep.subr.mxu0 0.0
        %2299 = vmatpush1.msra.mxu0 0.0
        %2300 = vmatprep.subr.mxu0 0.0
        %2301 = vmatpush1.msra.mxu0 0.0
        %2302 = vmatprep.subr.mxu0 0.0
        %2303 = vmatpush1.msra.mxu0 0.0
        %2304 = vmatprep.subr.mxu0 0.0
        %2305 = vmatpush1.msra.mxu0 0.0
        %2306 = vmatprep.subr.mxu0 0.0
        %2307 = vmatpush1.msra.mxu0 0.0
        %2308 = vmatprep.subr.mxu0 0.0
        %2309 = vmatpush1.msra.mxu0 0.0
        %2310 = vmatprep.subr.mxu0 0.0
        %2311 = vmatpush1.msra.mxu0 0.0
        %2312 = vmatprep.subr.mxu0 0.0
        %2313 = vmatpush1.msra.mxu0 0.0
        %2314 = vmatprep.subr.mxu0 0.0
        %2315 = vmatpush1.msra.mxu0 0.0
        %2316 = vmatprep.subr.mxu0 0.0
        %2317 = vmatpush1.msra.mxu0 0.0
        %2318 = vmatprep.subr.mxu0 0.0
        %2319 = vmatpush1.msra.mxu0 0.0
        %2320 = vmatprep.subr.mxu0 0.0
        %2321 = vmatpush1.msra.mxu0 0.0
        %2322 = vmatprep.subr.mxu0 0.0
        %2323 = vmatpush1.msra.mxu0 0.0
        %2324 = vmatprep.subr.mxu0 0.0
        %2325 = vmatpush1.msra.mxu0 0.0
        %2326 = vmatprep.subr.mxu0 0.0
        %2327 = vmatpush1.msra.mxu0 0.0
        %2328 = vmatprep.subr.mxu0 0.0
        %2329 = vmatpush1.msra.mxu0 0.0
        %2330 = vmatprep.mubr.f32.mxu0 0.0
        %v2331 = vand.u32 %v1891, 4294901760
        %2332 = vmatmul.mubr.f32.gmra.mrb[0].mxu0 %v2331
        %v2333 = vpop.f32.mrb[0].mxu0
        %v2334 = vadd.f32 %v2243, %v2333
        %v2335 = vpop.f32.mrb[0].mxu0
        %2336 = vmatprep.mubr.f32.mxu0 0.0
        %v2337 = vand.u32 %v1894, 4294901760
        %2338 = vmatmul.mubr.f32.gmra.mrb[0].mxu0 %v2337
        %v2339 = vpop.f32.mrb[0].mxu0
        %v2340 = vadd.f32 %v2251, %v2339
        %v2341 = vpop.f32.mrb[0].mxu0
        %2342 = vdwg.mxu0
        %2343 = vmatprep.subr.mxu0 0.0
        %v2344 = vand.u32 %v1881, 4294901760
        %2345 = vmatpush1.msra.mxu0 %v2344
        %2346 = vmatprep.subr.mxu0 0.0
        %v2347 = vand.u32 %v1882, 4294901760
        %2348 = vmatpush1.msra.mxu0 %v2347
        %2349 = vmatprep.subr.mxu0 0.0
        %v2350 = vand.u32 %v1883, 4294901760
        %2351 = vmatpush1.msra.mxu0 %v2350
        %2352 = vmatprep.subr.mxu0 0.0
        %v2353 = vand.u32 %v1884, 4294901760
        %2354 = vmatpush1.msra.mxu0 %v2353
        %2355 = vmatprep.subr.mxu0 0.0
        %2356 = vmatpush1.msra.mxu0 0.0
        %2357 = vmatprep.subr.mxu0 0.0
        %2358 = vmatpush1.msra.mxu0 0.0
        %2359 = vmatprep.subr.mxu0 0.0
        %2360 = vmatpush1.msra.mxu0 0.0
        %2361 = vmatprep.subr.mxu0 0.0
        %2362 = vmatpush1.msra.mxu0 0.0
        %2363 = vmatprep.subr.mxu0 0.0
        %2364 = vmatpush1.msra.mxu0 0.0
        %2365 = vmatprep.subr.mxu0 0.0
        %2366 = vmatpush1.msra.mxu0 0.0
        %2367 = vmatprep.subr.mxu0 0.0
        %2368 = vmatpush1.msra.mxu0 0.0
        %2369 = vmatprep.subr.mxu0 0.0
        %2370 = vmatpush1.msra.mxu0 0.0
        %2371 = vmatprep.subr.mxu0 0.0
        %2372 = vmatpush1.msra.mxu0 0.0
        %2373 = vmatprep.subr.mxu0 0.0
        %2374 = vmatpush1.msra.mxu0 0.0
        %2375 = vmatprep.subr.mxu0 0.0
        %2376 = vmatpush1.msra.mxu0 0.0
        %2377 = vmatprep.subr.mxu0 0.0
        %2378 = vmatpush1.msra.mxu0 0.0
        %2379 = vmatprep.subr.mxu0 0.0
        %2380 = vmatpush1.msra.mxu0 0.0
        %2381 = vmatprep.subr.mxu0 0.0
        %2382 = vmatpush1.msra.mxu0 0.0
        %2383 = vmatprep.subr.mxu0 0.0
        %2384 = vmatpush1.msra.mxu0 0.0
        %2385 = vmatprep.subr.mxu0 0.0
        %2386 = vmatpush1.msra.mxu0 0.0
        %2387 = vmatprep.subr.mxu0 0.0
        %2388 = vmatpush1.msra.mxu0 0.0
        %2389 = vmatprep.subr.mxu0 0.0
        %2390 = vmatpush1.msra.mxu0 0.0
        %2391 = vmatprep.subr.mxu0 0.0
        %2392 = vmatpush1.msra.mxu0 0.0
        %2393 = vmatprep.subr.mxu0 0.0
        %2394 = vmatpush1.msra.mxu0 0.0
        %2395 = vmatprep.subr.mxu0 0.0
        %2396 = vmatpush1.msra.mxu0 0.0
        %2397 = vmatprep.subr.mxu0 0.0
        %2398 = vmatpush1.msra.mxu0 0.0
        %2399 = vmatprep.subr.mxu0 0.0
        %2400 = vmatpush1.msra.mxu0 0.0
        %2401 = vmatprep.subr.mxu0 0.0
        %2402 = vmatpush1.msra.mxu0 0.0
        %2403 = vmatprep.subr.mxu0 0.0
        %2404 = vmatpush1.msra.mxu0 0.0
        %2405 = vmatprep.subr.mxu0 0.0
        %2406 = vmatpush1.msra.mxu0 0.0
        %2407 = vmatprep.subr.mxu0 0.0
        %2408 = vmatpush1.msra.mxu0 0.0
        %2409 = vmatprep.subr.mxu0 0.0
        %2410 = vmatpush1.msra.mxu0 0.0
        %2411 = vmatprep.mubr.f32.mxu0 0.0
        %v2412 = vand.u32 %v1891, 4294901760
        %2413 = vmatmul.mubr.f32.gmra.mrb[0].mxu0 %v2412
        %v2414 = vpop.f32.mrb[0].mxu0
        %v2415 = vadd.f32 %v2334, %v2414
        %v2416 = vpop.f32.mrb[0].mxu0
        %2417 = vmatprep.mubr.f32.mxu0 0.0
        %v2418 = vand.u32 %v1894, 4294901760
        %2419 = vmatmul.mubr.f32.gmra.mrb[0].mxu0 %v2418
        %v2420 = vpop.f32.mrb[0].mxu0
        %v2421 = vadd.f32 %v2340, %v2420
        %v2422 = vpop.f32.mrb[0].mxu0
        %2423 = vdwg.mxu0
        %v2424 = vld [vmem:[%s1880 + $0x20] sm:$0xff]
        %v2425 = vld [vmem:[%s1880 + $0x28] sm:$0xff]
        %v2426 = vld [vmem:[%s1880 + $0x30] sm:$0xff]
        %v2427 = vld [vmem:[%s1880 + $0x38] sm:$0xff]
        %2428 = vmatprep.subr.mxu0 0.0
        %v2429 = vand.u32 %v2424, 4294901760
        %2430 = vmatpush1.msra.mxu0 %v2429
        %2431 = vmatprep.subr.mxu0 0.0
        %v2432 = vand.u32 %v2425, 4294901760
        %2433 = vmatpush1.msra.mxu0 %v2432
        %2434 = vmatprep.subr.mxu0 0.0
        %v2435 = vand.u32 %v2426, 4294901760
        %2436 = vmatpush1.msra.mxu0 %v2435
        %2437 = vmatprep.subr.mxu0 0.0
        %v2438 = vand.u32 %v2427, 4294901760
        %2439 = vmatpush1.msra.mxu0 %v2438
        %2440 = vmatprep.subr.mxu0 0.0
        %2441 = vmatpush1.msra.mxu0 0.0
        %2442 = vmatprep.subr.mxu0 0.0
        %2443 = vmatpush1.msra.mxu0 0.0
        %2444 = vmatprep.subr.mxu0 0.0
        %2445 = vmatpush1.msra.mxu0 0.0
        %2446 = vmatprep.subr.mxu0 0.0
        %2447 = vmatpush1.msra.mxu0 0.0
        %2448 = vmatprep.subr.mxu0 0.0
        %2449 = vmatpush1.msra.mxu0 0.0
        %2450 = vmatprep.subr.mxu0 0.0
        %2451 = vmatpush1.msra.mxu0 0.0
        %2452 = vmatprep.subr.mxu0 0.0
        %2453 = vmatpush1.msra.mxu0 0.0
        %2454 = vmatprep.subr.mxu0 0.0
        %2455 = vmatpush1.msra.mxu0 0.0
        %2456 = vmatprep.subr.mxu0 0.0
        %2457 = vmatpush1.msra.mxu0 0.0
        %2458 = vmatprep.subr.mxu0 0.0
        %2459 = vmatpush1.msra.mxu0 0.0
        %2460 = vmatprep.subr.mxu0 0.0
        %2461 = vmatpush1.msra.mxu0 0.0
        %2462 = vmatprep.subr.mxu0 0.0
        %2463 = vmatpush1.msra.mxu0 0.0
        %2464 = vmatprep.subr.mxu0 0.0
        %2465 = vmatpush1.msra.mxu0 0.0
        %2466 = vmatprep.subr.mxu0 0.0
        %2467 = vmatpush1.msra.mxu0 0.0
        %2468 = vmatprep.subr.mxu0 0.0
        %2469 = vmatpush1.msra.mxu0 0.0
        %2470 = vmatprep.subr.mxu0 0.0
        %2471 = vmatpush1.msra.mxu0 0.0
        %2472 = vmatprep.subr.mxu0 0.0
        %2473 = vmatpush1.msra.mxu0 0.0
        %2474 = vmatprep.subr.mxu0 0.0
        %2475 = vmatpush1.msra.mxu0 0.0
        %2476 = vmatprep.subr.mxu0 0.0
        %2477 = vmatpush1.msra.mxu0 0.0
        %2478 = vmatprep.subr.mxu0 0.0
        %2479 = vmatpush1.msra.mxu0 0.0
        %2480 = vmatprep.subr.mxu0 0.0
        %2481 = vmatpush1.msra.mxu0 0.0
        %2482 = vmatprep.subr.mxu0 0.0
        %2483 = vmatpush1.msra.mxu0 0.0
        %2484 = vmatprep.subr.mxu0 0.0
        %2485 = vmatpush1.msra.mxu0 0.0
        %2486 = vmatprep.subr.mxu0 0.0
        %2487 = vmatpush1.msra.mxu0 0.0
        %2488 = vmatprep.subr.mxu0 0.0
        %2489 = vmatpush1.msra.mxu0 0.0
        %2490 = vmatprep.subr.mxu0 0.0
        %2491 = vmatpush1.msra.mxu0 0.0
        %2492 = vmatprep.subr.mxu0 0.0
        %2493 = vmatpush1.msra.mxu0 0.0
        %2494 = vmatprep.subr.mxu0 0.0
        %2495 = vmatpush1.msra.mxu0 0.0
        %2496 = vmatprep.mubr.f32.mxu0 0.0
        %v2497 = vand.u32 %v852, 4294901760
        %v2498 = vsub.f32 %v852, %v2497
        %v2499 = vand.u32 %v2498, 4294901760
        %v2500 = vsub.f32 %v2498, %v2499
        %v2501 = vand.u32 %v2500, 4294901760
        %2502 = vmatmul.mubr.f32.gmra.mrb[0].mxu0 %v2501
        %v2503 = vpop.f32.mrb[0].mxu0
        %v2504 = vadd.f32 0.0, %v2503
        %v2505 = vpop.f32.mrb[0].mxu0
        %2506 = vdwg.mxu0
        %2507 = vmatprep.subr.mxu0 0.0
        %v2508 = vand.u32 %v2424, 4294901760
        %v2509 = vsub.f32 %v2424, %v2508
        %v2510 = vand.u32 %v2509, 4294901760
        %v2511 = vsub.f32 %v2509, %v2510
        %v2512 = vand.u32 %v2511, 4294901760
        %2513 = vmatpush1.msra.mxu0 %v2512
        %2514 = vmatprep.subr.mxu0 0.0
        %v2515 = vand.u32 %v2425, 4294901760
        %v2516 = vsub.f32 %v2425, %v2515
        %v2517 = vand.u32 %v2516, 4294901760
        %v2518 = vsub.f32 %v2516, %v2517
        %v2519 = vand.u32 %v2518, 4294901760
        %2520 = vmatpush1.msra.mxu0 %v2519
        %2521 = vmatprep.subr.mxu0 0.0
        %v2522 = vand.u32 %v2426, 4294901760
        %v2523 = vsub.f32 %v2426, %v2522
        %v2524 = vand.u32 %v2523, 4294901760
        %v2525 = vsub.f32 %v2523, %v2524
        %v2526 = vand.u32 %v2525, 4294901760
        %2527 = vmatpush1.msra.mxu0 %v2526
        %2528 = vmatprep.subr.mxu0 0.0
        %v2529 = vand.u32 %v2427, 4294901760
        %v2530 = vsub.f32 %v2427, %v2529
        %v2531 = vand.u32 %v2530, 4294901760
        %v2532 = vsub.f32 %v2530, %v2531
        %v2533 = vand.u32 %v2532, 4294901760
        %2534 = vmatpush1.msra.mxu0 %v2533
        %2535 = vmatprep.subr.mxu0 0.0
        %2536 = vmatpush1.msra.mxu0 0.0
        %2537 = vmatprep.subr.mxu0 0.0
        %2538 = vmatpush1.msra.mxu0 0.0
        %2539 = vmatprep.subr.mxu0 0.0
        %2540 = vmatpush1.msra.mxu0 0.0
        %2541 = vmatprep.subr.mxu0 0.0
        %2542 = vmatpush1.msra.mxu0 0.0
        %2543 = vmatprep.subr.mxu0 0.0
        %2544 = vmatpush1.msra.mxu0 0.0
        %2545 = vmatprep.subr.mxu0 0.0
        %2546 = vmatpush1.msra.mxu0 0.0
        %2547 = vmatprep.subr.mxu0 0.0
        %2548 = vmatpush1.msra.mxu0 0.0
        %2549 = vmatprep.subr.mxu0 0.0
        %2550 = vmatpush1.msra.mxu0 0.0
        %2551 = vmatprep.subr.mxu0 0.0
        %2552 = vmatpush1.msra.mxu0 0.0
        %2553 = vmatprep.subr.mxu0 0.0
        %2554 = vmatpush1.msra.mxu0 0.0
        %2555 = vmatprep.subr.mxu0 0.0
        %2556 = vmatpush1.msra.mxu0 0.0
        %2557 = vmatprep.subr.mxu0 0.0
        %2558 = vmatpush1.msra.mxu0 0.0
        %2559 = vmatprep.subr.mxu0 0.0
        %2560 = vmatpush1.msra.mxu0 0.0
        %2561 = vmatprep.subr.mxu0 0.0
        %2562 = vmatpush1.msra.mxu0 0.0
        %2563 = vmatprep.subr.mxu0 0.0
        %2564 = vmatpush1.msra.mxu0 0.0
        %2565 = vmatprep.subr.mxu0 0.0
        %2566 = vmatpush1.msra.mxu0 0.0
        %2567 = vmatprep.subr.mxu0 0.0
        %2568 = vmatpush1.msra.mxu0 0.0
        %2569 = vmatprep.subr.mxu0 0.0
        %2570 = vmatpush1.msra.mxu0 0.0
        %2571 = vmatprep.subr.mxu0 0.0
        %2572 = vmatpush1.msra.mxu0 0.0
        %2573 = vmatprep.subr.mxu0 0.0
        %2574 = vmatpush1.msra.mxu0 0.0
        %2575 = vmatprep.subr.mxu0 0.0
        %2576 = vmatpush1.msra.mxu0 0.0
        %2577 = vmatprep.subr.mxu0 0.0
        %2578 = vmatpush1.msra.mxu0 0.0
        %2579 = vmatprep.subr.mxu0 0.0
        %2580 = vmatpush1.msra.mxu0 0.0
        %2581 = vmatprep.subr.mxu0 0.0
        %2582 = vmatpush1.msra.mxu0 0.0
        %2583 = vmatprep.subr.mxu0 0.0
        %2584 = vmatpush1.msra.mxu0 0.0
        %2585 = vmatprep.subr.mxu0 0.0
        %2586 = vmatpush1.msra.mxu0 0.0
        %2587 = vmatprep.subr.mxu0 0.0
        %2588 = vmatpush1.msra.mxu0 0.0
        %2589 = vmatprep.subr.mxu0 0.0
        %2590 = vmatpush1.msra.mxu0 0.0
        %2591 = vmatprep.mubr.f32.mxu0 0.0
        %v2592 = vand.u32 %v852, 4294901760
        %2593 = vmatmul.mubr.f32.gmra.mrb[0].mxu0 %v2592
        %v2594 = vpop.f32.mrb[0].mxu0
        %v2595 = vadd.f32 %v2504, %v2594
        %v2596 = vpop.f32.mrb[0].mxu0
        %2597 = vdwg.mxu0
        %2598 = vmatprep.subr.mxu0 0.0
        %v2599 = vand.u32 %v2424, 4294901760
        %v2600 = vsub.f32 %v2424, %v2599
        %2601 = vmatpush1.msra.mxu0 %v2600
        %2602 = vmatprep.subr.mxu0 0.0
        %v2603 = vand.u32 %v2425, 4294901760
        %v2604 = vsub.f32 %v2425, %v2603
        %2605 = vmatpush1.msra.mxu0 %v2604
        %2606 = vmatprep.subr.mxu0 0.0
        %v2607 = vand.u32 %v2426, 4294901760
        %v2608 = vsub.f32 %v2426, %v2607
        %2609 = vmatpush1.msra.mxu0 %v2608
        %2610 = vmatprep.subr.mxu0 0.0
        %v2611 = vand.u32 %v2427, 4294901760
        %v2612 = vsub.f32 %v2427, %v2611
        %2613 = vmatpush1.msra.mxu0 %v2612
        %2614 = vmatprep.subr.mxu0 0.0
        %2615 = vmatpush1.msra.mxu0 0.0
        %2616 = vmatprep.subr.mxu0 0.0
        %2617 = vmatpush1.msra.mxu0 0.0
        %2618 = vmatprep.subr.mxu0 0.0
        %2619 = vmatpush1.msra.mxu0 0.0
        %2620 = vmatprep.subr.mxu0 0.0
        %2621 = vmatpush1.msra.mxu0 0.0
        %2622 = vmatprep.subr.mxu0 0.0
        %2623 = vmatpush1.msra.mxu0 0.0
        %2624 = vmatprep.subr.mxu0 0.0
        %2625 = vmatpush1.msra.mxu0 0.0
        %2626 = vmatprep.subr.mxu0 0.0
        %2627 = vmatpush1.msra.mxu0 0.0
        %2628 = vmatprep.subr.mxu0 0.0
        %2629 = vmatpush1.msra.mxu0 0.0
        %2630 = vmatprep.subr.mxu0 0.0
        %2631 = vmatpush1.msra.mxu0 0.0
        %2632 = vmatprep.subr.mxu0 0.0
        %2633 = vmatpush1.msra.mxu0 0.0
        %2634 = vmatprep.subr.mxu0 0.0
        %2635 = vmatpush1.msra.mxu0 0.0
        %2636 = vmatprep.subr.mxu0 0.0
        %2637 = vmatpush1.msra.mxu0 0.0
        %2638 = vmatprep.subr.mxu0 0.0
        %2639 = vmatpush1.msra.mxu0 0.0
        %2640 = vmatprep.subr.mxu0 0.0
        %2641 = vmatpush1.msra.mxu0 0.0
        %2642 = vmatprep.subr.mxu0 0.0
        %2643 = vmatpush1.msra.mxu0 0.0
        %2644 = vmatprep.subr.mxu0 0.0
        %2645 = vmatpush1.msra.mxu0 0.0
        %2646 = vmatprep.subr.mxu0 0.0
        %2647 = vmatpush1.msra.mxu0 0.0
        %2648 = vmatprep.subr.mxu0 0.0
        %2649 = vmatpush1.msra.mxu0 0.0
        %2650 = vmatprep.subr.mxu0 0.0
        %2651 = vmatpush1.msra.mxu0 0.0
        %2652 = vmatprep.subr.mxu0 0.0
        %2653 = vmatpush1.msra.mxu0 0.0
        %2654 = vmatprep.subr.mxu0 0.0
        %2655 = vmatpush1.msra.mxu0 0.0
        %2656 = vmatprep.subr.mxu0 0.0
        %2657 = vmatpush1.msra.mxu0 0.0
        %2658 = vmatprep.subr.mxu0 0.0
        %2659 = vmatpush1.msra.mxu0 0.0
        %2660 = vmatprep.subr.mxu0 0.0
        %2661 = vmatpush1.msra.mxu0 0.0
        %2662 = vmatprep.subr.mxu0 0.0
        %2663 = vmatpush1.msra.mxu0 0.0
        %2664 = vmatprep.subr.mxu0 0.0
        %2665 = vmatpush1.msra.mxu0 0.0
        %2666 = vmatprep.subr.mxu0 0.0
        %2667 = vmatpush1.msra.mxu0 0.0
        %2668 = vmatprep.subr.mxu0 0.0
        %2669 = vmatpush1.msra.mxu0 0.0
        %2670 = vmatprep.mubr.f32.mxu0 0.0
        %v2671 = vand.u32 %v852, 4294901760
        %v2672 = vsub.f32 %v852, %v2671
        %2673 = vmatmul.mubr.f32.gmra.mrb[0].mxu0 %v2672
        %v2674 = vpop.f32.mrb[0].mxu0
        %v2675 = vadd.f32 %v2595, %v2674
        %v2676 = vpop.f32.mrb[0].mxu0
        %2677 = vdwg.mxu0
        %2678 = vmatprep.subr.mxu0 0.0
        %v2679 = vand.u32 %v2424, 4294901760
        %2680 = vmatpush1.msra.mxu0 %v2679
        %2681 = vmatprep.subr.mxu0 0.0
        %v2682 = vand.u32 %v2425, 4294901760
        %2683 = vmatpush1.msra.mxu0 %v2682
        %2684 = vmatprep.subr.mxu0 0.0
        %v2685 = vand.u32 %v2426, 4294901760
        %2686 = vmatpush1.msra.mxu0 %v2685
        %2687 = vmatprep.subr.mxu0 0.0
        %v2688 = vand.u32 %v2427, 4294901760
        %2689 = vmatpush1.msra.mxu0 %v2688
        %2690 = vmatprep.subr.mxu0 0.0
        %2691 = vmatpush1.msra.mxu0 0.0
        %2692 = vmatprep.subr.mxu0 0.0
        %2693 = vmatpush1.msra.mxu0 0.0
        %2694 = vmatprep.subr.mxu0 0.0
        %2695 = vmatpush1.msra.mxu0 0.0
        %2696 = vmatprep.subr.mxu0 0.0
        %2697 = vmatpush1.msra.mxu0 0.0
        %2698 = vmatprep.subr.mxu0 0.0
        %2699 = vmatpush1.msra.mxu0 0.0
        %2700 = vmatprep.subr.mxu0 0.0
        %2701 = vmatpush1.msra.mxu0 0.0
        %2702 = vmatprep.subr.mxu0 0.0
        %2703 = vmatpush1.msra.mxu0 0.0
        %2704 = vmatprep.subr.mxu0 0.0
        %2705 = vmatpush1.msra.mxu0 0.0
        %2706 = vmatprep.subr.mxu0 0.0
        %2707 = vmatpush1.msra.mxu0 0.0
        %2708 = vmatprep.subr.mxu0 0.0
        %2709 = vmatpush1.msra.mxu0 0.0
        %2710 = vmatprep.subr.mxu0 0.0
        %2711 = vmatpush1.msra.mxu0 0.0
        %2712 = vmatprep.subr.mxu0 0.0
        %2713 = vmatpush1.msra.mxu0 0.0
        %2714 = vmatprep.subr.mxu0 0.0
        %2715 = vmatpush1.msra.mxu0 0.0
        %2716 = vmatprep.subr.mxu0 0.0
        %2717 = vmatpush1.msra.mxu0 0.0
        %2718 = vmatprep.subr.mxu0 0.0
        %2719 = vmatpush1.msra.mxu0 0.0
        %2720 = vmatprep.subr.mxu0 0.0
        %2721 = vmatpush1.msra.mxu0 0.0
        %2722 = vmatprep.subr.mxu0 0.0
        %2723 = vmatpush1.msra.mxu0 0.0
        %2724 = vmatprep.subr.mxu0 0.0
        %2725 = vmatpush1.msra.mxu0 0.0
        %2726 = vmatprep.subr.mxu0 0.0
        %2727 = vmatpush1.msra.mxu0 0.0
        %2728 = vmatprep.subr.mxu0 0.0
        %2729 = vmatpush1.msra.mxu0 0.0
        %2730 = vmatprep.subr.mxu0 0.0
        %2731 = vmatpush1.msra.mxu0 0.0
        %2732 = vmatprep.subr.mxu0 0.0
        %2733 = vmatpush1.msra.mxu0 0.0
        %2734 = vmatprep.subr.mxu0 0.0
        %2735 = vmatpush1.msra.mxu0 0.0
        %2736 = vmatprep.subr.mxu0 0.0
        %2737 = vmatpush1.msra.mxu0 0.0
        %2738 = vmatprep.subr.mxu0 0.0
        %2739 = vmatpush1.msra.mxu0 0.0
        %2740 = vmatprep.subr.mxu0 0.0
        %2741 = vmatpush1.msra.mxu0 0.0
        %2742 = vmatprep.subr.mxu0 0.0
        %2743 = vmatpush1.msra.mxu0 0.0
        %2744 = vmatprep.subr.mxu0 0.0
        %2745 = vmatpush1.msra.mxu0 0.0
        %2746 = vmatprep.mubr.f32.mxu0 0.0
        %v2747 = vand.u32 %v852, 4294901760
        %v2748 = vsub.f32 %v852, %v2747
        %v2749 = vand.u32 %v2748, 4294901760
        %2750 = vmatmul.mubr.f32.gmra.mrb[0].mxu0 %v2749
        %v2751 = vpop.f32.mrb[0].mxu0
        %v2752 = vadd.f32 %v2675, %v2751
        %v2753 = vpop.f32.mrb[0].mxu0
        %2754 = vdwg.mxu0
        %2755 = vmatprep.subr.mxu0 0.0
        %v2756 = vand.u32 %v2424, 4294901760
        %v2757 = vsub.f32 %v2424, %v2756
        %v2758 = vand.u32 %v2757, 4294901760
        %2759 = vmatpush1.msra.mxu0 %v2758
        %2760 = vmatprep.subr.mxu0 0.0
        %v2761 = vand.u32 %v2425, 4294901760
        %v2762 = vsub.f32 %v2425, %v2761
        %v2763 = vand.u32 %v2762, 4294901760
        %2764 = vmatpush1.msra.mxu0 %v2763
        %2765 = vmatprep.subr.mxu0 0.0
        %v2766 = vand.u32 %v2426, 4294901760
        %v2767 = vsub.f32 %v2426, %v2766
        %v2768 = vand.u32 %v2767, 4294901760
        %2769 = vmatpush1.msra.mxu0 %v2768
        %2770 = vmatprep.subr.mxu0 0.0
        %v2771 = vand.u32 %v2427, 4294901760
        %v2772 = vsub.f32 %v2427, %v2771
        %v2773 = vand.u32 %v2772, 4294901760
        %2774 = vmatpush1.msra.mxu0 %v2773
        %2775 = vmatprep.subr.mxu0 0.0
        %2776 = vmatpush1.msra.mxu0 0.0
        %2777 = vmatprep.subr.mxu0 0.0
        %2778 = vmatpush1.msra.mxu0 0.0
        %2779 = vmatprep.subr.mxu0 0.0
        %2780 = vmatpush1.msra.mxu0 0.0
        %2781 = vmatprep.subr.mxu0 0.0
        %2782 = vmatpush1.msra.mxu0 0.0
        %2783 = vmatprep.subr.mxu0 0.0
        %2784 = vmatpush1.msra.mxu0 0.0
        %2785 = vmatprep.subr.mxu0 0.0
        %2786 = vmatpush1.msra.mxu0 0.0
        %2787 = vmatprep.subr.mxu0 0.0
        %2788 = vmatpush1.msra.mxu0 0.0
        %2789 = vmatprep.subr.mxu0 0.0
        %2790 = vmatpush1.msra.mxu0 0.0
        %2791 = vmatprep.subr.mxu0 0.0
        %2792 = vmatpush1.msra.mxu0 0.0
        %2793 = vmatprep.subr.mxu0 0.0
        %2794 = vmatpush1.msra.mxu0 0.0
        %2795 = vmatprep.subr.mxu0 0.0
        %2796 = vmatpush1.msra.mxu0 0.0
        %2797 = vmatprep.subr.mxu0 0.0
        %2798 = vmatpush1.msra.mxu0 0.0
        %2799 = vmatprep.subr.mxu0 0.0
        %2800 = vmatpush1.msra.mxu0 0.0
        %2801 = vmatprep.subr.mxu0 0.0
        %2802 = vmatpush1.msra.mxu0 0.0
        %2803 = vmatprep.subr.mxu0 0.0
        %2804 = vmatpush1.msra.mxu0 0.0
        %2805 = vmatprep.subr.mxu0 0.0
        %2806 = vmatpush1.msra.mxu0 0.0
        %2807 = vmatprep.subr.mxu0 0.0
        %2808 = vmatpush1.msra.mxu0 0.0
        %2809 = vmatprep.subr.mxu0 0.0
        %2810 = vmatpush1.msra.mxu0 0.0
        %2811 = vmatprep.subr.mxu0 0.0
        %2812 = vmatpush1.msra.mxu0 0.0
        %2813 = vmatprep.subr.mxu0 0.0
        %2814 = vmatpush1.msra.mxu0 0.0
        %2815 = vmatprep.subr.mxu0 0.0
        %2816 = vmatpush1.msra.mxu0 0.0
        %2817 = vmatprep.subr.mxu0 0.0
        %2818 = vmatpush1.msra.mxu0 0.0
        %2819 = vmatprep.subr.mxu0 0.0
        %2820 = vmatpush1.msra.mxu0 0.0
        %2821 = vmatprep.subr.mxu0 0.0
        %2822 = vmatpush1.msra.mxu0 0.0
        %2823 = vmatprep.subr.mxu0 0.0
        %2824 = vmatpush1.msra.mxu0 0.0
        %2825 = vmatprep.subr.mxu0 0.0
        %2826 = vmatpush1.msra.mxu0 0.0
        %2827 = vmatprep.subr.mxu0 0.0
        %2828 = vmatpush1.msra.mxu0 0.0
        %2829 = vmatprep.subr.mxu0 0.0
        %2830 = vmatpush1.msra.mxu0 0.0
        %2831 = vmatprep.mubr.f32.mxu0 0.0
        %v2832 = vand.u32 %v852, 4294901760
        %2833 = vmatmul.mubr.f32.gmra.mrb[0].mxu0 %v2832
        %v2834 = vpop.f32.mrb[0].mxu0
        %v2835 = vadd.f32 %v2752, %v2834
        %v2836 = vpop.f32.mrb[0].mxu0
        %2837 = vdwg.mxu0
        %2838 = vmatprep.subr.mxu0 0.0
        %v2839 = vand.u32 %v2424, 4294901760
        %2840 = vmatpush1.msra.mxu0 %v2839
        %2841 = vmatprep.subr.mxu0 0.0
        %v2842 = vand.u32 %v2425, 4294901760
        %2843 = vmatpush1.msra.mxu0 %v2842
        %2844 = vmatprep.subr.mxu0 0.0
        %v2845 = vand.u32 %v2426, 4294901760
        %2846 = vmatpush1.msra.mxu0 %v2845
        %2847 = vmatprep.subr.mxu0 0.0
        %v2848 = vand.u32 %v2427, 4294901760
        %2849 = vmatpush1.msra.mxu0 %v2848
        %2850 = vmatprep.subr.mxu0 0.0
        %2851 = vmatpush1.msra.mxu0 0.0
        %2852 = vmatprep.subr.mxu0 0.0
        %2853 = vmatpush1.msra.mxu0 0.0
        %2854 = vmatprep.subr.mxu0 0.0
        %2855 = vmatpush1.msra.mxu0 0.0
        %2856 = vmatprep.subr.mxu0 0.0
        %2857 = vmatpush1.msra.mxu0 0.0
        %2858 = vmatprep.subr.mxu0 0.0
        %2859 = vmatpush1.msra.mxu0 0.0
        %2860 = vmatprep.subr.mxu0 0.0
        %2861 = vmatpush1.msra.mxu0 0.0
        %2862 = vmatprep.subr.mxu0 0.0
        %2863 = vmatpush1.msra.mxu0 0.0
        %2864 = vmatprep.subr.mxu0 0.0
        %2865 = vmatpush1.msra.mxu0 0.0
        %2866 = vmatprep.subr.mxu0 0.0
        %2867 = vmatpush1.msra.mxu0 0.0
        %2868 = vmatprep.subr.mxu0 0.0
        %2869 = vmatpush1.msra.mxu0 0.0
        %2870 = vmatprep.subr.mxu0 0.0
        %2871 = vmatpush1.msra.mxu0 0.0
        %2872 = vmatprep.subr.mxu0 0.0
        %2873 = vmatpush1.msra.mxu0 0.0
        %2874 = vmatprep.subr.mxu0 0.0
        %2875 = vmatpush1.msra.mxu0 0.0
        %2876 = vmatprep.subr.mxu0 0.0
        %2877 = vmatpush1.msra.mxu0 0.0
        %2878 = vmatprep.subr.mxu0 0.0
        %2879 = vmatpush1.msra.mxu0 0.0
        %2880 = vmatprep.subr.mxu0 0.0
        %2881 = vmatpush1.msra.mxu0 0.0
        %2882 = vmatprep.subr.mxu0 0.0
        %2883 = vmatpush1.msra.mxu0 0.0
        %2884 = vmatprep.subr.mxu0 0.0
        %2885 = vmatpush1.msra.mxu0 0.0
        %2886 = vmatprep.subr.mxu0 0.0
        %2887 = vmatpush1.msra.mxu0 0.0
        %2888 = vmatprep.subr.mxu0 0.0
        %2889 = vmatpush1.msra.mxu0 0.0
        %2890 = vmatprep.subr.mxu0 0.0
        %2891 = vmatpush1.msra.mxu0 0.0
        %2892 = vmatprep.subr.mxu0 0.0
        %2893 = vmatpush1.msra.mxu0 0.0
        %2894 = vmatprep.subr.mxu0 0.0
        %2895 = vmatpush1.msra.mxu0 0.0
        %2896 = vmatprep.subr.mxu0 0.0
        %2897 = vmatpush1.msra.mxu0 0.0
        %2898 = vmatprep.subr.mxu0 0.0
        %2899 = vmatpush1.msra.mxu0 0.0
        %2900 = vmatprep.subr.mxu0 0.0
        %2901 = vmatpush1.msra.mxu0 0.0
        %2902 = vmatprep.subr.mxu0 0.0
        %2903 = vmatpush1.msra.mxu0 0.0
        %2904 = vmatprep.subr.mxu0 0.0
        %2905 = vmatpush1.msra.mxu0 0.0
        %2906 = vmatprep.mubr.f32.mxu0 0.0
        %v2907 = vand.u32 %v852, 4294901760
        %2908 = vmatmul.mubr.f32.gmra.mrb[0].mxu0 %v2907
        %v2909 = vpop.f32.mrb[0].mxu0
        %v2910 = vadd.f32 %v2835, %v2909
        %v2911 = vpop.f32.mrb[0].mxu0
        %2912 = vdwg.mxu0
        %v2913 = vadd.f32 %v2415, %v2910
        %v2914 = vtanh.pop %v2913
        %v2915 = vmul.f32 %v2914, 0.5
        %v2916 = vadd.f32 %v2915, 0.5
        %v2917 = vmul.f32 %v2916, 0.0
        %2919 = vrot.lane.b32.xlu0 %v2914, 64
        %v2920 = vpop.permute.xlu0 %2919
        %v2922 = vmul.f32 %v2916, %v2920
        %2924 = vrot.lane.b32.xlu0 %v2922, 32
        %v2925 = vpop.permute.xlu0 %2924
        %v2927 = vadd.f32 %v2917, %v2925
        %v2928 = vtanh.pop %v2927
        %2930 = vrot.lane.b32.xlu0 %v2928, 64
        %v2931 = vpop.permute.xlu0 %2930
        %v2933 = vmul.f32 %v2916, %v2931
        %2935 = vrot.lane.b32.xlu0 %v2933, 32
        %v2936 = vpop.permute.xlu0 %2935
        %2938 = vst.msk [vmem:[#allocation2] sm:$0xff] %vm850, %v2936
        %v2939 = vsel %vm850, %v2936, 0
        %2941 = vmatprep.subr.mxu0 0.0
        %v2942 = vand.u32 %v2424, 4294901760
        %2943 = vmatpush1.msra.mxu0 %v2942
        %2944 = vmatprep.subr.mxu0 0.0
        %v2945 = vand.u32 %v2425, 4294901760
        %2946 = vmatpush1.msra.mxu0 %v2945
        %2947 = vmatprep.subr.mxu0 0.0
        %v2948 = vand.u32 %v2426, 4294901760
        %2949 = vmatpush1.msra.mxu0 %v2948
        %2950 = vmatprep.subr.mxu0 0.0
        %v2951 = vand.u32 %v2427, 4294901760
        %2952 = vmatpush1.msra.mxu0 %v2951
        %2953 = vmatprep.subr.mxu0 0.0
        %2954 = vmatpush1.msra.mxu0 0.0
        %2955 = vmatprep.subr.mxu0 0.0
        %2956 = vmatpush1.msra.mxu0 0.0
        %2957 = vmatprep.subr.mxu0 0.0
        %2958 = vmatpush1.msra.mxu0 0.0
        %2959 = vmatprep.subr.mxu0 0.0
        %2960 = vmatpush1.msra.mxu0 0.0
        %2961 = vmatprep.subr.mxu0 0.0
        %2962 = vmatpush1.msra.mxu0 0.0
        %2963 = vmatprep.subr.mxu0 0.0
        %2964 = vmatpush1.msra.mxu0 0.0
        %2965 = vmatprep.subr.mxu0 0.0
        %2966 = vmatpush1.msra.mxu0 0.0
        %2967 = vmatprep.subr.mxu0 0.0
        %2968 = vmatpush1.msra.mxu0 0.0
        %2969 = vmatprep.subr.mxu0 0.0
        %2970 = vmatpush1.msra.mxu0 0.0
        %2971 = vmatprep.subr.mxu0 0.0
        %2972 = vmatpush1.msra.mxu0 0.0
        %2973 = vmatprep.subr.mxu0 0.0
        %2974 = vmatpush1.msra.mxu0 0.0
        %2975 = vmatprep.subr.mxu0 0.0
        %2976 = vmatpush1.msra.mxu0 0.0
        %2977 = vmatprep.subr.mxu0 0.0
        %2978 = vmatpush1.msra.mxu0 0.0
        %2979 = vmatprep.subr.mxu0 0.0
        %2980 = vmatpush1.msra.mxu0 0.0
        %2981 = vmatprep.subr.mxu0 0.0
        %2982 = vmatpush1.msra.mxu0 0.0
        %2983 = vmatprep.subr.mxu0 0.0
        %2984 = vmatpush1.msra.mxu0 0.0
        %2985 = vmatprep.subr.mxu0 0.0
        %2986 = vmatpush1.msra.mxu0 0.0
        %2987 = vmatprep.subr.mxu0 0.0
        %2988 = vmatpush1.msra.mxu0 0.0
        %2989 = vmatprep.subr.mxu0 0.0
        %2990 = vmatpush1.msra.mxu0 0.0
        %2991 = vmatprep.subr.mxu0 0.0
        %2992 = vmatpush1.msra.mxu0 0.0
        %2993 = vmatprep.subr.mxu0 0.0
        %2994 = vmatpush1.msra.mxu0 0.0
        %2995 = vmatprep.subr.mxu0 0.0
        %2996 = vmatpush1.msra.mxu0 0.0
        %2997 = vmatprep.subr.mxu0 0.0
        %2998 = vmatpush1.msra.mxu0 0.0
        %2999 = vmatprep.subr.mxu0 0.0
        %3000 = vmatpush1.msra.mxu0 0.0
        %3001 = vmatprep.subr.mxu0 0.0
        %3002 = vmatpush1.msra.mxu0 0.0
        %3003 = vmatprep.subr.mxu0 0.0
        %3004 = vmatpush1.msra.mxu0 0.0
        %3005 = vmatprep.subr.mxu0 0.0
        %3006 = vmatpush1.msra.mxu0 0.0
        %3007 = vmatprep.subr.mxu0 0.0
        %3008 = vmatpush1.msra.mxu0 0.0
        %3009 = vmatprep.mubr.f32.mxu0 0.0
        %v3010 = vand.u32 %v2939, 4294901760
        %v3011 = vsub.f32 %v2939, %v3010
        %v3012 = vand.u32 %v3011, 4294901760
        %v3013 = vsub.f32 %v3011, %v3012
        %v3014 = vand.u32 %v3013, 4294901760
        %3015 = vmatmul.mubr.f32.gmra.mrb[0].mxu0 %v3014
        %v3016 = vpop.f32.mrb[0].mxu0
        %v3017 = vadd.f32 0.0, %v3016
        %v3018 = vpop.f32.mrb[0].mxu0
        %3019 = vdwg.mxu0
        %3020 = vmatprep.subr.mxu0 0.0
        %v3021 = vand.u32 %v2424, 4294901760
        %v3022 = vsub.f32 %v2424, %v3021
        %v3023 = vand.u32 %v3022, 4294901760
        %v3024 = vsub.f32 %v3022, %v3023
        %v3025 = vand.u32 %v3024, 4294901760
        %3026 = vmatpush1.msra.mxu0 %v3025
        %3027 = vmatprep.subr.mxu0 0.0
        %v3028 = vand.u32 %v2425, 4294901760
        %v3029 = vsub.f32 %v2425, %v3028
        %v3030 = vand.u32 %v3029, 4294901760
        %v3031 = vsub.f32 %v3029, %v3030
        %v3032 = vand.u32 %v3031, 4294901760
        %3033 = vmatpush1.msra.mxu0 %v3032
        %3034 = vmatprep.subr.mxu0 0.0
        %v3035 = vand.u32 %v2426, 4294901760
        %v3036 = vsub.f32 %v2426, %v3035
        %v3037 = vand.u32 %v3036, 4294901760
        %v3038 = vsub.f32 %v3036, %v3037
        %v3039 = vand.u32 %v3038, 4294901760
        %3040 = vmatpush1.msra.mxu0 %v3039
        %3041 = vmatprep.subr.mxu0 0.0
        %v3042 = vand.u32 %v2427, 4294901760
        %v3043 = vsub.f32 %v2427, %v3042
        %v3044 = vand.u32 %v3043, 4294901760
        %v3045 = vsub.f32 %v3043, %v3044
        %v3046 = vand.u32 %v3045, 4294901760
        %3047 = vmatpush1.msra.mxu0 %v3046
        %3048 = vmatprep.subr.mxu0 0.0
        %3049 = vmatpush1.msra.mxu0 0.0
        %3050 = vmatprep.subr.mxu0 0.0
        %3051 = vmatpush1.msra.mxu0 0.0
        %3052 = vmatprep.subr.mxu0 0.0
        %3053 = vmatpush1.msra.mxu0 0.0
        %3054 = vmatprep.subr.mxu0 0.0
        %3055 = vmatpush1.msra.mxu0 0.0
        %3056 = vmatprep.subr.mxu0 0.0
        %3057 = vmatpush1.msra.mxu0 0.0
        %3058 = vmatprep.subr.mxu0 0.0
        %3059 = vmatpush1.msra.mxu0 0.0
        %3060 = vmatprep.subr.mxu0 0.0
        %3061 = vmatpush1.msra.mxu0 0.0
        %3062 = vmatprep.subr.mxu0 0.0
        %3063 = vmatpush1.msra.mxu0 0.0
        %3064 = vmatprep.subr.mxu0 0.0
        %3065 = vmatpush1.msra.mxu0 0.0
        %3066 = vmatprep.subr.mxu0 0.0
        %3067 = vmatpush1.msra.mxu0 0.0
        %3068 = vmatprep.subr.mxu0 0.0
        %3069 = vmatpush1.msra.mxu0 0.0
        %3070 = vmatprep.subr.mxu0 0.0
        %3071 = vmatpush1.msra.mxu0 0.0
        %3072 = vmatprep.subr.mxu0 0.0
        %3073 = vmatpush1.msra.mxu0 0.0
        %3074 = vmatprep.subr.mxu0 0.0
        %3075 = vmatpush1.msra.mxu0 0.0
        %3076 = vmatprep.subr.mxu0 0.0
        %3077 = vmatpush1.msra.mxu0 0.0
        %3078 = vmatprep.subr.mxu0 0.0
        %3079 = vmatpush1.msra.mxu0 0.0
        %3080 = vmatprep.subr.mxu0 0.0
        %3081 = vmatpush1.msra.mxu0 0.0
        %3082 = vmatprep.subr.mxu0 0.0
        %3083 = vmatpush1.msra.mxu0 0.0
        %3084 = vmatprep.subr.mxu0 0.0
        %3085 = vmatpush1.msra.mxu0 0.0
        %3086 = vmatprep.subr.mxu0 0.0
        %3087 = vmatpush1.msra.mxu0 0.0
        %3088 = vmatprep.subr.mxu0 0.0
        %3089 = vmatpush1.msra.mxu0 0.0
        %3090 = vmatprep.subr.mxu0 0.0
        %3091 = vmatpush1.msra.mxu0 0.0
        %3092 = vmatprep.subr.mxu0 0.0
        %3093 = vmatpush1.msra.mxu0 0.0
        %3094 = vmatprep.subr.mxu0 0.0
        %3095 = vmatpush1.msra.mxu0 0.0
        %3096 = vmatprep.subr.mxu0 0.0
        %3097 = vmatpush1.msra.mxu0 0.0
        %3098 = vmatprep.subr.mxu0 0.0
        %3099 = vmatpush1.msra.mxu0 0.0
        %3100 = vmatprep.subr.mxu0 0.0
        %3101 = vmatpush1.msra.mxu0 0.0
        %3102 = vmatprep.subr.mxu0 0.0
        %3103 = vmatpush1.msra.mxu0 0.0
        %3104 = vmatprep.mubr.f32.mxu0 0.0
        %v3105 = vand.u32 %v2939, 4294901760
        %3106 = vmatmul.mubr.f32.gmra.mrb[0].mxu0 %v3105
        %v3107 = vpop.f32.mrb[0].mxu0
        %v3108 = vadd.f32 %v3017, %v3107
        %v3109 = vpop.f32.mrb[0].mxu0
        %3110 = vdwg.mxu0
        %3111 = vmatprep.subr.mxu0 0.0
        %v3112 = vand.u32 %v2424, 4294901760
        %v3113 = vsub.f32 %v2424, %v3112
        %3114 = vmatpush1.msra.mxu0 %v3113
        %3115 = vmatprep.subr.mxu0 0.0
        %v3116 = vand.u32 %v2425, 4294901760
        %v3117 = vsub.f32 %v2425, %v3116
        %3118 = vmatpush1.msra.mxu0 %v3117
        %3119 = vmatprep.subr.mxu0 0.0
        %v3120 = vand.u32 %v2426, 4294901760
        %v3121 = vsub.f32 %v2426, %v3120
        %3122 = vmatpush1.msra.mxu0 %v3121
        %3123 = vmatprep.subr.mxu0 0.0
        %v3124 = vand.u32 %v2427, 4294901760
        %v3125 = vsub.f32 %v2427, %v3124
        %3126 = vmatpush1.msra.mxu0 %v3125
        %3127 = vmatprep.subr.mxu0 0.0
        %3128 = vmatpush1.msra.mxu0 0.0
        %3129 = vmatprep.subr.mxu0 0.0
        %3130 = vmatpush1.msra.mxu0 0.0
        %3131 = vmatprep.subr.mxu0 0.0
        %3132 = vmatpush1.msra.mxu0 0.0
        %3133 = vmatprep.subr.mxu0 0.0
        %3134 = vmatpush1.msra.mxu0 0.0
        %3135 = vmatprep.subr.mxu0 0.0
        %3136 = vmatpush1.msra.mxu0 0.0
        %3137 = vmatprep.subr.mxu0 0.0
        %3138 = vmatpush1.msra.mxu0 0.0
        %3139 = vmatprep.subr.mxu0 0.0
        %3140 = vmatpush1.msra.mxu0 0.0
        %3141 = vmatprep.subr.mxu0 0.0
        %3142 = vmatpush1.msra.mxu0 0.0
        %3143 = vmatprep.subr.mxu0 0.0
        %3144 = vmatpush1.msra.mxu0 0.0
        %3145 = vmatprep.subr.mxu0 0.0
        %3146 = vmatpush1.msra.mxu0 0.0
        %3147 = vmatprep.subr.mxu0 0.0
        %3148 = vmatpush1.msra.mxu0 0.0
        %3149 = vmatprep.subr.mxu0 0.0
        %3150 = vmatpush1.msra.mxu0 0.0
        %3151 = vmatprep.subr.mxu0 0.0
        %3152 = vmatpush1.msra.mxu0 0.0
        %3153 = vmatprep.subr.mxu0 0.0
        %3154 = vmatpush1.msra.mxu0 0.0
        %3155 = vmatprep.subr.mxu0 0.0
        %3156 = vmatpush1.msra.mxu0 0.0
        %3157 = vmatprep.subr.mxu0 0.0
        %3158 = vmatpush1.msra.mxu0 0.0
        %3159 = vmatprep.subr.mxu0 0.0
        %3160 = vmatpush1.msra.mxu0 0.0
        %3161 = vmatprep.subr.mxu0 0.0
        %3162 = vmatpush1.msra.mxu0 0.0
        %3163 = vmatprep.subr.mxu0 0.0
        %3164 = vmatpush1.msra.mxu0 0.0
        %3165 = vmatprep.subr.mxu0 0.0
        %3166 = vmatpush1.msra.mxu0 0.0
        %3167 = vmatprep.subr.mxu0 0.0
        %3168 = vmatpush1.msra.mxu0 0.0
        %3169 = vmatprep.subr.mxu0 0.0
        %3170 = vmatpush1.msra.mxu0 0.0
        %3171 = vmatprep.subr.mxu0 0.0
        %3172 = vmatpush1.msra.mxu0 0.0
        %3173 = vmatprep.subr.mxu0 0.0
        %3174 = vmatpush1.msra.mxu0 0.0
        %3175 = vmatprep.subr.mxu0 0.0
        %3176 = vmatpush1.msra.mxu0 0.0
        %3177 = vmatprep.subr.mxu0 0.0
        %3178 = vmatpush1.msra.mxu0 0.0
        %3179 = vmatprep.subr.mxu0 0.0
        %3180 = vmatpush1.msra.mxu0 0.0
        %3181 = vmatprep.subr.mxu0 0.0
        %3182 = vmatpush1.msra.mxu0 0.0
        %3183 = vmatprep.mubr.f32.mxu0 0.0
        %v3184 = vand.u32 %v2939, 4294901760
        %v3185 = vsub.f32 %v2939, %v3184
        %3186 = vmatmul.mubr.f32.gmra.mrb[0].mxu0 %v3185
        %v3187 = vpop.f32.mrb[0].mxu0
        %v3188 = vadd.f32 %v3108, %v3187
        %v3189 = vpop.f32.mrb[0].mxu0
        %3190 = vdwg.mxu0
        %3191 = vmatprep.subr.mxu0 0.0
        %v3192 = vand.u32 %v2424, 4294901760
        %3193 = vmatpush1.msra.mxu0 %v3192
        %3194 = vmatprep.subr.mxu0 0.0
        %v3195 = vand.u32 %v2425, 4294901760
        %3196 = vmatpush1.msra.mxu0 %v3195
        %3197 = vmatprep.subr.mxu0 0.0
        %v3198 = vand.u32 %v2426, 4294901760
        %3199 = vmatpush1.msra.mxu0 %v3198
        %3200 = vmatprep.subr.mxu0 0.0
        %v3201 = vand.u32 %v2427, 4294901760
        %3202 = vmatpush1.msra.mxu0 %v3201
        %3203 = vmatprep.subr.mxu0 0.0
        %3204 = vmatpush1.msra.mxu0 0.0
        %3205 = vmatprep.subr.mxu0 0.0
        %3206 = vmatpush1.msra.mxu0 0.0
        %3207 = vmatprep.subr.mxu0 0.0
        %3208 = vmatpush1.msra.mxu0 0.0
        %3209 = vmatprep.subr.mxu0 0.0
        %3210 = vmatpush1.msra.mxu0 0.0
        %3211 = vmatprep.subr.mxu0 0.0
        %3212 = vmatpush1.msra.mxu0 0.0
        %3213 = vmatprep.subr.mxu0 0.0
        %3214 = vmatpush1.msra.mxu0 0.0
        %3215 = vmatprep.subr.mxu0 0.0
        %3216 = vmatpush1.msra.mxu0 0.0
        %3217 = vmatprep.subr.mxu0 0.0
        %3218 = vmatpush1.msra.mxu0 0.0
        %3219 = vmatprep.subr.mxu0 0.0
        %3220 = vmatpush1.msra.mxu0 0.0
        %3221 = vmatprep.subr.mxu0 0.0
        %3222 = vmatpush1.msra.mxu0 0.0
        %3223 = vmatprep.subr.mxu0 0.0
        %3224 = vmatpush1.msra.mxu0 0.0
        %3225 = vmatprep.subr.mxu0 0.0
        %3226 = vmatpush1.msra.mxu0 0.0
        %3227 = vmatprep.subr.mxu0 0.0
        %3228 = vmatpush1.msra.mxu0 0.0
        %3229 = vmatprep.subr.mxu0 0.0
        %3230 = vmatpush1.msra.mxu0 0.0
        %3231 = vmatprep.subr.mxu0 0.0
        %3232 = vmatpush1.msra.mxu0 0.0
        %3233 = vmatprep.subr.mxu0 0.0
        %3234 = vmatpush1.msra.mxu0 0.0
        %3235 = vmatprep.subr.mxu0 0.0
        %3236 = vmatpush1.msra.mxu0 0.0
        %3237 = vmatprep.subr.mxu0 0.0
        %3238 = vmatpush1.msra.mxu0 0.0
        %3239 = vmatprep.subr.mxu0 0.0
        %3240 = vmatpush1.msra.mxu0 0.0
        %3241 = vmatprep.subr.mxu0 0.0
        %3242 = vmatpush1.msra.mxu0 0.0
        %3243 = vmatprep.subr.mxu0 0.0
        %3244 = vmatpush1.msra.mxu0 0.0
        %3245 = vmatprep.subr.mxu0 0.0
        %3246 = vmatpush1.msra.mxu0 0.0
        %3247 = vmatprep.subr.mxu0 0.0
        %3248 = vmatpush1.msra.mxu0 0.0
        %3249 = vmatprep.subr.mxu0 0.0
        %3250 = vmatpush1.msra.mxu0 0.0
        %3251 = vmatprep.subr.mxu0 0.0
        %3252 = vmatpush1.msra.mxu0 0.0
        %3253 = vmatprep.subr.mxu0 0.0
        %3254 = vmatpush1.msra.mxu0 0.0
        %3255 = vmatprep.subr.mxu0 0.0
        %3256 = vmatpush1.msra.mxu0 0.0
        %3257 = vmatprep.subr.mxu0 0.0
        %3258 = vmatpush1.msra.mxu0 0.0
        %3259 = vmatprep.mubr.f32.mxu0 0.0
        %v3260 = vand.u32 %v2939, 4294901760
        %v3261 = vsub.f32 %v2939, %v3260
        %v3262 = vand.u32 %v3261, 4294901760
        %3263 = vmatmul.mubr.f32.gmra.mrb[0].mxu0 %v3262
        %v3264 = vpop.f32.mrb[0].mxu0
        %v3265 = vadd.f32 %v3188, %v3264
        %v3266 = vpop.f32.mrb[0].mxu0
        %3267 = vdwg.mxu0
        %3268 = vmatprep.subr.mxu0 0.0
        %v3269 = vand.u32 %v2424, 4294901760
        %v3270 = vsub.f32 %v2424, %v3269
        %v3271 = vand.u32 %v3270, 4294901760
        %3272 = vmatpush1.msra.mxu0 %v3271
        %3273 = vmatprep.subr.mxu0 0.0
        %v3274 = vand.u32 %v2425, 4294901760
        %v3275 = vsub.f32 %v2425, %v3274
        %v3276 = vand.u32 %v3275, 4294901760
        %3277 = vmatpush1.msra.mxu0 %v3276
        %3278 = vmatprep.subr.mxu0 0.0
        %v3279 = vand.u32 %v2426, 4294901760
        %v3280 = vsub.f32 %v2426, %v3279
        %v3281 = vand.u32 %v3280, 4294901760
        %3282 = vmatpush1.msra.mxu0 %v3281
        %3283 = vmatprep.subr.mxu0 0.0
        %v3284 = vand.u32 %v2427, 4294901760
        %v3285 = vsub.f32 %v2427, %v3284
        %v3286 = vand.u32 %v3285, 4294901760
        %3287 = vmatpush1.msra.mxu0 %v3286
        %3288 = vmatprep.subr.mxu0 0.0
        %3289 = vmatpush1.msra.mxu0 0.0
        %3290 = vmatprep.subr.mxu0 0.0
        %3291 = vmatpush1.msra.mxu0 0.0
        %3292 = vmatprep.subr.mxu0 0.0
        %3293 = vmatpush1.msra.mxu0 0.0
        %3294 = vmatprep.subr.mxu0 0.0
        %3295 = vmatpush1.msra.mxu0 0.0
        %3296 = vmatprep.subr.mxu0 0.0
        %3297 = vmatpush1.msra.mxu0 0.0
        %3298 = vmatprep.subr.mxu0 0.0
        %3299 = vmatpush1.msra.mxu0 0.0
        %3300 = vmatprep.subr.mxu0 0.0
        %3301 = vmatpush1.msra.mxu0 0.0
        %3302 = vmatprep.subr.mxu0 0.0
        %3303 = vmatpush1.msra.mxu0 0.0
        %3304 = vmatprep.subr.mxu0 0.0
        %3305 = vmatpush1.msra.mxu0 0.0
        %3306 = vmatprep.subr.mxu0 0.0
        %3307 = vmatpush1.msra.mxu0 0.0
        %3308 = vmatprep.subr.mxu0 0.0
        %3309 = vmatpush1.msra.mxu0 0.0
        %3310 = vmatprep.subr.mxu0 0.0
        %3311 = vmatpush1.msra.mxu0 0.0
        %3312 = vmatprep.subr.mxu0 0.0
        %3313 = vmatpush1.msra.mxu0 0.0
        %3314 = vmatprep.subr.mxu0 0.0
        %3315 = vmatpush1.msra.mxu0 0.0
        %3316 = vmatprep.subr.mxu0 0.0
        %3317 = vmatpush1.msra.mxu0 0.0
        %3318 = vmatprep.subr.mxu0 0.0
        %3319 = vmatpush1.msra.mxu0 0.0
        %3320 = vmatprep.subr.mxu0 0.0
        %3321 = vmatpush1.msra.mxu0 0.0
        %3322 = vmatprep.subr.mxu0 0.0
        %3323 = vmatpush1.msra.mxu0 0.0
        %3324 = vmatprep.subr.mxu0 0.0
        %3325 = vmatpush1.msra.mxu0 0.0
        %3326 = vmatprep.subr.mxu0 0.0
        %3327 = vmatpush1.msra.mxu0 0.0
        %3328 = vmatprep.subr.mxu0 0.0
        %3329 = vmatpush1.msra.mxu0 0.0
        %3330 = vmatprep.subr.mxu0 0.0
        %3331 = vmatpush1.msra.mxu0 0.0
        %3332 = vmatprep.subr.mxu0 0.0
        %3333 = vmatpush1.msra.mxu0 0.0
        %3334 = vmatprep.subr.mxu0 0.0
        %3335 = vmatpush1.msra.mxu0 0.0
        %3336 = vmatprep.subr.mxu0 0.0
        %3337 = vmatpush1.msra.mxu0 0.0
        %3338 = vmatprep.subr.mxu0 0.0
        %3339 = vmatpush1.msra.mxu0 0.0
        %3340 = vmatprep.subr.mxu0 0.0
        %3341 = vmatpush1.msra.mxu0 0.0
        %3342 = vmatprep.subr.mxu0 0.0
        %3343 = vmatpush1.msra.mxu0 0.0
        %3344 = vmatprep.mubr.f32.mxu0 0.0
        %v3345 = vand.u32 %v2939, 4294901760
        %3346 = vmatmul.mubr.f32.gmra.mrb[0].mxu0 %v3345
        %v3347 = vpop.f32.mrb[0].mxu0
        %v3348 = vadd.f32 %v3265, %v3347
        %v3349 = vpop.f32.mrb[0].mxu0
        %3350 = vdwg.mxu0
        %3351 = vmatprep.subr.mxu0 0.0
        %v3352 = vand.u32 %v2424, 4294901760
        %3353 = vmatpush1.msra.mxu0 %v3352
        %3354 = vmatprep.subr.mxu0 0.0
        %v3355 = vand.u32 %v2425, 4294901760
        %3356 = vmatpush1.msra.mxu0 %v3355
        %3357 = vmatprep.subr.mxu0 0.0
        %v3358 = vand.u32 %v2426, 4294901760
        %3359 = vmatpush1.msra.mxu0 %v3358
        %3360 = vmatprep.subr.mxu0 0.0
        %v3361 = vand.u32 %v2427, 4294901760
        %3362 = vmatpush1.msra.mxu0 %v3361
        %3363 = vmatprep.subr.mxu0 0.0
        %3364 = vmatpush1.msra.mxu0 0.0
        %3365 = vmatprep.subr.mxu0 0.0
        %3366 = vmatpush1.msra.mxu0 0.0
        %3367 = vmatprep.subr.mxu0 0.0
        %3368 = vmatpush1.msra.mxu0 0.0
        %3369 = vmatprep.subr.mxu0 0.0
        %3370 = vmatpush1.msra.mxu0 0.0
        %3371 = vmatprep.subr.mxu0 0.0
        %3372 = vmatpush1.msra.mxu0 0.0
        %3373 = vmatprep.subr.mxu0 0.0
        %3374 = vmatpush1.msra.mxu0 0.0
        %3375 = vmatprep.subr.mxu0 0.0
        %3376 = vmatpush1.msra.mxu0 0.0
        %3377 = vmatprep.subr.mxu0 0.0
        %3378 = vmatpush1.msra.mxu0 0.0
        %3379 = vmatprep.subr.mxu0 0.0
        %3380 = vmatpush1.msra.mxu0 0.0
        %3381 = vmatprep.subr.mxu0 0.0
        %3382 = vmatpush1.msra.mxu0 0.0
        %3383 = vmatprep.subr.mxu0 0.0
        %3384 = vmatpush1.msra.mxu0 0.0
        %3385 = vmatprep.subr.mxu0 0.0
        %3386 = vmatpush1.msra.mxu0 0.0
        %3387 = vmatprep.subr.mxu0 0.0
        %3388 = vmatpush1.msra.mxu0 0.0
        %3389 = vmatprep.subr.mxu0 0.0
        %3390 = vmatpush1.msra.mxu0 0.0
        %3391 = vmatprep.subr.mxu0 0.0
        %3392 = vmatpush1.msra.mxu0 0.0
        %3393 = vmatprep.subr.mxu0 0.0
        %3394 = vmatpush1.msra.mxu0 0.0
        %3395 = vmatprep.subr.mxu0 0.0
        %3396 = vmatpush1.msra.mxu0 0.0
        %3397 = vmatprep.subr.mxu0 0.0
        %3398 = vmatpush1.msra.mxu0 0.0
        %3399 = vmatprep.subr.mxu0 0.0
        %3400 = vmatpush1.msra.mxu0 0.0
        %3401 = vmatprep.subr.mxu0 0.0
        %3402 = vmatpush1.msra.mxu0 0.0
        %3403 = vmatprep.subr.mxu0 0.0
        %3404 = vmatpush1.msra.mxu0 0.0
        %3405 = vmatprep.subr.mxu0 0.0
        %3406 = vmatpush1.msra.mxu0 0.0
        %3407 = vmatprep.subr.mxu0 0.0
        %3408 = vmatpush1.msra.mxu0 0.0
        %3409 = vmatprep.subr.mxu0 0.0
        %3410 = vmatpush1.msra.mxu0 0.0
        %3411 = vmatprep.subr.mxu0 0.0
        %3412 = vmatpush1.msra.mxu0 0.0
        %3413 = vmatprep.subr.mxu0 0.0
        %3414 = vmatpush1.msra.mxu0 0.0
        %3415 = vmatprep.subr.mxu0 0.0
        %3416 = vmatpush1.msra.mxu0 0.0
        %3417 = vmatprep.subr.mxu0 0.0
        %3418 = vmatpush1.msra.mxu0 0.0
        %3419 = vmatprep.mubr.f32.mxu0 0.0
        %v3420 = vand.u32 %v2939, 4294901760
        %3421 = vmatmul.mubr.f32.gmra.mrb[0].mxu0 %v3420
        %v3422 = vpop.f32.mrb[0].mxu0
        %v3423 = vadd.f32 %v3348, %v3422
        %v3424 = vpop.f32.mrb[0].mxu0
        %3425 = vdwg.mxu0
        %v3426 = vadd.f32 %v2421, %v3423
        %v3427 = vtanh.pop %v3426
        %v3428 = vmul.f32 %v3427, 0.5
        %v3429 = vadd.f32 %v3428, 0.5
        %v3430 = vmul.f32 %v3429, %v2927
        %3432 = vrot.lane.b32.xlu0 %v3427, 64
        %v3433 = vpop.permute.xlu0 %3432
        %v3435 = vmul.f32 %v3429, %v3433
        %3437 = vrot.lane.b32.xlu0 %v3435, 32
        %v3438 = vpop.permute.xlu0 %3437
        %v3440 = vadd.f32 %v3430, %v3438
        %v3441 = vtanh.pop %v3440
        %3443 = vrot.lane.b32.xlu0 %v3441, 64
        %v3444 = vpop.permute.xlu0 %3443
        %v3446 = vmul.f32 %v3429, %v3444
        %3448 = vrot.lane.b32.xlu0 %v3446, 32
        %v3449 = vpop.permute.xlu0 %3448
        %3451 = vst.msk [vmem:[#allocation2 + $0x8] sm:$0xff] %vm850, %v3449
        %v3452 = vld [vmem:[#allocation2] sm:$0xff]
        %v3453 = vld [vmem:[#allocation2 + $0x8] sm:$0xff]
        %s3454 = scalar_lea.vmem [#allocation6], 128
        %v3455 = vld [vmem:[%s3454] sm:$0xff]
        %v3456 = vld [vmem:[%s3454 + $0x8] sm:$0xff]
        %v3457 = vld [vmem:[%s3454 + $0x10] sm:$0xff]
        %v3458 = vld [vmem:[%s3454 + $0x18] sm:$0xff]
        %v3459 = vld [vmem:[#allocation8 + $0x2] sm:$0x1]
        %v3460 = vlaneseq
        %v3461 = vshrl.u32 %v3460, 7
        %v3462 = vsub.s32 0, %v3461
        %v3463 = vrot.slane %v3459, %v3462
        %v3465 = vsel %vm850, %v3452, 0
        %v3468 = vsel %vm850, %v3453, 0
        %3470 = vmatprep.subr.mxu0 0.0
        %v3471 = vand.u32 %v3455, 4294901760
        %3472 = vmatpush1.msra.mxu0 %v3471
        %3473 = vmatprep.subr.mxu0 0.0
        %v3474 = vand.u32 %v3456, 4294901760
        %3475 = vmatpush1.msra.mxu0 %v3474
        %3476 = vmatprep.subr.mxu0 0.0
        %v3477 = vand.u32 %v3457, 4294901760
        %3478 = vmatpush1.msra.mxu0 %v3477
        %3479 = vmatprep.subr.mxu0 0.0
        %v3480 = vand.u32 %v3458, 4294901760
        %3481 = vmatpush1.msra.mxu0 %v3480
        %3482 = vmatprep.subr.mxu0 0.0
        %3483 = vmatpush1.msra.mxu0 0.0
        %3484 = vmatprep.subr.mxu0 0.0
        %3485 = vmatpush1.msra.mxu0 0.0
        %3486 = vmatprep.subr.mxu0 0.0
        %3487 = vmatpush1.msra.mxu0 0.0
        %3488 = vmatprep.subr.mxu0 0.0
        %3489 = vmatpush1.msra.mxu0 0.0
        %3490 = vmatprep.subr.mxu0 0.0
        %3491 = vmatpush1.msra.mxu0 0.0
        %3492 = vmatprep.subr.mxu0 0.0
        %3493 = vmatpush1.msra.mxu0 0.0
        %3494 = vmatprep.subr.mxu0 0.0
        %3495 = vmatpush1.msra.mxu0 0.0
        %3496 = vmatprep.subr.mxu0 0.0
        %3497 = vmatpush1.msra.mxu0 0.0
        %3498 = vmatprep.subr.mxu0 0.0
        %3499 = vmatpush1.msra.mxu0 0.0
        %3500 = vmatprep.subr.mxu0 0.0
        %3501 = vmatpush1.msra.mxu0 0.0
        %3502 = vmatprep.subr.mxu0 0.0
        %3503 = vmatpush1.msra.mxu0 0.0
        %3504 = vmatprep.subr.mxu0 0.0
        %3505 = vmatpush1.msra.mxu0 0.0
        %3506 = vmatprep.subr.mxu0 0.0
        %3507 = vmatpush1.msra.mxu0 0.0
        %3508 = vmatprep.subr.mxu0 0.0
        %3509 = vmatpush1.msra.mxu0 0.0
        %3510 = vmatprep.subr.mxu0 0.0
        %3511 = vmatpush1.msra.mxu0 0.0
        %3512 = vmatprep.subr.mxu0 0.0
        %3513 = vmatpush1.msra.mxu0 0.0
        %3514 = vmatprep.subr.mxu0 0.0
        %3515 = vmatpush1.msra.mxu0 0.0
        %3516 = vmatprep.subr.mxu0 0.0
        %3517 = vmatpush1.msra.mxu0 0.0
        %3518 = vmatprep.subr.mxu0 0.0
        %3519 = vmatpush1.msra.mxu0 0.0
        %3520 = vmatprep.subr.mxu0 0.0
        %3521 = vmatpush1.msra.mxu0 0.0
        %3522 = vmatprep.subr.mxu0 0.0
        %3523 = vmatpush1.msra.mxu0 0.0
        %3524 = vmatprep.subr.mxu0 0.0
        %3525 = vmatpush1.msra.mxu0 0.0
        %3526 = vmatprep.subr.mxu0 0.0
        %3527 = vmatpush1.msra.mxu0 0.0
        %3528 = vmatprep.subr.mxu0 0.0
        %3529 = vmatpush1.msra.mxu0 0.0
        %3530 = vmatprep.subr.mxu0 0.0
        %3531 = vmatpush1.msra.mxu0 0.0
        %3532 = vmatprep.subr.mxu0 0.0
        %3533 = vmatpush1.msra.mxu0 0.0
        %3534 = vmatprep.subr.mxu0 0.0
        %3535 = vmatpush1.msra.mxu0 0.0
        %3536 = vmatprep.subr.mxu0 0.0
        %3537 = vmatpush1.msra.mxu0 0.0
        %3538 = vmatprep.mubr.f32.mxu0 0.0
        %v3539 = vand.u32 %v3465, 4294901760
        %v3540 = vsub.f32 %v3465, %v3539
        %v3541 = vand.u32 %v3540, 4294901760
        %v3542 = vsub.f32 %v3540, %v3541
        %v3543 = vand.u32 %v3542, 4294901760
        %3544 = vmatmul.mubr.f32.gmra.mrb[0].mxu0 %v3543
        %v3545 = vpop.f32.mrb[0].mxu0
        %v3546 = vadd.f32 %v3463, %v3545
        %v3547 = vpop.f32.mrb[0].mxu0
        %3548 = vmatprep.mubr.f32.mxu0 0.0
        %v3549 = vand.u32 %v3468, 4294901760
        %v3550 = vsub.f32 %v3468, %v3549
        %v3551 = vand.u32 %v3550, 4294901760
        %v3552 = vsub.f32 %v3550, %v3551
        %v3553 = vand.u32 %v3552, 4294901760
        %3554 = vmatmul.mubr.f32.gmra.mrb[0].mxu0 %v3553
        %v3555 = vpop.f32.mrb[0].mxu0
        %v3556 = vadd.f32 %v3463, %v3555
        %v3557 = vpop.f32.mrb[0].mxu0
        %3558 = vdwg.mxu0
        %3559 = vmatprep.subr.mxu0 0.0
        %v3560 = vand.u32 %v3455, 4294901760
        %v3561 = vsub.f32 %v3455, %v3560
        %v3562 = vand.u32 %v3561, 4294901760
        %v3563 = vsub.f32 %v3561, %v3562
        %v3564 = vand.u32 %v3563, 4294901760
        %3565 = vmatpush1.msra.mxu0 %v3564
        %3566 = vmatprep.subr.mxu0 0.0
        %v3567 = vand.u32 %v3456, 4294901760
        %v3568 = vsub.f32 %v3456, %v3567
        %v3569 = vand.u32 %v3568, 4294901760
        %v3570 = vsub.f32 %v3568, %v3569
        %v3571 = vand.u32 %v3570, 4294901760
        %3572 = vmatpush1.msra.mxu0 %v3571
        %3573 = vmatprep.subr.mxu0 0.0
        %v3574 = vand.u32 %v3457, 4294901760
        %v3575 = vsub.f32 %v3457, %v3574
        %v3576 = vand.u32 %v3575, 4294901760
        %v3577 = vsub.f32 %v3575, %v3576
        %v3578 = vand.u32 %v3577, 4294901760
        %3579 = vmatpush1.msra.mxu0 %v3578
        %3580 = vmatprep.subr.mxu0 0.0
        %v3581 = vand.u32 %v3458, 4294901760
        %v3582 = vsub.f32 %v3458, %v3581
        %v3583 = vand.u32 %v3582, 4294901760
        %v3584 = vsub.f32 %v3582, %v3583
        %v3585 = vand.u32 %v3584, 4294901760
        %3586 = vmatpush1.msra.mxu0 %v3585
        %3587 = vmatprep.subr.mxu0 0.0
        %3588 = vmatpush1.msra.mxu0 0.0
        %3589 = vmatprep.subr.mxu0 0.0
        %3590 = vmatpush1.msra.mxu0 0.0
        %3591 = vmatprep.subr.mxu0 0.0
        %3592 = vmatpush1.msra.mxu0 0.0
        %3593 = vmatprep.subr.mxu0 0.0
        %3594 = vmatpush1.msra.mxu0 0.0
        %3595 = vmatprep.subr.mxu0 0.0
        %3596 = vmatpush1.msra.mxu0 0.0
        %3597 = vmatprep.subr.mxu0 0.0
        %3598 = vmatpush1.msra.mxu0 0.0
        %3599 = vmatprep.subr.mxu0 0.0
        %3600 = vmatpush1.msra.mxu0 0.0
        %3601 = vmatprep.subr.mxu0 0.0
        %3602 = vmatpush1.msra.mxu0 0.0
        %3603 = vmatprep.subr.mxu0 0.0
        %3604 = vmatpush1.msra.mxu0 0.0
        %3605 = vmatprep.subr.mxu0 0.0
        %3606 = vmatpush1.msra.mxu0 0.0
        %3607 = vmatprep.subr.mxu0 0.0
        %3608 = vmatpush1.msra.mxu0 0.0
        %3609 = vmatprep.subr.mxu0 0.0
        %3610 = vmatpush1.msra.mxu0 0.0
        %3611 = vmatprep.subr.mxu0 0.0
        %3612 = vmatpush1.msra.mxu0 0.0
        %3613 = vmatprep.subr.mxu0 0.0
        %3614 = vmatpush1.msra.mxu0 0.0
        %3615 = vmatprep.subr.mxu0 0.0
        %3616 = vmatpush1.msra.mxu0 0.0
        %3617 = vmatprep.subr.mxu0 0.0
        %3618 = vmatpush1.msra.mxu0 0.0
        %3619 = vmatprep.subr.mxu0 0.0
        %3620 = vmatpush1.msra.mxu0 0.0
        %3621 = vmatprep.subr.mxu0 0.0
        %3622 = vmatpush1.msra.mxu0 0.0
        %3623 = vmatprep.subr.mxu0 0.0
        %3624 = vmatpush1.msra.mxu0 0.0
        %3625 = vmatprep.subr.mxu0 0.0
        %3626 = vmatpush1.msra.mxu0 0.0
        %3627 = vmatprep.subr.mxu0 0.0
        %3628 = vmatpush1.msra.mxu0 0.0
        %3629 = vmatprep.subr.mxu0 0.0
        %3630 = vmatpush1.msra.mxu0 0.0
        %3631 = vmatprep.subr.mxu0 0.0
        %3632 = vmatpush1.msra.mxu0 0.0
        %3633 = vmatprep.subr.mxu0 0.0
        %3634 = vmatpush1.msra.mxu0 0.0
        %3635 = vmatprep.subr.mxu0 0.0
        %3636 = vmatpush1.msra.mxu0 0.0
        %3637 = vmatprep.subr.mxu0 0.0
        %3638 = vmatpush1.msra.mxu0 0.0
        %3639 = vmatprep.subr.mxu0 0.0
        %3640 = vmatpush1.msra.mxu0 0.0
        %3641 = vmatprep.subr.mxu0 0.0
        %3642 = vmatpush1.msra.mxu0 0.0
        %3643 = vmatprep.mubr.f32.mxu0 0.0
        %v3644 = vand.u32 %v3465, 4294901760
        %3645 = vmatmul.mubr.f32.gmra.mrb[0].mxu0 %v3644
        %v3646 = vpop.f32.mrb[0].mxu0
        %v3647 = vadd.f32 %v3546, %v3646
        %v3648 = vpop.f32.mrb[0].mxu0
        %3649 = vmatprep.mubr.f32.mxu0 0.0
        %v3650 = vand.u32 %v3468, 4294901760
        %3651 = vmatmul.mubr.f32.gmra.mrb[0].mxu0 %v3650
        %v3652 = vpop.f32.mrb[0].mxu0
        %v3653 = vadd.f32 %v3556, %v3652
        %v3654 = vpop.f32.mrb[0].mxu0
        %3655 = vdwg.mxu0
        %3656 = vmatprep.subr.mxu0 0.0
        %v3657 = vand.u32 %v3455, 4294901760
        %v3658 = vsub.f32 %v3455, %v3657
        %3659 = vmatpush1.msra.mxu0 %v3658
        %3660 = vmatprep.subr.mxu0 0.0
        %v3661 = vand.u32 %v3456, 4294901760
        %v3662 = vsub.f32 %v3456, %v3661
        %3663 = vmatpush1.msra.mxu0 %v3662
        %3664 = vmatprep.subr.mxu0 0.0
        %v3665 = vand.u32 %v3457, 4294901760
        %v3666 = vsub.f32 %v3457, %v3665
        %3667 = vmatpush1.msra.mxu0 %v3666
        %3668 = vmatprep.subr.mxu0 0.0
        %v3669 = vand.u32 %v3458, 4294901760
        %v3670 = vsub.f32 %v3458, %v3669
        %3671 = vmatpush1.msra.mxu0 %v3670
        %3672 = vmatprep.subr.mxu0 0.0
        %3673 = vmatpush1.msra.mxu0 0.0
        %3674 = vmatprep.subr.mxu0 0.0
        %3675 = vmatpush1.msra.mxu0 0.0
        %3676 = vmatprep.subr.mxu0 0.0
        %3677 = vmatpush1.msra.mxu0 0.0
        %3678 = vmatprep.subr.mxu0 0.0
        %3679 = vmatpush1.msra.mxu0 0.0
        %3680 = vmatprep.subr.mxu0 0.0
        %3681 = vmatpush1.msra.mxu0 0.0
        %3682 = vmatprep.subr.mxu0 0.0
        %3683 = vmatpush1.msra.mxu0 0.0
        %3684 = vmatprep.subr.mxu0 0.0
        %3685 = vmatpush1.msra.mxu0 0.0
        %3686 = vmatprep.subr.mxu0 0.0
        %3687 = vmatpush1.msra.mxu0 0.0
        %3688 = vmatprep.subr.mxu0 0.0
        %3689 = vmatpush1.msra.mxu0 0.0
        %3690 = vmatprep.subr.mxu0 0.0
        %3691 = vmatpush1.msra.mxu0 0.0
        %3692 = vmatprep.subr.mxu0 0.0
        %3693 = vmatpush1.msra.mxu0 0.0
        %3694 = vmatprep.subr.mxu0 0.0
        %3695 = vmatpush1.msra.mxu0 0.0
        %3696 = vmatprep.subr.mxu0 0.0
        %3697 = vmatpush1.msra.mxu0 0.0
        %3698 = vmatprep.subr.mxu0 0.0
        %3699 = vmatpush1.msra.mxu0 0.0
        %3700 = vmatprep.subr.mxu0 0.0
        %3701 = vmatpush1.msra.mxu0 0.0
        %3702 = vmatprep.subr.mxu0 0.0
        %3703 = vmatpush1.msra.mxu0 0.0
        %3704 = vmatprep.subr.mxu0 0.0
        %3705 = vmatpush1.msra.mxu0 0.0
        %3706 = vmatprep.subr.mxu0 0.0
        %3707 = vmatpush1.msra.mxu0 0.0
        %3708 = vmatprep.subr.mxu0 0.0
        %3709 = vmatpush1.msra.mxu0 0.0
        %3710 = vmatprep.subr.mxu0 0.0
        %3711 = vmatpush1.msra.mxu0 0.0
        %3712 = vmatprep.subr.mxu0 0.0
        %3713 = vmatpush1.msra.mxu0 0.0
        %3714 = vmatprep.subr.mxu0 0.0
        %3715 = vmatpush1.msra.mxu0 0.0
        %3716 = vmatprep.subr.mxu0 0.0
        %3717 = vmatpush1.msra.mxu0 0.0
        %3718 = vmatprep.subr.mxu0 0.0
        %3719 = vmatpush1.msra.mxu0 0.0
        %3720 = vmatprep.subr.mxu0 0.0
        %3721 = vmatpush1.msra.mxu0 0.0
        %3722 = vmatprep.subr.mxu0 0.0
        %3723 = vmatpush1.msra.mxu0 0.0
        %3724 = vmatprep.subr.mxu0 0.0
        %3725 = vmatpush1.msra.mxu0 0.0
        %3726 = vmatprep.subr.mxu0 0.0
        %3727 = vmatpush1.msra.mxu0 0.0
        %3728 = vmatprep.mubr.f32.mxu0 0.0
        %v3729 = vand.u32 %v3465, 4294901760
        %v3730 = vsub.f32 %v3465, %v3729
        %3731 = vmatmul.mubr.f32.gmra.mrb[0].mxu0 %v3730
        %v3732 = vpop.f32.mrb[0].mxu0
        %v3733 = vadd.f32 %v3647, %v3732
        %v3734 = vpop.f32.mrb[0].mxu0
        %3735 = vmatprep.mubr.f32.mxu0 0.0
        %v3736 = vand.u32 %v3468, 4294901760
        %v3737 = vsub.f32 %v3468, %v3736
        %3738 = vmatmul.mubr.f32.gmra.mrb[0].mxu0 %v3737
        %v3739 = vpop.f32.mrb[0].mxu0
        %v3740 = vadd.f32 %v3653, %v3739
        %v3741 = vpop.f32.mrb[0].mxu0
        %3742 = vdwg.mxu0
        %3743 = vmatprep.subr.mxu0 0.0
        %v3744 = vand.u32 %v3455, 4294901760
        %3745 = vmatpush1.msra.mxu0 %v3744
        %3746 = vmatprep.subr.mxu0 0.0
        %v3747 = vand.u32 %v3456, 4294901760
        %3748 = vmatpush1.msra.mxu0 %v3747
        %3749 = vmatprep.subr.mxu0 0.0
        %v3750 = vand.u32 %v3457, 4294901760
        %3751 = vmatpush1.msra.mxu0 %v3750
        %3752 = vmatprep.subr.mxu0 0.0
        %v3753 = vand.u32 %v3458, 4294901760
        %3754 = vmatpush1.msra.mxu0 %v3753
        %3755 = vmatprep.subr.mxu0 0.0
        %3756 = vmatpush1.msra.mxu0 0.0
        %3757 = vmatprep.subr.mxu0 0.0
        %3758 = vmatpush1.msra.mxu0 0.0
        %3759 = vmatprep.subr.mxu0 0.0
        %3760 = vmatpush1.msra.mxu0 0.0
        %3761 = vmatprep.subr.mxu0 0.0
        %3762 = vmatpush1.msra.mxu0 0.0
        %3763 = vmatprep.subr.mxu0 0.0
        %3764 = vmatpush1.msra.mxu0 0.0
        %3765 = vmatprep.subr.mxu0 0.0
        %3766 = vmatpush1.msra.mxu0 0.0
        %3767 = vmatprep.subr.mxu0 0.0
        %3768 = vmatpush1.msra.mxu0 0.0
        %3769 = vmatprep.subr.mxu0 0.0
        %3770 = vmatpush1.msra.mxu0 0.0
        %3771 = vmatprep.subr.mxu0 0.0
        %3772 = vmatpush1.msra.mxu0 0.0
        %3773 = vmatprep.subr.mxu0 0.0
        %3774 = vmatpush1.msra.mxu0 0.0
        %3775 = vmatprep.subr.mxu0 0.0
        %3776 = vmatpush1.msra.mxu0 0.0
        %3777 = vmatprep.subr.mxu0 0.0
        %3778 = vmatpush1.msra.mxu0 0.0
        %3779 = vmatprep.subr.mxu0 0.0
        %3780 = vmatpush1.msra.mxu0 0.0
        %3781 = vmatprep.subr.mxu0 0.0
        %3782 = vmatpush1.msra.mxu0 0.0
        %3783 = vmatprep.subr.mxu0 0.0
        %3784 = vmatpush1.msra.mxu0 0.0
        %3785 = vmatprep.subr.mxu0 0.0
        %3786 = vmatpush1.msra.mxu0 0.0
        %3787 = vmatprep.subr.mxu0 0.0
        %3788 = vmatpush1.msra.mxu0 0.0
        %3789 = vmatprep.subr.mxu0 0.0
        %3790 = vmatpush1.msra.mxu0 0.0
        %3791 = vmatprep.subr.mxu0 0.0
        %3792 = vmatpush1.msra.mxu0 0.0
        %3793 = vmatprep.subr.mxu0 0.0
        %3794 = vmatpush1.msra.mxu0 0.0
        %3795 = vmatprep.subr.mxu0 0.0
        %3796 = vmatpush1.msra.mxu0 0.0
        %3797 = vmatprep.subr.mxu0 0.0
        %3798 = vmatpush1.msra.mxu0 0.0
        %3799 = vmatprep.subr.mxu0 0.0
        %3800 = vmatpush1.msra.mxu0 0.0
        %3801 = vmatprep.subr.mxu0 0.0
        %3802 = vmatpush1.msra.mxu0 0.0
        %3803 = vmatprep.subr.mxu0 0.0
        %3804 = vmatpush1.msra.mxu0 0.0
        %3805 = vmatprep.subr.mxu0 0.0
        %3806 = vmatpush1.msra.mxu0 0.0
        %3807 = vmatprep.subr.mxu0 0.0
        %3808 = vmatpush1.msra.mxu0 0.0
        %3809 = vmatprep.subr.mxu0 0.0
        %3810 = vmatpush1.msra.mxu0 0.0
        %3811 = vmatprep.mubr.f32.mxu0 0.0
        %v3812 = vand.u32 %v3465, 4294901760
        %v3813 = vsub.f32 %v3465, %v3812
        %v3814 = vand.u32 %v3813, 4294901760
        %3815 = vmatmul.mubr.f32.gmra.mrb[0].mxu0 %v3814
        %v3816 = vpop.f32.mrb[0].mxu0
        %v3817 = vadd.f32 %v3733, %v3816
        %v3818 = vpop.f32.mrb[0].mxu0
        %3819 = vmatprep.mubr.f32.mxu0 0.0
        %v3820 = vand.u32 %v3468, 4294901760
        %v3821 = vsub.f32 %v3468, %v3820
        %v3822 = vand.u32 %v3821, 4294901760
        %3823 = vmatmul.mubr.f32.gmra.mrb[0].mxu0 %v3822
        %v3824 = vpop.f32.mrb[0].mxu0
        %v3825 = vadd.f32 %v3740, %v3824
        %v3826 = vpop.f32.mrb[0].mxu0
        %3827 = vdwg.mxu0
        %3828 = vmatprep.subr.mxu0 0.0
        %v3829 = vand.u32 %v3455, 4294901760
        %v3830 = vsub.f32 %v3455, %v3829
        %v3831 = vand.u32 %v3830, 4294901760
        %3832 = vmatpush1.msra.mxu0 %v3831
        %3833 = vmatprep.subr.mxu0 0.0
        %v3834 = vand.u32 %v3456, 4294901760
        %v3835 = vsub.f32 %v3456, %v3834
        %v3836 = vand.u32 %v3835, 4294901760
        %3837 = vmatpush1.msra.mxu0 %v3836
        %3838 = vmatprep.subr.mxu0 0.0
        %v3839 = vand.u32 %v3457, 4294901760
        %v3840 = vsub.f32 %v3457, %v3839
        %v3841 = vand.u32 %v3840, 4294901760
        %3842 = vmatpush1.msra.mxu0 %v3841
        %3843 = vmatprep.subr.mxu0 0.0
        %v3844 = vand.u32 %v3458, 4294901760
        %v3845 = vsub.f32 %v3458, %v3844
        %v3846 = vand.u32 %v3845, 4294901760
        %3847 = vmatpush1.msra.mxu0 %v3846
        %3848 = vmatprep.subr.mxu0 0.0
        %3849 = vmatpush1.msra.mxu0 0.0
        %3850 = vmatprep.subr.mxu0 0.0
        %3851 = vmatpush1.msra.mxu0 0.0
        %3852 = vmatprep.subr.mxu0 0.0
        %3853 = vmatpush1.msra.mxu0 0.0
        %3854 = vmatprep.subr.mxu0 0.0
        %3855 = vmatpush1.msra.mxu0 0.0
        %3856 = vmatprep.subr.mxu0 0.0
        %3857 = vmatpush1.msra.mxu0 0.0
        %3858 = vmatprep.subr.mxu0 0.0
        %3859 = vmatpush1.msra.mxu0 0.0
        %3860 = vmatprep.subr.mxu0 0.0
        %3861 = vmatpush1.msra.mxu0 0.0
        %3862 = vmatprep.subr.mxu0 0.0
        %3863 = vmatpush1.msra.mxu0 0.0
        %3864 = vmatprep.subr.mxu0 0.0
        %3865 = vmatpush1.msra.mxu0 0.0
        %3866 = vmatprep.subr.mxu0 0.0
        %3867 = vmatpush1.msra.mxu0 0.0
        %3868 = vmatprep.subr.mxu0 0.0
        %3869 = vmatpush1.msra.mxu0 0.0
        %3870 = vmatprep.subr.mxu0 0.0
        %3871 = vmatpush1.msra.mxu0 0.0
        %3872 = vmatprep.subr.mxu0 0.0
        %3873 = vmatpush1.msra.mxu0 0.0
        %3874 = vmatprep.subr.mxu0 0.0
        %3875 = vmatpush1.msra.mxu0 0.0
        %3876 = vmatprep.subr.mxu0 0.0
        %3877 = vmatpush1.msra.mxu0 0.0
        %3878 = vmatprep.subr.mxu0 0.0
        %3879 = vmatpush1.msra.mxu0 0.0
        %3880 = vmatprep.subr.mxu0 0.0
        %3881 = vmatpush1.msra.mxu0 0.0
        %3882 = vmatprep.subr.mxu0 0.0
        %3883 = vmatpush1.msra.mxu0 0.0
        %3884 = vmatprep.subr.mxu0 0.0
        %3885 = vmatpush1.msra.mxu0 0.0
        %3886 = vmatprep.subr.mxu0 0.0
        %3887 = vmatpush1.msra.mxu0 0.0
        %3888 = vmatprep.subr.mxu0 0.0
        %3889 = vmatpush1.msra.mxu0 0.0
        %3890 = vmatprep.subr.mxu0 0.0
        %3891 = vmatpush1.msra.mxu0 0.0
        %3892 = vmatprep.subr.mxu0 0.0
        %3893 = vmatpush1.msra.mxu0 0.0
        %3894 = vmatprep.subr.mxu0 0.0
        %3895 = vmatpush1.msra.mxu0 0.0
        %3896 = vmatprep.subr.mxu0 0.0
        %3897 = vmatpush1.msra.mxu0 0.0
        %3898 = vmatprep.subr.mxu0 0.0
        %3899 = vmatpush1.msra.mxu0 0.0
        %3900 = vmatprep.subr.mxu0 0.0
        %3901 = vmatpush1.msra.mxu0 0.0
        %3902 = vmatprep.subr.mxu0 0.0
        %3903 = vmatpush1.msra.mxu0 0.0
        %3904 = vmatprep.mubr.f32.mxu0 0.0
        %v3905 = vand.u32 %v3465, 4294901760
        %3906 = vmatmul.mubr.f32.gmra.mrb[0].mxu0 %v3905
        %v3907 = vpop.f32.mrb[0].mxu0
        %v3908 = vadd.f32 %v3817, %v3907
        %v3909 = vpop.f32.mrb[0].mxu0
        %3910 = vmatprep.mubr.f32.mxu0 0.0
        %v3911 = vand.u32 %v3468, 4294901760
        %3912 = vmatmul.mubr.f32.gmra.mrb[0].mxu0 %v3911
        %v3913 = vpop.f32.mrb[0].mxu0
        %v3914 = vadd.f32 %v3825, %v3913
        %v3915 = vpop.f32.mrb[0].mxu0
        %3916 = vdwg.mxu0
        %3917 = vmatprep.subr.mxu0 0.0
        %v3918 = vand.u32 %v3455, 4294901760
        %3919 = vmatpush1.msra.mxu0 %v3918
        %3920 = vmatprep.subr.mxu0 0.0
        %v3921 = vand.u32 %v3456, 4294901760
        %3922 = vmatpush1.msra.mxu0 %v3921
        %3923 = vmatprep.subr.mxu0 0.0
        %v3924 = vand.u32 %v3457, 4294901760
        %3925 = vmatpush1.msra.mxu0 %v3924
        %3926 = vmatprep.subr.mxu0 0.0
        %v3927 = vand.u32 %v3458, 4294901760
        %3928 = vmatpush1.msra.mxu0 %v3927
        %3929 = vmatprep.subr.mxu0 0.0
        %3930 = vmatpush1.msra.mxu0 0.0
        %3931 = vmatprep.subr.mxu0 0.0
        %3932 = vmatpush1.msra.mxu0 0.0
        %3933 = vmatprep.subr.mxu0 0.0
        %3934 = vmatpush1.msra.mxu0 0.0
        %3935 = vmatprep.subr.mxu0 0.0
        %3936 = vmatpush1.msra.mxu0 0.0
        %3937 = vmatprep.subr.mxu0 0.0
        %3938 = vmatpush1.msra.mxu0 0.0
        %3939 = vmatprep.subr.mxu0 0.0
        %3940 = vmatpush1.msra.mxu0 0.0
        %3941 = vmatprep.subr.mxu0 0.0
        %3942 = vmatpush1.msra.mxu0 0.0
        %3943 = vmatprep.subr.mxu0 0.0
        %3944 = vmatpush1.msra.mxu0 0.0
        %3945 = vmatprep.subr.mxu0 0.0
        %3946 = vmatpush1.msra.mxu0 0.0
        %3947 = vmatprep.subr.mxu0 0.0
        %3948 = vmatpush1.msra.mxu0 0.0
        %3949 = vmatprep.subr.mxu0 0.0
        %3950 = vmatpush1.msra.mxu0 0.0
        %3951 = vmatprep.subr.mxu0 0.0
        %3952 = vmatpush1.msra.mxu0 0.0
        %3953 = vmatprep.subr.mxu0 0.0
        %3954 = vmatpush1.msra.mxu0 0.0
        %3955 = vmatprep.subr.mxu0 0.0
        %3956 = vmatpush1.msra.mxu0 0.0
        %3957 = vmatprep.subr.mxu0 0.0
        %3958 = vmatpush1.msra.mxu0 0.0
        %3959 = vmatprep.subr.mxu0 0.0
        %3960 = vmatpush1.msra.mxu0 0.0
        %3961 = vmatprep.subr.mxu0 0.0
        %3962 = vmatpush1.msra.mxu0 0.0
        %3963 = vmatprep.subr.mxu0 0.0
        %3964 = vmatpush1.msra.mxu0 0.0
        %3965 = vmatprep.subr.mxu0 0.0
        %3966 = vmatpush1.msra.mxu0 0.0
        %3967 = vmatprep.subr.mxu0 0.0
        %3968 = vmatpush1.msra.mxu0 0.0
        %3969 = vmatprep.subr.mxu0 0.0
        %3970 = vmatpush1.msra.mxu0 0.0
        %3971 = vmatprep.subr.mxu0 0.0
        %3972 = vmatpush1.msra.mxu0 0.0
        %3973 = vmatprep.subr.mxu0 0.0
        %3974 = vmatpush1.msra.mxu0 0.0
        %3975 = vmatprep.subr.mxu0 0.0
        %3976 = vmatpush1.msra.mxu0 0.0
        %3977 = vmatprep.subr.mxu0 0.0
        %3978 = vmatpush1.msra.mxu0 0.0
        %3979 = vmatprep.subr.mxu0 0.0
        %3980 = vmatpush1.msra.mxu0 0.0
        %3981 = vmatprep.subr.mxu0 0.0
        %3982 = vmatpush1.msra.mxu0 0.0
        %3983 = vmatprep.subr.mxu0 0.0
        %3984 = vmatpush1.msra.mxu0 0.0
        %3985 = vmatprep.mubr.f32.mxu0 0.0
        %v3986 = vand.u32 %v3465, 4294901760
        %3987 = vmatmul.mubr.f32.gmra.mrb[0].mxu0 %v3986
        %v3988 = vpop.f32.mrb[0].mxu0
        %v3989 = vadd.f32 %v3908, %v3988
        %v3990 = vpop.f32.mrb[0].mxu0
        %3991 = vmatprep.mubr.f32.mxu0 0.0
        %v3992 = vand.u32 %v3468, 4294901760
        %3993 = vmatmul.mubr.f32.gmra.mrb[0].mxu0 %v3992
        %v3994 = vpop.f32.mrb[0].mxu0
        %v3995 = vadd.f32 %v3914, %v3994
        %v3996 = vpop.f32.mrb[0].mxu0
        %3997 = vdwg.mxu0
        %v3998 = vld [vmem:[%s3454 + $0x20] sm:$0xff]
        %v3999 = vld [vmem:[%s3454 + $0x28] sm:$0xff]
        %v4000 = vld [vmem:[%s3454 + $0x30] sm:$0xff]
        %v4001 = vld [vmem:[%s3454 + $0x38] sm:$0xff]
        %4002 = vmatprep.subr.mxu0 0.0
        %v4003 = vand.u32 %v3998, 4294901760
        %4004 = vmatpush1.msra.mxu0 %v4003
        %4005 = vmatprep.subr.mxu0 0.0
        %v4006 = vand.u32 %v3999, 4294901760
        %4007 = vmatpush1.msra.mxu0 %v4006
        %4008 = vmatprep.subr.mxu0 0.0
        %v4009 = vand.u32 %v4000, 4294901760
        %4010 = vmatpush1.msra.mxu0 %v4009
        %4011 = vmatprep.subr.mxu0 0.0
        %v4012 = vand.u32 %v4001, 4294901760
        %4013 = vmatpush1.msra.mxu0 %v4012
        %4014 = vmatprep.subr.mxu0 0.0
        %4015 = vmatpush1.msra.mxu0 0.0
        %4016 = vmatprep.subr.mxu0 0.0
        %4017 = vmatpush1.msra.mxu0 0.0
        %4018 = vmatprep.subr.mxu0 0.0
        %4019 = vmatpush1.msra.mxu0 0.0
        %4020 = vmatprep.subr.mxu0 0.0
        %4021 = vmatpush1.msra.mxu0 0.0
        %4022 = vmatprep.subr.mxu0 0.0
        %4023 = vmatpush1.msra.mxu0 0.0
        %4024 = vmatprep.subr.mxu0 0.0
        %4025 = vmatpush1.msra.mxu0 0.0
        %4026 = vmatprep.subr.mxu0 0.0
        %4027 = vmatpush1.msra.mxu0 0.0
        %4028 = vmatprep.subr.mxu0 0.0
        %4029 = vmatpush1.msra.mxu0 0.0
        %4030 = vmatprep.subr.mxu0 0.0
        %4031 = vmatpush1.msra.mxu0 0.0
        %4032 = vmatprep.subr.mxu0 0.0
        %4033 = vmatpush1.msra.mxu0 0.0
        %4034 = vmatprep.subr.mxu0 0.0
        %4035 = vmatpush1.msra.mxu0 0.0
        %4036 = vmatprep.subr.mxu0 0.0
        %4037 = vmatpush1.msra.mxu0 0.0
        %4038 = vmatprep.subr.mxu0 0.0
        %4039 = vmatpush1.msra.mxu0 0.0
        %4040 = vmatprep.subr.mxu0 0.0
        %4041 = vmatpush1.msra.mxu0 0.0
        %4042 = vmatprep.subr.mxu0 0.0
        %4043 = vmatpush1.msra.mxu0 0.0
        %4044 = vmatprep.subr.mxu0 0.0
        %4045 = vmatpush1.msra.mxu0 0.0
        %4046 = vmatprep.subr.mxu0 0.0
        %4047 = vmatpush1.msra.mxu0 0.0
        %4048 = vmatprep.subr.mxu0 0.0
        %4049 = vmatpush1.msra.mxu0 0.0
        %4050 = vmatprep.subr.mxu0 0.0
        %4051 = vmatpush1.msra.mxu0 0.0
        %4052 = vmatprep.subr.mxu0 0.0
        %4053 = vmatpush1.msra.mxu0 0.0
        %4054 = vmatprep.subr.mxu0 0.0
        %4055 = vmatpush1.msra.mxu0 0.0
        %4056 = vmatprep.subr.mxu0 0.0
        %4057 = vmatpush1.msra.mxu0 0.0
        %4058 = vmatprep.subr.mxu0 0.0
        %4059 = vmatpush1.msra.mxu0 0.0
        %4060 = vmatprep.subr.mxu0 0.0
        %4061 = vmatpush1.msra.mxu0 0.0
        %4062 = vmatprep.subr.mxu0 0.0
        %4063 = vmatpush1.msra.mxu0 0.0
        %4064 = vmatprep.subr.mxu0 0.0
        %4065 = vmatpush1.msra.mxu0 0.0
        %4066 = vmatprep.subr.mxu0 0.0
        %4067 = vmatpush1.msra.mxu0 0.0
        %4068 = vmatprep.subr.mxu0 0.0
        %4069 = vmatpush1.msra.mxu0 0.0
        %4070 = vmatprep.mubr.f32.mxu0 0.0
        %v4071 = vand.u32 %v852, 4294901760
        %v4072 = vsub.f32 %v852, %v4071
        %v4073 = vand.u32 %v4072, 4294901760
        %v4074 = vsub.f32 %v4072, %v4073
        %v4075 = vand.u32 %v4074, 4294901760
        %4076 = vmatmul.mubr.f32.gmra.mrb[0].mxu0 %v4075
        %v4077 = vpop.f32.mrb[0].mxu0
        %v4078 = vadd.f32 0.0, %v4077
        %v4079 = vpop.f32.mrb[0].mxu0
        %4080 = vdwg.mxu0
        %4081 = vmatprep.subr.mxu0 0.0
        %v4082 = vand.u32 %v3998, 4294901760
        %v4083 = vsub.f32 %v3998, %v4082
        %v4084 = vand.u32 %v4083, 4294901760
        %v4085 = vsub.f32 %v4083, %v4084
        %v4086 = vand.u32 %v4085, 4294901760
        %4087 = vmatpush1.msra.mxu0 %v4086
        %4088 = vmatprep.subr.mxu0 0.0
        %v4089 = vand.u32 %v3999, 4294901760
        %v4090 = vsub.f32 %v3999, %v4089
        %v4091 = vand.u32 %v4090, 4294901760
        %v4092 = vsub.f32 %v4090, %v4091
        %v4093 = vand.u32 %v4092, 4294901760
        %4094 = vmatpush1.msra.mxu0 %v4093
        %4095 = vmatprep.subr.mxu0 0.0
        %v4096 = vand.u32 %v4000, 4294901760
        %v4097 = vsub.f32 %v4000, %v4096
        %v4098 = vand.u32 %v4097, 4294901760
        %v4099 = vsub.f32 %v4097, %v4098
        %v4100 = vand.u32 %v4099, 4294901760
        %4101 = vmatpush1.msra.mxu0 %v4100
        %4102 = vmatprep.subr.mxu0 0.0
        %v4103 = vand.u32 %v4001, 4294901760
        %v4104 = vsub.f32 %v4001, %v4103
        %v4105 = vand.u32 %v4104, 4294901760
        %v4106 = vsub.f32 %v4104, %v4105
        %v4107 = vand.u32 %v4106, 4294901760
        %4108 = vmatpush1.msra.mxu0 %v4107
        %4109 = vmatprep.subr.mxu0 0.0
        %4110 = vmatpush1.msra.mxu0 0.0
        %4111 = vmatprep.subr.mxu0 0.0
        %4112 = vmatpush1.msra.mxu0 0.0
        %4113 = vmatprep.subr.mxu0 0.0
        %4114 = vmatpush1.msra.mxu0 0.0
        %4115 = vmatprep.subr.mxu0 0.0
        %4116 = vmatpush1.msra.mxu0 0.0
        %4117 = vmatprep.subr.mxu0 0.0
        %4118 = vmatpush1.msra.mxu0 0.0
        %4119 = vmatprep.subr.mxu0 0.0
        %4120 = vmatpush1.msra.mxu0 0.0
        %4121 = vmatprep.subr.mxu0 0.0
        %4122 = vmatpush1.msra.mxu0 0.0
        %4123 = vmatprep.subr.mxu0 0.0
        %4124 = vmatpush1.msra.mxu0 0.0
        %4125 = vmatprep.subr.mxu0 0.0
        %4126 = vmatpush1.msra.mxu0 0.0
        %4127 = vmatprep.subr.mxu0 0.0
        %4128 = vmatpush1.msra.mxu0 0.0
        %4129 = vmatprep.subr.mxu0 0.0
        %4130 = vmatpush1.msra.mxu0 0.0
        %4131 = vmatprep.subr.mxu0 0.0
        %4132 = vmatpush1.msra.mxu0 0.0
        %4133 = vmatprep.subr.mxu0 0.0
        %4134 = vmatpush1.msra.mxu0 0.0
        %4135 = vmatprep.subr.mxu0 0.0
        %4136 = vmatpush1.msra.mxu0 0.0
        %4137 = vmatprep.subr.mxu0 0.0
        %4138 = vmatpush1.msra.mxu0 0.0
        %4139 = vmatprep.subr.mxu0 0.0
        %4140 = vmatpush1.msra.mxu0 0.0
        %4141 = vmatprep.subr.mxu0 0.0
        %4142 = vmatpush1.msra.mxu0 0.0
        %4143 = vmatprep.subr.mxu0 0.0
        %4144 = vmatpush1.msra.mxu0 0.0
        %4145 = vmatprep.subr.mxu0 0.0
        %4146 = vmatpush1.msra.mxu0 0.0
        %4147 = vmatprep.subr.mxu0 0.0
        %4148 = vmatpush1.msra.mxu0 0.0
        %4149 = vmatprep.subr.mxu0 0.0
        %4150 = vmatpush1.msra.mxu0 0.0
        %4151 = vmatprep.subr.mxu0 0.0
        %4152 = vmatpush1.msra.mxu0 0.0
        %4153 = vmatprep.subr.mxu0 0.0
        %4154 = vmatpush1.msra.mxu0 0.0
        %4155 = vmatprep.subr.mxu0 0.0
        %4156 = vmatpush1.msra.mxu0 0.0
        %4157 = vmatprep.subr.mxu0 0.0
        %4158 = vmatpush1.msra.mxu0 0.0
        %4159 = vmatprep.subr.mxu0 0.0
        %4160 = vmatpush1.msra.mxu0 0.0
        %4161 = vmatprep.subr.mxu0 0.0
        %4162 = vmatpush1.msra.mxu0 0.0
        %4163 = vmatprep.subr.mxu0 0.0
        %4164 = vmatpush1.msra.mxu0 0.0
        %4165 = vmatprep.mubr.f32.mxu0 0.0
        %v4166 = vand.u32 %v852, 4294901760
        %4167 = vmatmul.mubr.f32.gmra.mrb[0].mxu0 %v4166
        %v4168 = vpop.f32.mrb[0].mxu0
        %v4169 = vadd.f32 %v4078, %v4168
        %v4170 = vpop.f32.mrb[0].mxu0
        %4171 = vdwg.mxu0
        %4172 = vmatprep.subr.mxu0 0.0
        %v4173 = vand.u32 %v3998, 4294901760
        %v4174 = vsub.f32 %v3998, %v4173
        %4175 = vmatpush1.msra.mxu0 %v4174
        %4176 = vmatprep.subr.mxu0 0.0
        %v4177 = vand.u32 %v3999, 4294901760
        %v4178 = vsub.f32 %v3999, %v4177
        %4179 = vmatpush1.msra.mxu0 %v4178
        %4180 = vmatprep.subr.mxu0 0.0
        %v4181 = vand.u32 %v4000, 4294901760
        %v4182 = vsub.f32 %v4000, %v4181
        %4183 = vmatpush1.msra.mxu0 %v4182
        %4184 = vmatprep.subr.mxu0 0.0
        %v4185 = vand.u32 %v4001, 4294901760
        %v4186 = vsub.f32 %v4001, %v4185
        %4187 = vmatpush1.msra.mxu0 %v4186
        %4188 = vmatprep.subr.mxu0 0.0
        %4189 = vmatpush1.msra.mxu0 0.0
        %4190 = vmatprep.subr.mxu0 0.0
        %4191 = vmatpush1.msra.mxu0 0.0
        %4192 = vmatprep.subr.mxu0 0.0
        %4193 = vmatpush1.msra.mxu0 0.0
        %4194 = vmatprep.subr.mxu0 0.0
        %4195 = vmatpush1.msra.mxu0 0.0
        %4196 = vmatprep.subr.mxu0 0.0
        %4197 = vmatpush1.msra.mxu0 0.0
        %4198 = vmatprep.subr.mxu0 0.0
        %4199 = vmatpush1.msra.mxu0 0.0
        %4200 = vmatprep.subr.mxu0 0.0
        %4201 = vmatpush1.msra.mxu0 0.0
        %4202 = vmatprep.subr.mxu0 0.0
        %4203 = vmatpush1.msra.mxu0 0.0
        %4204 = vmatprep.subr.mxu0 0.0
        %4205 = vmatpush1.msra.mxu0 0.0
        %4206 = vmatprep.subr.mxu0 0.0
        %4207 = vmatpush1.msra.mxu0 0.0
        %4208 = vmatprep.subr.mxu0 0.0
        %4209 = vmatpush1.msra.mxu0 0.0
        %4210 = vmatprep.subr.mxu0 0.0
        %4211 = vmatpush1.msra.mxu0 0.0
        %4212 = vmatprep.subr.mxu0 0.0
        %4213 = vmatpush1.msra.mxu0 0.0
        %4214 = vmatprep.subr.mxu0 0.0
        %4215 = vmatpush1.msra.mxu0 0.0
        %4216 = vmatprep.subr.mxu0 0.0
        %4217 = vmatpush1.msra.mxu0 0.0
        %4218 = vmatprep.subr.mxu0 0.0
        %4219 = vmatpush1.msra.mxu0 0.0
        %4220 = vmatprep.subr.mxu0 0.0
        %4221 = vmatpush1.msra.mxu0 0.0
        %4222 = vmatprep.subr.mxu0 0.0
        %4223 = vmatpush1.msra.mxu0 0.0
        %4224 = vmatprep.subr.mxu0 0.0
        %4225 = vmatpush1.msra.mxu0 0.0
        %4226 = vmatprep.subr.mxu0 0.0
        %4227 = vmatpush1.msra.mxu0 0.0
        %4228 = vmatprep.subr.mxu0 0.0
        %4229 = vmatpush1.msra.mxu0 0.0
        %4230 = vmatprep.subr.mxu0 0.0
        %4231 = vmatpush1.msra.mxu0 0.0
        %4232 = vmatprep.subr.mxu0 0.0
        %4233 = vmatpush1.msra.mxu0 0.0
        %4234 = vmatprep.subr.mxu0 0.0
        %4235 = vmatpush1.msra.mxu0 0.0
        %4236 = vmatprep.subr.mxu0 0.0
        %4237 = vmatpush1.msra.mxu0 0.0
        %4238 = vmatprep.subr.mxu0 0.0
        %4239 = vmatpush1.msra.mxu0 0.0
        %4240 = vmatprep.subr.mxu0 0.0
        %4241 = vmatpush1.msra.mxu0 0.0
        %4242 = vmatprep.subr.mxu0 0.0
        %4243 = vmatpush1.msra.mxu0 0.0
        %4244 = vmatprep.mubr.f32.mxu0 0.0
        %v4245 = vand.u32 %v852, 4294901760
        %v4246 = vsub.f32 %v852, %v4245
        %4247 = vmatmul.mubr.f32.gmra.mrb[0].mxu0 %v4246
        %v4248 = vpop.f32.mrb[0].mxu0
        %v4249 = vadd.f32 %v4169, %v4248
        %v4250 = vpop.f32.mrb[0].mxu0
        %4251 = vdwg.mxu0
        %4252 = vmatprep.subr.mxu0 0.0
        %v4253 = vand.u32 %v3998, 4294901760
        %4254 = vmatpush1.msra.mxu0 %v4253
        %4255 = vmatprep.subr.mxu0 0.0
        %v4256 = vand.u32 %v3999, 4294901760
        %4257 = vmatpush1.msra.mxu0 %v4256
        %4258 = vmatprep.subr.mxu0 0.0
        %v4259 = vand.u32 %v4000, 4294901760
        %4260 = vmatpush1.msra.mxu0 %v4259
        %4261 = vmatprep.subr.mxu0 0.0
        %v4262 = vand.u32 %v4001, 4294901760
        %4263 = vmatpush1.msra.mxu0 %v4262
        %4264 = vmatprep.subr.mxu0 0.0
        %4265 = vmatpush1.msra.mxu0 0.0
        %4266 = vmatprep.subr.mxu0 0.0
        %4267 = vmatpush1.msra.mxu0 0.0
        %4268 = vmatprep.subr.mxu0 0.0
        %4269 = vmatpush1.msra.mxu0 0.0
        %4270 = vmatprep.subr.mxu0 0.0
        %4271 = vmatpush1.msra.mxu0 0.0
        %4272 = vmatprep.subr.mxu0 0.0
        %4273 = vmatpush1.msra.mxu0 0.0
        %4274 = vmatprep.subr.mxu0 0.0
        %4275 = vmatpush1.msra.mxu0 0.0
        %4276 = vmatprep.subr.mxu0 0.0
        %4277 = vmatpush1.msra.mxu0 0.0
        %4278 = vmatprep.subr.mxu0 0.0
        %4279 = vmatpush1.msra.mxu0 0.0
        %4280 = vmatprep.subr.mxu0 0.0
        %4281 = vmatpush1.msra.mxu0 0.0
        %4282 = vmatprep.subr.mxu0 0.0
        %4283 = vmatpush1.msra.mxu0 0.0
        %4284 = vmatprep.subr.mxu0 0.0
        %4285 = vmatpush1.msra.mxu0 0.0
        %4286 = vmatprep.subr.mxu0 0.0
        %4287 = vmatpush1.msra.mxu0 0.0
        %4288 = vmatprep.subr.mxu0 0.0
        %4289 = vmatpush1.msra.mxu0 0.0
        %4290 = vmatprep.subr.mxu0 0.0
        %4291 = vmatpush1.msra.mxu0 0.0
        %4292 = vmatprep.subr.mxu0 0.0
        %4293 = vmatpush1.msra.mxu0 0.0
        %4294 = vmatprep.subr.mxu0 0.0
        %4295 = vmatpush1.msra.mxu0 0.0
        %4296 = vmatprep.subr.mxu0 0.0
        %4297 = vmatpush1.msra.mxu0 0.0
        %4298 = vmatprep.subr.mxu0 0.0
        %4299 = vmatpush1.msra.mxu0 0.0
        %4300 = vmatprep.subr.mxu0 0.0
        %4301 = vmatpush1.msra.mxu0 0.0
        %4302 = vmatprep.subr.mxu0 0.0
        %4303 = vmatpush1.msra.mxu0 0.0
        %4304 = vmatprep.subr.mxu0 0.0
        %4305 = vmatpush1.msra.mxu0 0.0
        %4306 = vmatprep.subr.mxu0 0.0
        %4307 = vmatpush1.msra.mxu0 0.0
        %4308 = vmatprep.subr.mxu0 0.0
        %4309 = vmatpush1.msra.mxu0 0.0
        %4310 = vmatprep.subr.mxu0 0.0
        %4311 = vmatpush1.msra.mxu0 0.0
        %4312 = vmatprep.subr.mxu0 0.0
        %4313 = vmatpush1.msra.mxu0 0.0
        %4314 = vmatprep.subr.mxu0 0.0
        %4315 = vmatpush1.msra.mxu0 0.0
        %4316 = vmatprep.subr.mxu0 0.0
        %4317 = vmatpush1.msra.mxu0 0.0
        %4318 = vmatprep.subr.mxu0 0.0
        %4319 = vmatpush1.msra.mxu0 0.0
        %4320 = vmatprep.mubr.f32.mxu0 0.0
        %v4321 = vand.u32 %v852, 4294901760
        %v4322 = vsub.f32 %v852, %v4321
        %v4323 = vand.u32 %v4322, 4294901760
        %4324 = vmatmul.mubr.f32.gmra.mrb[0].mxu0 %v4323
        %v4325 = vpop.f32.mrb[0].mxu0
        %v4326 = vadd.f32 %v4249, %v4325
        %v4327 = vpop.f32.mrb[0].mxu0
        %4328 = vdwg.mxu0
        %4329 = vmatprep.subr.mxu0 0.0
        %v4330 = vand.u32 %v3998, 4294901760
        %v4331 = vsub.f32 %v3998, %v4330
        %v4332 = vand.u32 %v4331, 4294901760
        %4333 = vmatpush1.msra.mxu0 %v4332
        %4334 = vmatprep.subr.mxu0 0.0
        %v4335 = vand.u32 %v3999, 4294901760
        %v4336 = vsub.f32 %v3999, %v4335
        %v4337 = vand.u32 %v4336, 4294901760
        %4338 = vmatpush1.msra.mxu0 %v4337
        %4339 = vmatprep.subr.mxu0 0.0
        %v4340 = vand.u32 %v4000, 4294901760
        %v4341 = vsub.f32 %v4000, %v4340
        %v4342 = vand.u32 %v4341, 4294901760
        %4343 = vmatpush1.msra.mxu0 %v4342
        %4344 = vmatprep.subr.mxu0 0.0
        %v4345 = vand.u32 %v4001, 4294901760
        %v4346 = vsub.f32 %v4001, %v4345
        %v4347 = vand.u32 %v4346, 4294901760
        %4348 = vmatpush1.msra.mxu0 %v4347
        %4349 = vmatprep.subr.mxu0 0.0
        %4350 = vmatpush1.msra.mxu0 0.0
        %4351 = vmatprep.subr.mxu0 0.0
        %4352 = vmatpush1.msra.mxu0 0.0
        %4353 = vmatprep.subr.mxu0 0.0
        %4354 = vmatpush1.msra.mxu0 0.0
        %4355 = vmatprep.subr.mxu0 0.0
        %4356 = vmatpush1.msra.mxu0 0.0
        %4357 = vmatprep.subr.mxu0 0.0
        %4358 = vmatpush1.msra.mxu0 0.0
        %4359 = vmatprep.subr.mxu0 0.0
        %4360 = vmatpush1.msra.mxu0 0.0
        %4361 = vmatprep.subr.mxu0 0.0
        %4362 = vmatpush1.msra.mxu0 0.0
        %4363 = vmatprep.subr.mxu0 0.0
        %4364 = vmatpush1.msra.mxu0 0.0
        %4365 = vmatprep.subr.mxu0 0.0
        %4366 = vmatpush1.msra.mxu0 0.0
        %4367 = vmatprep.subr.mxu0 0.0
        %4368 = vmatpush1.msra.mxu0 0.0
        %4369 = vmatprep.subr.mxu0 0.0
        %4370 = vmatpush1.msra.mxu0 0.0
        %4371 = vmatprep.subr.mxu0 0.0
        %4372 = vmatpush1.msra.mxu0 0.0
        %4373 = vmatprep.subr.mxu0 0.0
        %4374 = vmatpush1.msra.mxu0 0.0
        %4375 = vmatprep.subr.mxu0 0.0
        %4376 = vmatpush1.msra.mxu0 0.0
        %4377 = vmatprep.subr.mxu0 0.0
        %4378 = vmatpush1.msra.mxu0 0.0
        %4379 = vmatprep.subr.mxu0 0.0
        %4380 = vmatpush1.msra.mxu0 0.0
        %4381 = vmatprep.subr.mxu0 0.0
        %4382 = vmatpush1.msra.mxu0 0.0
        %4383 = vmatprep.subr.mxu0 0.0
        %4384 = vmatpush1.msra.mxu0 0.0
        %4385 = vmatprep.subr.mxu0 0.0
        %4386 = vmatpush1.msra.mxu0 0.0
        %4387 = vmatprep.subr.mxu0 0.0
        %4388 = vmatpush1.msra.mxu0 0.0
        %4389 = vmatprep.subr.mxu0 0.0
        %4390 = vmatpush1.msra.mxu0 0.0
        %4391 = vmatprep.subr.mxu0 0.0
        %4392 = vmatpush1.msra.mxu0 0.0
        %4393 = vmatprep.subr.mxu0 0.0
        %4394 = vmatpush1.msra.mxu0 0.0
        %4395 = vmatprep.subr.mxu0 0.0
        %4396 = vmatpush1.msra.mxu0 0.0
        %4397 = vmatprep.subr.mxu0 0.0
        %4398 = vmatpush1.msra.mxu0 0.0
        %4399 = vmatprep.subr.mxu0 0.0
        %4400 = vmatpush1.msra.mxu0 0.0
        %4401 = vmatprep.subr.mxu0 0.0
        %4402 = vmatpush1.msra.mxu0 0.0
        %4403 = vmatprep.subr.mxu0 0.0
        %4404 = vmatpush1.msra.mxu0 0.0
        %4405 = vmatprep.mubr.f32.mxu0 0.0
        %v4406 = vand.u32 %v852, 4294901760
        %4407 = vmatmul.mubr.f32.gmra.mrb[0].mxu0 %v4406
        %v4408 = vpop.f32.mrb[0].mxu0
        %v4409 = vadd.f32 %v4326, %v4408
        %v4410 = vpop.f32.mrb[0].mxu0
        %4411 = vdwg.mxu0
        %4412 = vmatprep.subr.mxu0 0.0
        %v4413 = vand.u32 %v3998, 4294901760
        %4414 = vmatpush1.msra.mxu0 %v4413
        %4415 = vmatprep.subr.mxu0 0.0
        %v4416 = vand.u32 %v3999, 4294901760
        %4417 = vmatpush1.msra.mxu0 %v4416
        %4418 = vmatprep.subr.mxu0 0.0
        %v4419 = vand.u32 %v4000, 4294901760
        %4420 = vmatpush1.msra.mxu0 %v4419
        %4421 = vmatprep.subr.mxu0 0.0
        %v4422 = vand.u32 %v4001, 4294901760
        %4423 = vmatpush1.msra.mxu0 %v4422
        %4424 = vmatprep.subr.mxu0 0.0
        %4425 = vmatpush1.msra.mxu0 0.0
        %4426 = vmatprep.subr.mxu0 0.0
        %4427 = vmatpush1.msra.mxu0 0.0
        %4428 = vmatprep.subr.mxu0 0.0
        %4429 = vmatpush1.msra.mxu0 0.0
        %4430 = vmatprep.subr.mxu0 0.0
        %4431 = vmatpush1.msra.mxu0 0.0
        %4432 = vmatprep.subr.mxu0 0.0
        %4433 = vmatpush1.msra.mxu0 0.0
        %4434 = vmatprep.subr.mxu0 0.0
        %4435 = vmatpush1.msra.mxu0 0.0
        %4436 = vmatprep.subr.mxu0 0.0
        %4437 = vmatpush1.msra.mxu0 0.0
        %4438 = vmatprep.subr.mxu0 0.0
        %4439 = vmatpush1.msra.mxu0 0.0
        %4440 = vmatprep.subr.mxu0 0.0
        %4441 = vmatpush1.msra.mxu0 0.0
        %4442 = vmatprep.subr.mxu0 0.0
        %4443 = vmatpush1.msra.mxu0 0.0
        %4444 = vmatprep.subr.mxu0 0.0
        %4445 = vmatpush1.msra.mxu0 0.0
        %4446 = vmatprep.subr.mxu0 0.0
        %4447 = vmatpush1.msra.mxu0 0.0
        %4448 = vmatprep.subr.mxu0 0.0
        %4449 = vmatpush1.msra.mxu0 0.0
        %4450 = vmatprep.subr.mxu0 0.0
        %4451 = vmatpush1.msra.mxu0 0.0
        %4452 = vmatprep.subr.mxu0 0.0
        %4453 = vmatpush1.msra.mxu0 0.0
        %4454 = vmatprep.subr.mxu0 0.0
        %4455 = vmatpush1.msra.mxu0 0.0
        %4456 = vmatprep.subr.mxu0 0.0
        %4457 = vmatpush1.msra.mxu0 0.0
        %4458 = vmatprep.subr.mxu0 0.0
        %4459 = vmatpush1.msra.mxu0 0.0
        %4460 = vmatprep.subr.mxu0 0.0
        %4461 = vmatpush1.msra.mxu0 0.0
        %4462 = vmatprep.subr.mxu0 0.0
        %4463 = vmatpush1.msra.mxu0 0.0
        %4464 = vmatprep.subr.mxu0 0.0
        %4465 = vmatpush1.msra.mxu0 0.0
        %4466 = vmatprep.subr.mxu0 0.0
        %4467 = vmatpush1.msra.mxu0 0.0
        %4468 = vmatprep.subr.mxu0 0.0
        %4469 = vmatpush1.msra.mxu0 0.0
        %4470 = vmatprep.subr.mxu0 0.0
        %4471 = vmatpush1.msra.mxu0 0.0
        %4472 = vmatprep.subr.mxu0 0.0
        %4473 = vmatpush1.msra.mxu0 0.0
        %4474 = vmatprep.subr.mxu0 0.0
        %4475 = vmatpush1.msra.mxu0 0.0
        %4476 = vmatprep.subr.mxu0 0.0
        %4477 = vmatpush1.msra.mxu0 0.0
        %4478 = vmatprep.subr.mxu0 0.0
        %4479 = vmatpush1.msra.mxu0 0.0
        %4480 = vmatprep.mubr.f32.mxu0 0.0
        %v4481 = vand.u32 %v852, 4294901760
        %4482 = vmatmul.mubr.f32.gmra.mrb[0].mxu0 %v4481
        %v4483 = vpop.f32.mrb[0].mxu0
        %v4484 = vadd.f32 %v4409, %v4483
        %v4485 = vpop.f32.mrb[0].mxu0
        %4486 = vdwg.mxu0
        %v4487 = vadd.f32 %v3989, %v4484
        %v4488 = vtanh.pop %v4487
        %v4489 = vmul.f32 %v4488, 0.5
        %v4490 = vadd.f32 %v4489, 0.5
        %v4491 = vmul.f32 %v4490, 0.0
        %4493 = vrot.lane.b32.xlu0 %v4488, 64
        %v4494 = vpop.permute.xlu0 %4493
        %v4496 = vmul.f32 %v4490, %v4494
        %4498 = vrot.lane.b32.xlu0 %v4496, 32
        %v4499 = vpop.permute.xlu0 %4498
        %v4501 = vadd.f32 %v4491, %v4499
        %v4502 = vtanh.pop %v4501
        %4504 = vrot.lane.b32.xlu0 %v4502, 64
        %v4505 = vpop.permute.xlu0 %4504
        %v4507 = vmul.f32 %v4490, %v4505
        %4509 = vrot.lane.b32.xlu0 %v4507, 32
        %v4510 = vpop.permute.xlu0 %4509
        %4512 = vst.msk [vmem:[#allocation2] sm:$0xff] %vm850, %v4510
        %v4513 = vsel %vm850, %v4510, 0
        %4515 = vmatprep.subr.mxu0 0.0
        %v4516 = vand.u32 %v3998, 4294901760
        %4517 = vmatpush1.msra.mxu0 %v4516
        %4518 = vmatprep.subr.mxu0 0.0
        %v4519 = vand.u32 %v3999, 4294901760
        %4520 = vmatpush1.msra.mxu0 %v4519
        %4521 = vmatprep.subr.mxu0 0.0
        %v4522 = vand.u32 %v4000, 4294901760
        %4523 = vmatpush1.msra.mxu0 %v4522
        %4524 = vmatprep.subr.mxu0 0.0
        %v4525 = vand.u32 %v4001, 4294901760
        %4526 = vmatpush1.msra.mxu0 %v4525
        %4527 = vmatprep.subr.mxu0 0.0
        %4528 = vmatpush1.msra.mxu0 0.0
        %4529 = vmatprep.subr.mxu0 0.0
        %4530 = vmatpush1.msra.mxu0 0.0
        %4531 = vmatprep.subr.mxu0 0.0
        %4532 = vmatpush1.msra.mxu0 0.0
        %4533 = vmatprep.subr.mxu0 0.0
        %4534 = vmatpush1.msra.mxu0 0.0
        %4535 = vmatprep.subr.mxu0 0.0
        %4536 = vmatpush1.msra.mxu0 0.0
        %4537 = vmatprep.subr.mxu0 0.0
        %4538 = vmatpush1.msra.mxu0 0.0
        %4539 = vmatprep.subr.mxu0 0.0
        %4540 = vmatpush1.msra.mxu0 0.0
        %4541 = vmatprep.subr.mxu0 0.0
        %4542 = vmatpush1.msra.mxu0 0.0
        %4543 = vmatprep.subr.mxu0 0.0
        %4544 = vmatpush1.msra.mxu0 0.0
        %4545 = vmatprep.subr.mxu0 0.0
        %4546 = vmatpush1.msra.mxu0 0.0
        %4547 = vmatprep.subr.mxu0 0.0
        %4548 = vmatpush1.msra.mxu0 0.0
        %4549 = vmatprep.subr.mxu0 0.0
        %4550 = vmatpush1.msra.mxu0 0.0
        %4551 = vmatprep.subr.mxu0 0.0
        %4552 = vmatpush1.msra.mxu0 0.0
        %4553 = vmatprep.subr.mxu0 0.0
        %4554 = vmatpush1.msra.mxu0 0.0
        %4555 = vmatprep.subr.mxu0 0.0
        %4556 = vmatpush1.msra.mxu0 0.0
        %4557 = vmatprep.subr.mxu0 0.0
        %4558 = vmatpush1.msra.mxu0 0.0
        %4559 = vmatprep.subr.mxu0 0.0
        %4560 = vmatpush1.msra.mxu0 0.0
        %4561 = vmatprep.subr.mxu0 0.0
        %4562 = vmatpush1.msra.mxu0 0.0
        %4563 = vmatprep.subr.mxu0 0.0
        %4564 = vmatpush1.msra.mxu0 0.0
        %4565 = vmatprep.subr.mxu0 0.0
        %4566 = vmatpush1.msra.mxu0 0.0
        %4567 = vmatprep.subr.mxu0 0.0
        %4568 = vmatpush1.msra.mxu0 0.0
        %4569 = vmatprep.subr.mxu0 0.0
        %4570 = vmatpush1.msra.mxu0 0.0
        %4571 = vmatprep.subr.mxu0 0.0
        %4572 = vmatpush1.msra.mxu0 0.0
        %4573 = vmatprep.subr.mxu0 0.0
        %4574 = vmatpush1.msra.mxu0 0.0
        %4575 = vmatprep.subr.mxu0 0.0
        %4576 = vmatpush1.msra.mxu0 0.0
        %4577 = vmatprep.subr.mxu0 0.0
        %4578 = vmatpush1.msra.mxu0 0.0
        %4579 = vmatprep.subr.mxu0 0.0
        %4580 = vmatpush1.msra.mxu0 0.0
        %4581 = vmatprep.subr.mxu0 0.0
        %4582 = vmatpush1.msra.mxu0 0.0
        %4583 = vmatprep.mubr.f32.mxu0 0.0
        %v4584 = vand.u32 %v4513, 4294901760
        %v4585 = vsub.f32 %v4513, %v4584
        %v4586 = vand.u32 %v4585, 4294901760
        %v4587 = vsub.f32 %v4585, %v4586
        %v4588 = vand.u32 %v4587, 4294901760
        %4589 = vmatmul.mubr.f32.gmra.mrb[0].mxu0 %v4588
        %v4590 = vpop.f32.mrb[0].mxu0
        %v4591 = vadd.f32 0.0, %v4590
        %v4592 = vpop.f32.mrb[0].mxu0
        %4593 = vdwg.mxu0
        %4594 = vmatprep.subr.mxu0 0.0
        %v4595 = vand.u32 %v3998, 4294901760
        %v4596 = vsub.f32 %v3998, %v4595
        %v4597 = vand.u32 %v4596, 4294901760
        %v4598 = vsub.f32 %v4596, %v4597
        %v4599 = vand.u32 %v4598, 4294901760
        %4600 = vmatpush1.msra.mxu0 %v4599
        %4601 = vmatprep.subr.mxu0 0.0
        %v4602 = vand.u32 %v3999, 4294901760
        %v4603 = vsub.f32 %v3999, %v4602
        %v4604 = vand.u32 %v4603, 4294901760
        %v4605 = vsub.f32 %v4603, %v4604
        %v4606 = vand.u32 %v4605, 4294901760
        %4607 = vmatpush1.msra.mxu0 %v4606
        %4608 = vmatprep.subr.mxu0 0.0
        %v4609 = vand.u32 %v4000, 4294901760
        %v4610 = vsub.f32 %v4000, %v4609
        %v4611 = vand.u32 %v4610, 4294901760
        %v4612 = vsub.f32 %v4610, %v4611
        %v4613 = vand.u32 %v4612, 4294901760
        %4614 = vmatpush1.msra.mxu0 %v4613
        %4615 = vmatprep.subr.mxu0 0.0
        %v4616 = vand.u32 %v4001, 4294901760
        %v4617 = vsub.f32 %v4001, %v4616
        %v4618 = vand.u32 %v4617, 4294901760
        %v4619 = vsub.f32 %v4617, %v4618
        %v4620 = vand.u32 %v4619, 4294901760
        %4621 = vmatpush1.msra.mxu0 %v4620
        %4622 = vmatprep.subr.mxu0 0.0
        %4623 = vmatpush1.msra.mxu0 0.0
        %4624 = vmatprep.subr.mxu0 0.0
        %4625 = vmatpush1.msra.mxu0 0.0
        %4626 = vmatprep.subr.mxu0 0.0
        %4627 = vmatpush1.msra.mxu0 0.0
        %4628 = vmatprep.subr.mxu0 0.0
        %4629 = vmatpush1.msra.mxu0 0.0
        %4630 = vmatprep.subr.mxu0 0.0
        %4631 = vmatpush1.msra.mxu0 0.0
        %4632 = vmatprep.subr.mxu0 0.0
        %4633 = vmatpush1.msra.mxu0 0.0
        %4634 = vmatprep.subr.mxu0 0.0
        %4635 = vmatpush1.msra.mxu0 0.0
        %4636 = vmatprep.subr.mxu0 0.0
        %4637 = vmatpush1.msra.mxu0 0.0
        %4638 = vmatprep.subr.mxu0 0.0
        %4639 = vmatpush1.msra.mxu0 0.0
        %4640 = vmatprep.subr.mxu0 0.0
        %4641 = vmatpush1.msra.mxu0 0.0
        %4642 = vmatprep.subr.mxu0 0.0
        %4643 = vmatpush1.msra.mxu0 0.0
        %4644 = vmatprep.subr.mxu0 0.0
        %4645 = vmatpush1.msra.mxu0 0.0
        %4646 = vmatprep.subr.mxu0 0.0
        %4647 = vmatpush1.msra.mxu0 0.0
        %4648 = vmatprep.subr.mxu0 0.0
        %4649 = vmatpush1.msra.mxu0 0.0
        %4650 = vmatprep.subr.mxu0 0.0
        %4651 = vmatpush1.msra.mxu0 0.0
        %4652 = vmatprep.subr.mxu0 0.0
        %4653 = vmatpush1.msra.mxu0 0.0
        %4654 = vmatprep.subr.mxu0 0.0
        %4655 = vmatpush1.msra.mxu0 0.0
        %4656 = vmatprep.subr.mxu0 0.0
        %4657 = vmatpush1.msra.mxu0 0.0
        %4658 = vmatprep.subr.mxu0 0.0
        %4659 = vmatpush1.msra.mxu0 0.0
        %4660 = vmatprep.subr.mxu0 0.0
        %4661 = vmatpush1.msra.mxu0 0.0
        %4662 = vmatprep.subr.mxu0 0.0
        %4663 = vmatpush1.msra.mxu0 0.0
        %4664 = vmatprep.subr.mxu0 0.0
        %4665 = vmatpush1.msra.mxu0 0.0
        %4666 = vmatprep.subr.mxu0 0.0
        %4667 = vmatpush1.msra.mxu0 0.0
        %4668 = vmatprep.subr.mxu0 0.0
        %4669 = vmatpush1.msra.mxu0 0.0
        %4670 = vmatprep.subr.mxu0 0.0
        %4671 = vmatpush1.msra.mxu0 0.0
        %4672 = vmatprep.subr.mxu0 0.0
        %4673 = vmatpush1.msra.mxu0 0.0
        %4674 = vmatprep.subr.mxu0 0.0
        %4675 = vmatpush1.msra.mxu0 0.0
        %4676 = vmatprep.subr.mxu0 0.0
        %4677 = vmatpush1.msra.mxu0 0.0
        %4678 = vmatprep.mubr.f32.mxu0 0.0
        %v4679 = vand.u32 %v4513, 4294901760
        %4680 = vmatmul.mubr.f32.gmra.mrb[0].mxu0 %v4679
        %v4681 = vpop.f32.mrb[0].mxu0
        %v4682 = vadd.f32 %v4591, %v4681
        %v4683 = vpop.f32.mrb[0].mxu0
        %4684 = vdwg.mxu0
        %4685 = vmatprep.subr.mxu0 0.0
        %v4686 = vand.u32 %v3998, 4294901760
        %v4687 = vsub.f32 %v3998, %v4686
        %4688 = vmatpush1.msra.mxu0 %v4687
        %4689 = vmatprep.subr.mxu0 0.0
        %v4690 = vand.u32 %v3999, 4294901760
        %v4691 = vsub.f32 %v3999, %v4690
        %4692 = vmatpush1.msra.mxu0 %v4691
        %4693 = vmatprep.subr.mxu0 0.0
        %v4694 = vand.u32 %v4000, 4294901760
        %v4695 = vsub.f32 %v4000, %v4694
        %4696 = vmatpush1.msra.mxu0 %v4695
        %4697 = vmatprep.subr.mxu0 0.0
        %v4698 = vand.u32 %v4001, 4294901760
        %v4699 = vsub.f32 %v4001, %v4698
        %4700 = vmatpush1.msra.mxu0 %v4699
        %4701 = vmatprep.subr.mxu0 0.0
        %4702 = vmatpush1.msra.mxu0 0.0
        %4703 = vmatprep.subr.mxu0 0.0
        %4704 = vmatpush1.msra.mxu0 0.0
        %4705 = vmatprep.subr.mxu0 0.0
        %4706 = vmatpush1.msra.mxu0 0.0
        %4707 = vmatprep.subr.mxu0 0.0
        %4708 = vmatpush1.msra.mxu0 0.0
        %4709 = vmatprep.subr.mxu0 0.0
        %4710 = vmatpush1.msra.mxu0 0.0
        %4711 = vmatprep.subr.mxu0 0.0
        %4712 = vmatpush1.msra.mxu0 0.0
        %4713 = vmatprep.subr.mxu0 0.0
        %4714 = vmatpush1.msra.mxu0 0.0
        %4715 = vmatprep.subr.mxu0 0.0
        %4716 = vmatpush1.msra.mxu0 0.0
        %4717 = vmatprep.subr.mxu0 0.0
        %4718 = vmatpush1.msra.mxu0 0.0
        %4719 = vmatprep.subr.mxu0 0.0
        %4720 = vmatpush1.msra.mxu0 0.0
        %4721 = vmatprep.subr.mxu0 0.0
        %4722 = vmatpush1.msra.mxu0 0.0
        %4723 = vmatprep.subr.mxu0 0.0
        %4724 = vmatpush1.msra.mxu0 0.0
        %4725 = vmatprep.subr.mxu0 0.0
        %4726 = vmatpush1.msra.mxu0 0.0
        %4727 = vmatprep.subr.mxu0 0.0
        %4728 = vmatpush1.msra.mxu0 0.0
        %4729 = vmatprep.subr.mxu0 0.0
        %4730 = vmatpush1.msra.mxu0 0.0
        %4731 = vmatprep.subr.mxu0 0.0
        %4732 = vmatpush1.msra.mxu0 0.0
        %4733 = vmatprep.subr.mxu0 0.0
        %4734 = vmatpush1.msra.mxu0 0.0
        %4735 = vmatprep.subr.mxu0 0.0
        %4736 = vmatpush1.msra.mxu0 0.0
        %4737 = vmatprep.subr.mxu0 0.0
        %4738 = vmatpush1.msra.mxu0 0.0
        %4739 = vmatprep.subr.mxu0 0.0
        %4740 = vmatpush1.msra.mxu0 0.0
        %4741 = vmatprep.subr.mxu0 0.0
        %4742 = vmatpush1.msra.mxu0 0.0
        %4743 = vmatprep.subr.mxu0 0.0
        %4744 = vmatpush1.msra.mxu0 0.0
        %4745 = vmatprep.subr.mxu0 0.0
        %4746 = vmatpush1.msra.mxu0 0.0
        %4747 = vmatprep.subr.mxu0 0.0
        %4748 = vmatpush1.msra.mxu0 0.0
        %4749 = vmatprep.subr.mxu0 0.0
        %4750 = vmatpush1.msra.mxu0 0.0
        %4751 = vmatprep.subr.mxu0 0.0
        %4752 = vmatpush1.msra.mxu0 0.0
        %4753 = vmatprep.subr.mxu0 0.0
        %4754 = vmatpush1.msra.mxu0 0.0
        %4755 = vmatprep.subr.mxu0 0.0
        %4756 = vmatpush1.msra.mxu0 0.0
        %4757 = vmatprep.mubr.f32.mxu0 0.0
        %v4758 = vand.u32 %v4513, 4294901760
        %v4759 = vsub.f32 %v4513, %v4758
        %4760 = vmatmul.mubr.f32.gmra.mrb[0].mxu0 %v4759
        %v4761 = vpop.f32.mrb[0].mxu0
        %v4762 = vadd.f32 %v4682, %v4761
        %v4763 = vpop.f32.mrb[0].mxu0
        %4764 = vdwg.mxu0
        %4765 = vmatprep.subr.mxu0 0.0
        %v4766 = vand.u32 %v3998, 4294901760
        %4767 = vmatpush1.msra.mxu0 %v4766
        %4768 = vmatprep.subr.mxu0 0.0
        %v4769 = vand.u32 %v3999, 4294901760
        %4770 = vmatpush1.msra.mxu0 %v4769
        %4771 = vmatprep.subr.mxu0 0.0
        %v4772 = vand.u32 %v4000, 4294901760
        %4773 = vmatpush1.msra.mxu0 %v4772
        %4774 = vmatprep.subr.mxu0 0.0
        %v4775 = vand.u32 %v4001, 4294901760
        %4776 = vmatpush1.msra.mxu0 %v4775
        %4777 = vmatprep.subr.mxu0 0.0
        %4778 = vmatpush1.msra.mxu0 0.0
        %4779 = vmatprep.subr.mxu0 0.0
        %4780 = vmatpush1.msra.mxu0 0.0
        %4781 = vmatprep.subr.mxu0 0.0
        %4782 = vmatpush1.msra.mxu0 0.0
        %4783 = vmatprep.subr.mxu0 0.0
        %4784 = vmatpush1.msra.mxu0 0.0
        %4785 = vmatprep.subr.mxu0 0.0
        %4786 = vmatpush1.msra.mxu0 0.0
        %4787 = vmatprep.subr.mxu0 0.0
        %4788 = vmatpush1.msra.mxu0 0.0
        %4789 = vmatprep.subr.mxu0 0.0
        %4790 = vmatpush1.msra.mxu0 0.0
        %4791 = vmatprep.subr.mxu0 0.0
        %4792 = vmatpush1.msra.mxu0 0.0
        %4793 = vmatprep.subr.mxu0 0.0
        %4794 = vmatpush1.msra.mxu0 0.0
        %4795 = vmatprep.subr.mxu0 0.0
        %4796 = vmatpush1.msra.mxu0 0.0
        %4797 = vmatprep.subr.mxu0 0.0
        %4798 = vmatpush1.msra.mxu0 0.0
        %4799 = vmatprep.subr.mxu0 0.0
        %4800 = vmatpush1.msra.mxu0 0.0
        %4801 = vmatprep.subr.mxu0 0.0
        %4802 = vmatpush1.msra.mxu0 0.0
        %4803 = vmatprep.subr.mxu0 0.0
        %4804 = vmatpush1.msra.mxu0 0.0
        %4805 = vmatprep.subr.mxu0 0.0
        %4806 = vmatpush1.msra.mxu0 0.0
        %4807 = vmatprep.subr.mxu0 0.0
        %4808 = vmatpush1.msra.mxu0 0.0
        %4809 = vmatprep.subr.mxu0 0.0
        %4810 = vmatpush1.msra.mxu0 0.0
        %4811 = vmatprep.subr.mxu0 0.0
        %4812 = vmatpush1.msra.mxu0 0.0
        %4813 = vmatprep.subr.mxu0 0.0
        %4814 = vmatpush1.msra.mxu0 0.0
        %4815 = vmatprep.subr.mxu0 0.0
        %4816 = vmatpush1.msra.mxu0 0.0
        %4817 = vmatprep.subr.mxu0 0.0
        %4818 = vmatpush1.msra.mxu0 0.0
        %4819 = vmatprep.subr.mxu0 0.0
        %4820 = vmatpush1.msra.mxu0 0.0
        %4821 = vmatprep.subr.mxu0 0.0
        %4822 = vmatpush1.msra.mxu0 0.0
        %4823 = vmatprep.subr.mxu0 0.0
        %4824 = vmatpush1.msra.mxu0 0.0
        %4825 = vmatprep.subr.mxu0 0.0
        %4826 = vmatpush1.msra.mxu0 0.0
        %4827 = vmatprep.subr.mxu0 0.0
        %4828 = vmatpush1.msra.mxu0 0.0
        %4829 = vmatprep.subr.mxu0 0.0
        %4830 = vmatpush1.msra.mxu0 0.0
        %4831 = vmatprep.subr.mxu0 0.0
        %4832 = vmatpush1.msra.mxu0 0.0
        %4833 = vmatprep.mubr.f32.mxu0 0.0
        %v4834 = vand.u32 %v4513, 4294901760
        %v4835 = vsub.f32 %v4513, %v4834
        %v4836 = vand.u32 %v4835, 4294901760
        %4837 = vmatmul.mubr.f32.gmra.mrb[0].mxu0 %v4836
        %v4838 = vpop.f32.mrb[0].mxu0
        %v4839 = vadd.f32 %v4762, %v4838
        %v4840 = vpop.f32.mrb[0].mxu0
        %4841 = vdwg.mxu0
        %4842 = vmatprep.subr.mxu0 0.0
        %v4843 = vand.u32 %v3998, 4294901760
        %v4844 = vsub.f32 %v3998, %v4843
        %v4845 = vand.u32 %v4844, 4294901760
        %4846 = vmatpush1.msra.mxu0 %v4845
        %4847 = vmatprep.subr.mxu0 0.0
        %v4848 = vand.u32 %v3999, 4294901760
        %v4849 = vsub.f32 %v3999, %v4848
        %v4850 = vand.u32 %v4849, 4294901760
        %4851 = vmatpush1.msra.mxu0 %v4850
        %4852 = vmatprep.subr.mxu0 0.0
        %v4853 = vand.u32 %v4000, 4294901760
        %v4854 = vsub.f32 %v4000, %v4853
        %v4855 = vand.u32 %v4854, 4294901760
        %4856 = vmatpush1.msra.mxu0 %v4855
        %4857 = vmatprep.subr.mxu0 0.0
        %v4858 = vand.u32 %v4001, 4294901760
        %v4859 = vsub.f32 %v4001, %v4858
        %v4860 = vand.u32 %v4859, 4294901760
        %4861 = vmatpush1.msra.mxu0 %v4860
        %4862 = vmatprep.subr.mxu0 0.0
        %4863 = vmatpush1.msra.mxu0 0.0
        %4864 = vmatprep.subr.mxu0 0.0
        %4865 = vmatpush1.msra.mxu0 0.0
        %4866 = vmatprep.subr.mxu0 0.0
        %4867 = vmatpush1.msra.mxu0 0.0
        %4868 = vmatprep.subr.mxu0 0.0
        %4869 = vmatpush1.msra.mxu0 0.0
        %4870 = vmatprep.subr.mxu0 0.0
        %4871 = vmatpush1.msra.mxu0 0.0
        %4872 = vmatprep.subr.mxu0 0.0
        %4873 = vmatpush1.msra.mxu0 0.0
        %4874 = vmatprep.subr.mxu0 0.0
        %4875 = vmatpush1.msra.mxu0 0.0
        %4876 = vmatprep.subr.mxu0 0.0
        %4877 = vmatpush1.msra.mxu0 0.0
        %4878 = vmatprep.subr.mxu0 0.0
        %4879 = vmatpush1.msra.mxu0 0.0
        %4880 = vmatprep.subr.mxu0 0.0
        %4881 = vmatpush1.msra.mxu0 0.0
        %4882 = vmatprep.subr.mxu0 0.0
        %4883 = vmatpush1.msra.mxu0 0.0
        %4884 = vmatprep.subr.mxu0 0.0
        %4885 = vmatpush1.msra.mxu0 0.0
        %4886 = vmatprep.subr.mxu0 0.0
        %4887 = vmatpush1.msra.mxu0 0.0
        %4888 = vmatprep.subr.mxu0 0.0
        %4889 = vmatpush1.msra.mxu0 0.0
        %4890 = vmatprep.subr.mxu0 0.0
        %4891 = vmatpush1.msra.mxu0 0.0
        %4892 = vmatprep.subr.mxu0 0.0
        %4893 = vmatpush1.msra.mxu0 0.0
        %4894 = vmatprep.subr.mxu0 0.0
        %4895 = vmatpush1.msra.mxu0 0.0
        %4896 = vmatprep.subr.mxu0 0.0
        %4897 = vmatpush1.msra.mxu0 0.0
        %4898 = vmatprep.subr.mxu0 0.0
        %4899 = vmatpush1.msra.mxu0 0.0
        %4900 = vmatprep.subr.mxu0 0.0
        %4901 = vmatpush1.msra.mxu0 0.0
        %4902 = vmatprep.subr.mxu0 0.0
        %4903 = vmatpush1.msra.mxu0 0.0
        %4904 = vmatprep.subr.mxu0 0.0
        %4905 = vmatpush1.msra.mxu0 0.0
        %4906 = vmatprep.subr.mxu0 0.0
        %4907 = vmatpush1.msra.mxu0 0.0
        %4908 = vmatprep.subr.mxu0 0.0
        %4909 = vmatpush1.msra.mxu0 0.0
        %4910 = vmatprep.subr.mxu0 0.0
        %4911 = vmatpush1.msra.mxu0 0.0
        %4912 = vmatprep.subr.mxu0 0.0
        %4913 = vmatpush1.msra.mxu0 0.0
        %4914 = vmatprep.subr.mxu0 0.0
        %4915 = vmatpush1.msra.mxu0 0.0
        %4916 = vmatprep.subr.mxu0 0.0
        %4917 = vmatpush1.msra.mxu0 0.0
        %4918 = vmatprep.mubr.f32.mxu0 0.0
        %v4919 = vand.u32 %v4513, 4294901760
        %4920 = vmatmul.mubr.f32.gmra.mrb[0].mxu0 %v4919
        %v4921 = vpop.f32.mrb[0].mxu0
        %v4922 = vadd.f32 %v4839, %v4921
        %v4923 = vpop.f32.mrb[0].mxu0
        %4924 = vdwg.mxu0
        %4925 = vmatprep.subr.mxu0 0.0
        %v4926 = vand.u32 %v3998, 4294901760
        %4927 = vmatpush1.msra.mxu0 %v4926
        %4928 = vmatprep.subr.mxu0 0.0
        %v4929 = vand.u32 %v3999, 4294901760
        %4930 = vmatpush1.msra.mxu0 %v4929
        %4931 = vmatprep.subr.mxu0 0.0
        %v4932 = vand.u32 %v4000, 4294901760
        %4933 = vmatpush1.msra.mxu0 %v4932
        %4934 = vmatprep.subr.mxu0 0.0
        %v4935 = vand.u32 %v4001, 4294901760
        %4936 = vmatpush1.msra.mxu0 %v4935
        %4937 = vmatprep.subr.mxu0 0.0
        %4938 = vmatpush1.msra.mxu0 0.0
        %4939 = vmatprep.subr.mxu0 0.0
        %4940 = vmatpush1.msra.mxu0 0.0
        %4941 = vmatprep.subr.mxu0 0.0
        %4942 = vmatpush1.msra.mxu0 0.0
        %4943 = vmatprep.subr.mxu0 0.0
        %4944 = vmatpush1.msra.mxu0 0.0
        %4945 = vmatprep.subr.mxu0 0.0
        %4946 = vmatpush1.msra.mxu0 0.0
        %4947 = vmatprep.subr.mxu0 0.0
        %4948 = vmatpush1.msra.mxu0 0.0
        %4949 = vmatprep.subr.mxu0 0.0
        %4950 = vmatpush1.msra.mxu0 0.0
        %4951 = vmatprep.subr.mxu0 0.0
        %4952 = vmatpush1.msra.mxu0 0.0
        %4953 = vmatprep.subr.mxu0 0.0
        %4954 = vmatpush1.msra.mxu0 0.0
        %4955 = vmatprep.subr.mxu0 0.0
        %4956 = vmatpush1.msra.mxu0 0.0
        %4957 = vmatprep.subr.mxu0 0.0
        %4958 = vmatpush1.msra.mxu0 0.0
        %4959 = vmatprep.subr.mxu0 0.0
        %4960 = vmatpush1.msra.mxu0 0.0
        %4961 = vmatprep.subr.mxu0 0.0
        %4962 = vmatpush1.msra.mxu0 0.0
        %4963 = vmatprep.subr.mxu0 0.0
        %4964 = vmatpush1.msra.mxu0 0.0
        %4965 = vmatprep.subr.mxu0 0.0
        %4966 = vmatpush1.msra.mxu0 0.0
        %4967 = vmatprep.subr.mxu0 0.0
        %4968 = vmatpush1.msra.mxu0 0.0
        %4969 = vmatprep.subr.mxu0 0.0
        %4970 = vmatpush1.msra.mxu0 0.0
        %4971 = vmatprep.subr.mxu0 0.0
        %4972 = vmatpush1.msra.mxu0 0.0
        %4973 = vmatprep.subr.mxu0 0.0
        %4974 = vmatpush1.msra.mxu0 0.0
        %4975 = vmatprep.subr.mxu0 0.0
        %4976 = vmatpush1.msra.mxu0 0.0
        %4977 = vmatprep.subr.mxu0 0.0
        %4978 = vmatpush1.msra.mxu0 0.0
        %4979 = vmatprep.subr.mxu0 0.0
        %4980 = vmatpush1.msra.mxu0 0.0
        %4981 = vmatprep.subr.mxu0 0.0
        %4982 = vmatpush1.msra.mxu0 0.0
        %4983 = vmatprep.subr.mxu0 0.0
        %4984 = vmatpush1.msra.mxu0 0.0
        %4985 = vmatprep.subr.mxu0 0.0
        %4986 = vmatpush1.msra.mxu0 0.0
        %4987 = vmatprep.subr.mxu0 0.0
        %4988 = vmatpush1.msra.mxu0 0.0
        %4989 = vmatprep.subr.mxu0 0.0
        %4990 = vmatpush1.msra.mxu0 0.0
        %4991 = vmatprep.subr.mxu0 0.0
        %4992 = vmatpush1.msra.mxu0 0.0
        %4993 = vmatprep.mubr.f32.mxu0 0.0
        %v4994 = vand.u32 %v4513, 4294901760
        %4995 = vmatmul.mubr.f32.gmra.mrb[0].mxu0 %v4994
        %v4996 = vpop.f32.mrb[0].mxu0
        %v4997 = vadd.f32 %v4922, %v4996
        %v4998 = vpop.f32.mrb[0].mxu0
        %4999 = vdwg.mxu0
        %v5000 = vadd.f32 %v3995, %v4997
        %v5001 = vtanh.pop %v5000
        %v5002 = vmul.f32 %v5001, 0.5
        %v5003 = vadd.f32 %v5002, 0.5
        %v5004 = vmul.f32 %v5003, %v4501
        %5006 = vrot.lane.b32.xlu0 %v5001, 64
        %v5007 = vpop.permute.xlu0 %5006
        %v5009 = vmul.f32 %v5003, %v5007
        %5011 = vrot.lane.b32.xlu0 %v5009, 32
        %v5012 = vpop.permute.xlu0 %5011
        %v5014 = vadd.f32 %v5004, %v5012
        %v5015 = vtanh.pop %v5014
        %5017 = vrot.lane.b32.xlu0 %v5015, 64
        %v5018 = vpop.permute.xlu0 %5017
        %v5020 = vmul.f32 %v5003, %v5018
        %5022 = vrot.lane.b32.xlu0 %v5020, 32
        %v5023 = vpop.permute.xlu0 %5022
        %5025 = vst.msk [vmem:[#allocation2 + $0x8] sm:$0xff] %vm850, %v5023
        %v5026 = vld [vmem:[#allocation8 + $0x30] sm:$0x3]
        %v5027 = vld [vmem:[#allocation2] sm:$0xff]
        %v5028 = vld [vmem:[#allocation2 + $0x8] sm:$0xff]
        %vm5029 = vcmask 130048
        %v5031 = vsel %vm5029, %v5026, 0
        %5033 = vmatprep.subr.mxu0 0.0
        %v5034 = vand.u32 %v5027, 4294901760
        %5035 = vmatpush1.msra.mxu0 %v5034
        %5036 = vmatprep.subr.mxu0 0.0
        %v5037 = vand.u32 %v5028, 4294901760
        %5038 = vmatpush1.msra.mxu0 %v5037
        %5039 = vmatprep.subr.mxu0 0.0
        %5040 = vmatpush1.msra.mxu0 0.0
        %5041 = vmatprep.subr.mxu0 0.0
        %5042 = vmatpush1.msra.mxu0 0.0
        %5043 = vmatprep.subr.mxu0 0.0
        %5044 = vmatpush1.msra.mxu0 0.0
        %5045 = vmatprep.subr.mxu0 0.0
        %5046 = vmatpush1.msra.mxu0 0.0
        %5047 = vmatprep.subr.mxu0 0.0
        %5048 = vmatpush1.msra.mxu0 0.0
        %5049 = vmatprep.subr.mxu0 0.0
        %5050 = vmatpush1.msra.mxu0 0.0
        %5051 = vmatprep.subr.mxu0 0.0
        %5052 = vmatpush1.msra.mxu0 0.0
        %5053 = vmatprep.subr.mxu0 0.0
        %5054 = vmatpush1.msra.mxu0 0.0
        %5055 = vmatprep.subr.mxu0 0.0
        %5056 = vmatpush1.msra.mxu0 0.0
        %5057 = vmatprep.subr.mxu0 0.0
        %5058 = vmatpush1.msra.mxu0 0.0
        %5059 = vmatprep.subr.mxu0 0.0
        %5060 = vmatpush1.msra.mxu0 0.0
        %5061 = vmatprep.subr.mxu0 0.0
        %5062 = vmatpush1.msra.mxu0 0.0
        %5063 = vmatprep.subr.mxu0 0.0
        %5064 = vmatpush1.msra.mxu0 0.0
        %5065 = vmatprep.subr.mxu0 0.0
        %5066 = vmatpush1.msra.mxu0 0.0
        %5067 = vmatprep.subr.mxu0 0.0
        %5068 = vmatpush1.msra.mxu0 0.0
        %5069 = vmatprep.subr.mxu0 0.0
        %5070 = vmatpush1.msra.mxu0 0.0
        %5071 = vmatprep.subr.mxu0 0.0
        %5072 = vmatpush1.msra.mxu0 0.0
        %5073 = vmatprep.subr.mxu0 0.0
        %5074 = vmatpush1.msra.mxu0 0.0
        %5075 = vmatprep.subr.mxu0 0.0
        %5076 = vmatpush1.msra.mxu0 0.0
        %5077 = vmatprep.subr.mxu0 0.0
        %5078 = vmatpush1.msra.mxu0 0.0
        %5079 = vmatprep.subr.mxu0 0.0
        %5080 = vmatpush1.msra.mxu0 0.0
        %5081 = vmatprep.subr.mxu0 0.0
        %5082 = vmatpush1.msra.mxu0 0.0
        %5083 = vmatprep.subr.mxu0 0.0
        %5084 = vmatpush1.msra.mxu0 0.0
        %5085 = vmatprep.subr.mxu0 0.0
        %5086 = vmatpush1.msra.mxu0 0.0
        %5087 = vmatprep.subr.mxu0 0.0
        %5088 = vmatpush1.msra.mxu0 0.0
        %5089 = vmatprep.subr.mxu0 0.0
        %5090 = vmatpush1.msra.mxu0 0.0
        %5091 = vmatprep.subr.mxu0 0.0
        %5092 = vmatpush1.msra.mxu0 0.0
        %5093 = vmatprep.subr.mxu0 0.0
        %5094 = vmatpush1.msra.mxu0 0.0
        %5095 = vmatprep.subr.mxu0 0.0
        %5096 = vmatpush1.msra.mxu0 0.0
        %5097 = vmatprep.subr.mxu0 0.0
        %5098 = vmatpush1.msra.mxu0 0.0
        %5099 = vmatprep.mubr.f32.mxu0 0.0
        %v5100 = vand.u32 %v5031, 4294901760
        %v5101 = vsub.f32 %v5031, %v5100
        %v5102 = vand.u32 %v5101, 4294901760
        %v5103 = vsub.f32 %v5101, %v5102
        %v5104 = vand.u32 %v5103, 4294901760
        %5105 = vmatmul.mubr.f32.gmra.mrb[0].mxu0 %v5104
        %v5106 = vpop.f32.mrb[0].mxu0
        %v5107 = vadd.f32 0.0, %v5106
        %v5108 = vpop.f32.mrb[0].mxu0
        %5109 = vdwg.mxu0
        %5110 = vmatprep.subr.mxu0 0.0
        %v5111 = vand.u32 %v5027, 4294901760
        %v5112 = vsub.f32 %v5027, %v5111
        %v5113 = vand.u32 %v5112, 4294901760
        %v5114 = vsub.f32 %v5112, %v5113
        %v5115 = vand.u32 %v5114, 4294901760
        %5116 = vmatpush1.msra.mxu0 %v5115
        %5117 = vmatprep.subr.mxu0 0.0
        %v5118 = vand.u32 %v5028, 4294901760
        %v5119 = vsub.f32 %v5028, %v5118
        %v5120 = vand.u32 %v5119, 4294901760
        %v5121 = vsub.f32 %v5119, %v5120
        %v5122 = vand.u32 %v5121, 4294901760
        %5123 = vmatpush1.msra.mxu0 %v5122
        %5124 = vmatprep.subr.mxu0 0.0
        %5125 = vmatpush1.msra.mxu0 0.0
        %5126 = vmatprep.subr.mxu0 0.0
        %5127 = vmatpush1.msra.mxu0 0.0
        %5128 = vmatprep.subr.mxu0 0.0
        %5129 = vmatpush1.msra.mxu0 0.0
        %5130 = vmatprep.subr.mxu0 0.0
        %5131 = vmatpush1.msra.mxu0 0.0
        %5132 = vmatprep.subr.mxu0 0.0
        %5133 = vmatpush1.msra.mxu0 0.0
        %5134 = vmatprep.subr.mxu0 0.0
        %5135 = vmatpush1.msra.mxu0 0.0
        %5136 = vmatprep.subr.mxu0 0.0
        %5137 = vmatpush1.msra.mxu0 0.0
        %5138 = vmatprep.subr.mxu0 0.0
        %5139 = vmatpush1.msra.mxu0 0.0
        %5140 = vmatprep.subr.mxu0 0.0
        %5141 = vmatpush1.msra.mxu0 0.0
        %5142 = vmatprep.subr.mxu0 0.0
        %5143 = vmatpush1.msra.mxu0 0.0
        %5144 = vmatprep.subr.mxu0 0.0
        %5145 = vmatpush1.msra.mxu0 0.0
        %5146 = vmatprep.subr.mxu0 0.0
        %5147 = vmatpush1.msra.mxu0 0.0
        %5148 = vmatprep.subr.mxu0 0.0
        %5149 = vmatpush1.msra.mxu0 0.0
        %5150 = vmatprep.subr.mxu0 0.0
        %5151 = vmatpush1.msra.mxu0 0.0
        %5152 = vmatprep.subr.mxu0 0.0
        %5153 = vmatpush1.msra.mxu0 0.0
        %5154 = vmatprep.subr.mxu0 0.0
        %5155 = vmatpush1.msra.mxu0 0.0
        %5156 = vmatprep.subr.mxu0 0.0
        %5157 = vmatpush1.msra.mxu0 0.0
        %5158 = vmatprep.subr.mxu0 0.0
        %5159 = vmatpush1.msra.mxu0 0.0
        %5160 = vmatprep.subr.mxu0 0.0
        %5161 = vmatpush1.msra.mxu0 0.0
        %5162 = vmatprep.subr.mxu0 0.0
        %5163 = vmatpush1.msra.mxu0 0.0
        %5164 = vmatprep.subr.mxu0 0.0
        %5165 = vmatpush1.msra.mxu0 0.0
        %5166 = vmatprep.subr.mxu0 0.0
        %5167 = vmatpush1.msra.mxu0 0.0
        %5168 = vmatprep.subr.mxu0 0.0
        %5169 = vmatpush1.msra.mxu0 0.0
        %5170 = vmatprep.subr.mxu0 0.0
        %5171 = vmatpush1.msra.mxu0 0.0
        %5172 = vmatprep.subr.mxu0 0.0
        %5173 = vmatpush1.msra.mxu0 0.0
        %5174 = vmatprep.subr.mxu0 0.0
        %5175 = vmatpush1.msra.mxu0 0.0
        %5176 = vmatprep.subr.mxu0 0.0
        %5177 = vmatpush1.msra.mxu0 0.0
        %5178 = vmatprep.subr.mxu0 0.0
        %5179 = vmatpush1.msra.mxu0 0.0
        %5180 = vmatprep.subr.mxu0 0.0
        %5181 = vmatpush1.msra.mxu0 0.0
        %5182 = vmatprep.subr.mxu0 0.0
        %5183 = vmatpush1.msra.mxu0 0.0
        %5184 = vmatprep.mubr.f32.mxu0 0.0
        %v5185 = vand.u32 %v5031, 4294901760
        %5186 = vmatmul.mubr.f32.gmra.mrb[0].mxu0 %v5185
        %v5187 = vpop.f32.mrb[0].mxu0
        %v5188 = vadd.f32 %v5107, %v5187
        %v5189 = vpop.f32.mrb[0].mxu0
        %5190 = vdwg.mxu0
        %5191 = vmatprep.subr.mxu0 0.0
        %v5192 = vand.u32 %v5027, 4294901760
        %v5193 = vsub.f32 %v5027, %v5192
        %5194 = vmatpush1.msra.mxu0 %v5193
        %5195 = vmatprep.subr.mxu0 0.0
        %v5196 = vand.u32 %v5028, 4294901760
        %v5197 = vsub.f32 %v5028, %v5196
        %5198 = vmatpush1.msra.mxu0 %v5197
        %5199 = vmatprep.subr.mxu0 0.0
        %5200 = vmatpush1.msra.mxu0 0.0
        %5201 = vmatprep.subr.mxu0 0.0
        %5202 = vmatpush1.msra.mxu0 0.0
        %5203 = vmatprep.subr.mxu0 0.0
        %5204 = vmatpush1.msra.mxu0 0.0
        %5205 = vmatprep.subr.mxu0 0.0
        %5206 = vmatpush1.msra.mxu0 0.0
        %5207 = vmatprep.subr.mxu0 0.0
        %5208 = vmatpush1.msra.mxu0 0.0
        %5209 = vmatprep.subr.mxu0 0.0
        %5210 = vmatpush1.msra.mxu0 0.0
        %5211 = vmatprep.subr.mxu0 0.0
        %5212 = vmatpush1.msra.mxu0 0.0
        %5213 = vmatprep.subr.mxu0 0.0
        %5214 = vmatpush1.msra.mxu0 0.0
        %5215 = vmatprep.subr.mxu0 0.0
        %5216 = vmatpush1.msra.mxu0 0.0
        %5217 = vmatprep.subr.mxu0 0.0
        %5218 = vmatpush1.msra.mxu0 0.0
        %5219 = vmatprep.subr.mxu0 0.0
        %5220 = vmatpush1.msra.mxu0 0.0
        %5221 = vmatprep.subr.mxu0 0.0
        %5222 = vmatpush1.msra.mxu0 0.0
        %5223 = vmatprep.subr.mxu0 0.0
        %5224 = vmatpush1.msra.mxu0 0.0
        %5225 = vmatprep.subr.mxu0 0.0
        %5226 = vmatpush1.msra.mxu0 0.0
        %5227 = vmatprep.subr.mxu0 0.0
        %5228 = vmatpush1.msra.mxu0 0.0
        %5229 = vmatprep.subr.mxu0 0.0
        %5230 = vmatpush1.msra.mxu0 0.0
        %5231 = vmatprep.subr.mxu0 0.0
        %5232 = vmatpush1.msra.mxu0 0.0
        %5233 = vmatprep.subr.mxu0 0.0
        %5234 = vmatpush1.msra.mxu0 0.0
        %5235 = vmatprep.subr.mxu0 0.0
        %5236 = vmatpush1.msra.mxu0 0.0
        %5237 = vmatprep.subr.mxu0 0.0
        %5238 = vmatpush1.msra.mxu0 0.0
        %5239 = vmatprep.subr.mxu0 0.0
        %5240 = vmatpush1.msra.mxu0 0.0
        %5241 = vmatprep.subr.mxu0 0.0
        %5242 = vmatpush1.msra.mxu0 0.0
        %5243 = vmatprep.subr.mxu0 0.0
        %5244 = vmatpush1.msra.mxu0 0.0
        %5245 = vmatprep.subr.mxu0 0.0
        %5246 = vmatpush1.msra.mxu0 0.0
        %5247 = vmatprep.subr.mxu0 0.0
        %5248 = vmatpush1.msra.mxu0 0.0
        %5249 = vmatprep.subr.mxu0 0.0
        %5250 = vmatpush1.msra.mxu0 0.0
        %5251 = vmatprep.subr.mxu0 0.0
        %5252 = vmatpush1.msra.mxu0 0.0
        %5253 = vmatprep.subr.mxu0 0.0
        %5254 = vmatpush1.msra.mxu0 0.0
        %5255 = vmatprep.subr.mxu0 0.0
        %5256 = vmatpush1.msra.mxu0 0.0
        %5257 = vmatprep.subr.mxu0 0.0
        %5258 = vmatpush1.msra.mxu0 0.0
        %5259 = vmatprep.mubr.f32.mxu0 0.0
        %v5260 = vand.u32 %v5031, 4294901760
        %v5261 = vsub.f32 %v5031, %v5260
        %5262 = vmatmul.mubr.f32.gmra.mrb[0].mxu0 %v5261
        %v5263 = vpop.f32.mrb[0].mxu0
        %v5264 = vadd.f32 %v5188, %v5263
        %v5265 = vpop.f32.mrb[0].mxu0
        %5266 = vdwg.mxu0
        %5267 = vmatprep.subr.mxu0 0.0
        %v5268 = vand.u32 %v5027, 4294901760
        %5269 = vmatpush1.msra.mxu0 %v5268
        %5270 = vmatprep.subr.mxu0 0.0
        %v5271 = vand.u32 %v5028, 4294901760
        %5272 = vmatpush1.msra.mxu0 %v5271
        %5273 = vmatprep.subr.mxu0 0.0
        %5274 = vmatpush1.msra.mxu0 0.0
        %5275 = vmatprep.subr.mxu0 0.0
        %5276 = vmatpush1.msra.mxu0 0.0
        %5277 = vmatprep.subr.mxu0 0.0
        %5278 = vmatpush1.msra.mxu0 0.0
        %5279 = vmatprep.subr.mxu0 0.0
        %5280 = vmatpush1.msra.mxu0 0.0
        %5281 = vmatprep.subr.mxu0 0.0
        %5282 = vmatpush1.msra.mxu0 0.0
        %5283 = vmatprep.subr.mxu0 0.0
        %5284 = vmatpush1.msra.mxu0 0.0
        %5285 = vmatprep.subr.mxu0 0.0
        %5286 = vmatpush1.msra.mxu0 0.0
        %5287 = vmatprep.subr.mxu0 0.0
        %5288 = vmatpush1.msra.mxu0 0.0
        %5289 = vmatprep.subr.mxu0 0.0
        %5290 = vmatpush1.msra.mxu0 0.0
        %5291 = vmatprep.subr.mxu0 0.0
        %5292 = vmatpush1.msra.mxu0 0.0
        %5293 = vmatprep.subr.mxu0 0.0
        %5294 = vmatpush1.msra.mxu0 0.0
        %5295 = vmatprep.subr.mxu0 0.0
        %5296 = vmatpush1.msra.mxu0 0.0
        %5297 = vmatprep.subr.mxu0 0.0
        %5298 = vmatpush1.msra.mxu0 0.0
        %5299 = vmatprep.subr.mxu0 0.0
        %5300 = vmatpush1.msra.mxu0 0.0
        %5301 = vmatprep.subr.mxu0 0.0
        %5302 = vmatpush1.msra.mxu0 0.0
        %5303 = vmatprep.subr.mxu0 0.0
        %5304 = vmatpush1.msra.mxu0 0.0
        %5305 = vmatprep.subr.mxu0 0.0
        %5306 = vmatpush1.msra.mxu0 0.0
        %5307 = vmatprep.subr.mxu0 0.0
        %5308 = vmatpush1.msra.mxu0 0.0
        %5309 = vmatprep.subr.mxu0 0.0
        %5310 = vmatpush1.msra.mxu0 0.0
        %5311 = vmatprep.subr.mxu0 0.0
        %5312 = vmatpush1.msra.mxu0 0.0
        %5313 = vmatprep.subr.mxu0 0.0
        %5314 = vmatpush1.msra.mxu0 0.0
        %5315 = vmatprep.subr.mxu0 0.0
        %5316 = vmatpush1.msra.mxu0 0.0
        %5317 = vmatprep.subr.mxu0 0.0
        %5318 = vmatpush1.msra.mxu0 0.0
        %5319 = vmatprep.subr.mxu0 0.0
        %5320 = vmatpush1.msra.mxu0 0.0
        %5321 = vmatprep.subr.mxu0 0.0
        %5322 = vmatpush1.msra.mxu0 0.0
        %5323 = vmatprep.subr.mxu0 0.0
        %5324 = vmatpush1.msra.mxu0 0.0
        %5325 = vmatprep.subr.mxu0 0.0
        %5326 = vmatpush1.msra.mxu0 0.0
        %5327 = vmatprep.subr.mxu0 0.0
        %5328 = vmatpush1.msra.mxu0 0.0
        %5329 = vmatprep.subr.mxu0 0.0
        %5330 = vmatpush1.msra.mxu0 0.0
        %5331 = vmatprep.subr.mxu0 0.0
        %5332 = vmatpush1.msra.mxu0 0.0
        %5333 = vmatprep.mubr.f32.mxu0 0.0
        %v5334 = vand.u32 %v5031, 4294901760
        %v5335 = vsub.f32 %v5031, %v5334
        %v5336 = vand.u32 %v5335, 4294901760
        %5337 = vmatmul.mubr.f32.gmra.mrb[0].mxu0 %v5336
        %v5338 = vpop.f32.mrb[0].mxu0
        %v5339 = vadd.f32 %v5264, %v5338
        %v5340 = vpop.f32.mrb[0].mxu0
        %5341 = vdwg.mxu0
        %5342 = vmatprep.subr.mxu0 0.0
        %v5343 = vand.u32 %v5027, 4294901760
        %v5344 = vsub.f32 %v5027, %v5343
        %v5345 = vand.u32 %v5344, 4294901760
        %5346 = vmatpush1.msra.mxu0 %v5345
        %5347 = vmatprep.subr.mxu0 0.0
        %v5348 = vand.u32 %v5028, 4294901760
        %v5349 = vsub.f32 %v5028, %v5348
        %v5350 = vand.u32 %v5349, 4294901760
        %5351 = vmatpush1.msra.mxu0 %v5350
        %5352 = vmatprep.subr.mxu0 0.0
        %5353 = vmatpush1.msra.mxu0 0.0
        %5354 = vmatprep.subr.mxu0 0.0
        %5355 = vmatpush1.msra.mxu0 0.0
        %5356 = vmatprep.subr.mxu0 0.0
        %5357 = vmatpush1.msra.mxu0 0.0
        %5358 = vmatprep.subr.mxu0 0.0
        %5359 = vmatpush1.msra.mxu0 0.0
        %5360 = vmatprep.subr.mxu0 0.0
        %5361 = vmatpush1.msra.mxu0 0.0
        %5362 = vmatprep.subr.mxu0 0.0
        %5363 = vmatpush1.msra.mxu0 0.0
        %5364 = vmatprep.subr.mxu0 0.0
        %5365 = vmatpush1.msra.mxu0 0.0
        %5366 = vmatprep.subr.mxu0 0.0
        %5367 = vmatpush1.msra.mxu0 0.0
        %5368 = vmatprep.subr.mxu0 0.0
        %5369 = vmatpush1.msra.mxu0 0.0
        %5370 = vmatprep.subr.mxu0 0.0
        %5371 = vmatpush1.msra.mxu0 0.0
        %5372 = vmatprep.subr.mxu0 0.0
        %5373 = vmatpush1.msra.mxu0 0.0
        %5374 = vmatprep.subr.mxu0 0.0
        %5375 = vmatpush1.msra.mxu0 0.0
        %5376 = vmatprep.subr.mxu0 0.0
        %5377 = vmatpush1.msra.mxu0 0.0
        %5378 = vmatprep.subr.mxu0 0.0
        %5379 = vmatpush1.msra.mxu0 0.0
        %5380 = vmatprep.subr.mxu0 0.0
        %5381 = vmatpush1.msra.mxu0 0.0
        %5382 = vmatprep.subr.mxu0 0.0
        %5383 = vmatpush1.msra.mxu0 0.0
        %5384 = vmatprep.subr.mxu0 0.0
        %5385 = vmatpush1.msra.mxu0 0.0
        %5386 = vmatprep.subr.mxu0 0.0
        %5387 = vmatpush1.msra.mxu0 0.0
        %5388 = vmatprep.subr.mxu0 0.0
        %5389 = vmatpush1.msra.mxu0 0.0
        %5390 = vmatprep.subr.mxu0 0.0
        %5391 = vmatpush1.msra.mxu0 0.0
        %5392 = vmatprep.subr.mxu0 0.0
        %5393 = vmatpush1.msra.mxu0 0.0
        %5394 = vmatprep.subr.mxu0 0.0
        %5395 = vmatpush1.msra.mxu0 0.0
        %5396 = vmatprep.subr.mxu0 0.0
        %5397 = vmatpush1.msra.mxu0 0.0
        %5398 = vmatprep.subr.mxu0 0.0
        %5399 = vmatpush1.msra.mxu0 0.0
        %5400 = vmatprep.subr.mxu0 0.0
        %5401 = vmatpush1.msra.mxu0 0.0
        %5402 = vmatprep.subr.mxu0 0.0
        %5403 = vmatpush1.msra.mxu0 0.0
        %5404 = vmatprep.subr.mxu0 0.0
        %5405 = vmatpush1.msra.mxu0 0.0
        %5406 = vmatprep.subr.mxu0 0.0
        %5407 = vmatpush1.msra.mxu0 0.0
        %5408 = vmatprep.subr.mxu0 0.0
        %5409 = vmatpush1.msra.mxu0 0.0
        %5410 = vmatprep.subr.mxu0 0.0
        %5411 = vmatpush1.msra.mxu0 0.0
        %5412 = vmatprep.mubr.f32.mxu0 0.0
        %v5413 = vand.u32 %v5031, 4294901760
        %5414 = vmatmul.mubr.f32.gmra.mrb[0].mxu0 %v5413
        %v5415 = vpop.f32.mrb[0].mxu0
        %v5416 = vadd.f32 %v5339, %v5415
        %v5417 = vpop.f32.mrb[0].mxu0
        %5418 = vdwg.mxu0
        %5419 = vmatprep.subr.mxu0 0.0
        %v5420 = vand.u32 %v5027, 4294901760
        %5421 = vmatpush1.msra.mxu0 %v5420
        %5422 = vmatprep.subr.mxu0 0.0
        %v5423 = vand.u32 %v5028, 4294901760
        %5424 = vmatpush1.msra.mxu0 %v5423
        %5425 = vmatprep.subr.mxu0 0.0
        %5426 = vmatpush1.msra.mxu0 0.0
        %5427 = vmatprep.subr.mxu0 0.0
        %5428 = vmatpush1.msra.mxu0 0.0
        %5429 = vmatprep.subr.mxu0 0.0
        %5430 = vmatpush1.msra.mxu0 0.0
        %5431 = vmatprep.subr.mxu0 0.0
        %5432 = vmatpush1.msra.mxu0 0.0
        %5433 = vmatprep.subr.mxu0 0.0
        %5434 = vmatpush1.msra.mxu0 0.0
        %5435 = vmatprep.subr.mxu0 0.0
        %5436 = vmatpush1.msra.mxu0 0.0
        %5437 = vmatprep.subr.mxu0 0.0
        %5438 = vmatpush1.msra.mxu0 0.0
        %5439 = vmatprep.subr.mxu0 0.0
        %5440 = vmatpush1.msra.mxu0 0.0
        %5441 = vmatprep.subr.mxu0 0.0
        %5442 = vmatpush1.msra.mxu0 0.0
        %5443 = vmatprep.subr.mxu0 0.0
        %5444 = vmatpush1.msra.mxu0 0.0
        %5445 = vmatprep.subr.mxu0 0.0
        %5446 = vmatpush1.msra.mxu0 0.0
        %5447 = vmatprep.subr.mxu0 0.0
        %5448 = vmatpush1.msra.mxu0 0.0
        %5449 = vmatprep.subr.mxu0 0.0
        %5450 = vmatpush1.msra.mxu0 0.0
        %5451 = vmatprep.subr.mxu0 0.0
        %5452 = vmatpush1.msra.mxu0 0.0
        %5453 = vmatprep.subr.mxu0 0.0
        %5454 = vmatpush1.msra.mxu0 0.0
        %5455 = vmatprep.subr.mxu0 0.0
        %5456 = vmatpush1.msra.mxu0 0.0
        %5457 = vmatprep.subr.mxu0 0.0
        %5458 = vmatpush1.msra.mxu0 0.0
        %5459 = vmatprep.subr.mxu0 0.0
        %5460 = vmatpush1.msra.mxu0 0.0
        %5461 = vmatprep.subr.mxu0 0.0
        %5462 = vmatpush1.msra.mxu0 0.0
        %5463 = vmatprep.subr.mxu0 0.0
        %5464 = vmatpush1.msra.mxu0 0.0
        %5465 = vmatprep.subr.mxu0 0.0
        %5466 = vmatpush1.msra.mxu0 0.0
        %5467 = vmatprep.subr.mxu0 0.0
        %5468 = vmatpush1.msra.mxu0 0.0
        %5469 = vmatprep.subr.mxu0 0.0
        %5470 = vmatpush1.msra.mxu0 0.0
        %5471 = vmatprep.subr.mxu0 0.0
        %5472 = vmatpush1.msra.mxu0 0.0
        %5473 = vmatprep.subr.mxu0 0.0
        %5474 = vmatpush1.msra.mxu0 0.0
        %5475 = vmatprep.subr.mxu0 0.0
        %5476 = vmatpush1.msra.mxu0 0.0
        %5477 = vmatprep.subr.mxu0 0.0
        %5478 = vmatpush1.msra.mxu0 0.0
        %5479 = vmatprep.subr.mxu0 0.0
        %5480 = vmatpush1.msra.mxu0 0.0
        %5481 = vmatprep.subr.mxu0 0.0
        %5482 = vmatpush1.msra.mxu0 0.0
        %5483 = vmatprep.subr.mxu0 0.0
        %5484 = vmatpush1.msra.mxu0 0.0
        %5485 = vmatprep.mubr.f32.mxu0 0.0
        %v5486 = vand.u32 %v5031, 4294901760
        %5487 = vmatmul.mubr.f32.gmra.mrb[0].mxu0 %v5486
        %v5488 = vpop.f32.mrb[0].mxu0
        %v5489 = vadd.f32 %v5416, %v5488
        %v5490 = vpop.f32.mrb[0].mxu0
        %5491 = vdwg.mxu0
        %v5492 = vtanh.pop %v5489
        %v5493 = vld [vmem:[#allocation8 + $0x8] sm:$0xff]
        %v5494 = vld [vmem:[#allocation8 + $0x10] sm:$0xff]
        %v5495 = vld [vmem:[#allocation8 + $0x18] sm:$0xff]
        %v5496 = vld [vmem:[#allocation8 + $0x20] sm:$0xff]
        %v5497 = vld [vmem:[#allocation8 + $0x28] sm:$0x1]
        %v5498 = vlaneseq
        %v5499 = vshrl.u32 %v5498, 7
        %v5500 = vsub.s32 0, %v5499
        %v5501 = vrot.slane %v5497, %v5500
        %v5503 = vsel %vm850, %v5492, 0
        %5505 = vmatprep.subr.mxu0 0.0
        %v5506 = vand.u32 %v5493, 4294901760
        %5507 = vmatpush1.msra.mxu0 %v5506
        %5508 = vmatprep.subr.mxu0 0.0
        %v5509 = vand.u32 %v5494, 4294901760
        %5510 = vmatpush1.msra.mxu0 %v5509
        %5511 = vmatprep.subr.mxu0 0.0
        %v5512 = vand.u32 %v5495, 4294901760
        %5513 = vmatpush1.msra.mxu0 %v5512
        %5514 = vmatprep.subr.mxu0 0.0
        %v5515 = vand.u32 %v5496, 4294901760
        %5516 = vmatpush1.msra.mxu0 %v5515
        %5517 = vmatprep.subr.mxu0 0.0
        %5518 = vmatpush1.msra.mxu0 0.0
        %5519 = vmatprep.subr.mxu0 0.0
        %5520 = vmatpush1.msra.mxu0 0.0
        %5521 = vmatprep.subr.mxu0 0.0
        %5522 = vmatpush1.msra.mxu0 0.0
        %5523 = vmatprep.subr.mxu0 0.0
        %5524 = vmatpush1.msra.mxu0 0.0
        %5525 = vmatprep.subr.mxu0 0.0
        %5526 = vmatpush1.msra.mxu0 0.0
        %5527 = vmatprep.subr.mxu0 0.0
        %5528 = vmatpush1.msra.mxu0 0.0
        %5529 = vmatprep.subr.mxu0 0.0
        %5530 = vmatpush1.msra.mxu0 0.0
        %5531 = vmatprep.subr.mxu0 0.0
        %5532 = vmatpush1.msra.mxu0 0.0
        %5533 = vmatprep.subr.mxu0 0.0
        %5534 = vmatpush1.msra.mxu0 0.0
        %5535 = vmatprep.subr.mxu0 0.0
        %5536 = vmatpush1.msra.mxu0 0.0
        %5537 = vmatprep.subr.mxu0 0.0
        %5538 = vmatpush1.msra.mxu0 0.0
        %5539 = vmatprep.subr.mxu0 0.0
        %5540 = vmatpush1.msra.mxu0 0.0
        %5541 = vmatprep.subr.mxu0 0.0
        %5542 = vmatpush1.msra.mxu0 0.0
        %5543 = vmatprep.subr.mxu0 0.0
        %5544 = vmatpush1.msra.mxu0 0.0
        %5545 = vmatprep.subr.mxu0 0.0
        %5546 = vmatpush1.msra.mxu0 0.0
        %5547 = vmatprep.subr.mxu0 0.0
        %5548 = vmatpush1.msra.mxu0 0.0
        %5549 = vmatprep.subr.mxu0 0.0
        %5550 = vmatpush1.msra.mxu0 0.0
        %5551 = vmatprep.subr.mxu0 0.0
        %5552 = vmatpush1.msra.mxu0 0.0
        %5553 = vmatprep.subr.mxu0 0.0
        %5554 = vmatpush1.msra.mxu0 0.0
        %5555 = vmatprep.subr.mxu0 0.0
        %5556 = vmatpush1.msra.mxu0 0.0
        %5557 = vmatprep.subr.mxu0 0.0
        %5558 = vmatpush1.msra.mxu0 0.0
        %5559 = vmatprep.subr.mxu0 0.0
        %5560 = vmatpush1.msra.mxu0 0.0
        %5561 = vmatprep.subr.mxu0 0.0
        %5562 = vmatpush1.msra.mxu0 0.0
        %5563 = vmatprep.subr.mxu0 0.0
        %5564 = vmatpush1.msra.mxu0 0.0
        %5565 = vmatprep.subr.mxu0 0.0
        %5566 = vmatpush1.msra.mxu0 0.0
        %5567 = vmatprep.subr.mxu0 0.0
        %5568 = vmatpush1.msra.mxu0 0.0
        %5569 = vmatprep.subr.mxu0 0.0
        %5570 = vmatpush1.msra.mxu0 0.0
        %5571 = vmatprep.subr.mxu0 0.0
        %5572 = vmatpush1.msra.mxu0 0.0
        %5573 = vmatprep.mubr.f32.mxu0 0.0
        %v5574 = vand.u32 %v5503, 4294901760
        %v5575 = vsub.f32 %v5503, %v5574
        %v5576 = vand.u32 %v5575, 4294901760
        %v5577 = vsub.f32 %v5575, %v5576
        %v5578 = vand.u32 %v5577, 4294901760
        %5579 = vmatmul.mubr.f32.gmra.mrb[0].mxu0 %v5578
        %v5580 = vpop.f32.mrb[0].mxu0
        %v5581 = vadd.f32 %v5501, %v5580
        %v5582 = vpop.f32.mrb[0].mxu0
        %5583 = vdwg.mxu0
        %5584 = vmatprep.subr.mxu0 0.0
        %v5585 = vand.u32 %v5493, 4294901760
        %v5586 = vsub.f32 %v5493, %v5585
        %v5587 = vand.u32 %v5586, 4294901760
        %v5588 = vsub.f32 %v5586, %v5587
        %v5589 = vand.u32 %v5588, 4294901760
        %5590 = vmatpush1.msra.mxu0 %v5589
        %5591 = vmatprep.subr.mxu0 0.0
        %v5592 = vand.u32 %v5494, 4294901760
        %v5593 = vsub.f32 %v5494, %v5592
        %v5594 = vand.u32 %v5593, 4294901760
        %v5595 = vsub.f32 %v5593, %v5594
        %v5596 = vand.u32 %v5595, 4294901760
        %5597 = vmatpush1.msra.mxu0 %v5596
        %5598 = vmatprep.subr.mxu0 0.0
        %v5599 = vand.u32 %v5495, 4294901760
        %v5600 = vsub.f32 %v5495, %v5599
        %v5601 = vand.u32 %v5600, 4294901760
        %v5602 = vsub.f32 %v5600, %v5601
        %v5603 = vand.u32 %v5602, 4294901760
        %5604 = vmatpush1.msra.mxu0 %v5603
        %5605 = vmatprep.subr.mxu0 0.0
        %v5606 = vand.u32 %v5496, 4294901760
        %v5607 = vsub.f32 %v5496, %v5606
        %v5608 = vand.u32 %v5607, 4294901760
        %v5609 = vsub.f32 %v5607, %v5608
        %v5610 = vand.u32 %v5609, 4294901760
        %5611 = vmatpush1.msra.mxu0 %v5610
        %5612 = vmatprep.subr.mxu0 0.0
        %5613 = vmatpush1.msra.mxu0 0.0
        %5614 = vmatprep.subr.mxu0 0.0
        %5615 = vmatpush1.msra.mxu0 0.0
        %5616 = vmatprep.subr.mxu0 0.0
        %5617 = vmatpush1.msra.mxu0 0.0
        %5618 = vmatprep.subr.mxu0 0.0
        %5619 = vmatpush1.msra.mxu0 0.0
        %5620 = vmatprep.subr.mxu0 0.0
        %5621 = vmatpush1.msra.mxu0 0.0
        %5622 = vmatprep.subr.mxu0 0.0
        %5623 = vmatpush1.msra.mxu0 0.0
        %5624 = vmatprep.subr.mxu0 0.0
        %5625 = vmatpush1.msra.mxu0 0.0
        %5626 = vmatprep.subr.mxu0 0.0
        %5627 = vmatpush1.msra.mxu0 0.0
        %5628 = vmatprep.subr.mxu0 0.0
        %5629 = vmatpush1.msra.mxu0 0.0
        %5630 = vmatprep.subr.mxu0 0.0
        %5631 = vmatpush1.msra.mxu0 0.0
        %5632 = vmatprep.subr.mxu0 0.0
        %5633 = vmatpush1.msra.mxu0 0.0
        %5634 = vmatprep.subr.mxu0 0.0
        %5635 = vmatpush1.msra.mxu0 0.0
        %5636 = vmatprep.subr.mxu0 0.0
        %5637 = vmatpush1.msra.mxu0 0.0
        %5638 = vmatprep.subr.mxu0 0.0
        %5639 = vmatpush1.msra.mxu0 0.0
        %5640 = vmatprep.subr.mxu0 0.0
        %5641 = vmatpush1.msra.mxu0 0.0
        %5642 = vmatprep.subr.mxu0 0.0
        %5643 = vmatpush1.msra.mxu0 0.0
        %5644 = vmatprep.subr.mxu0 0.0
        %5645 = vmatpush1.msra.mxu0 0.0
        %5646 = vmatprep.subr.mxu0 0.0
        %5647 = vmatpush1.msra.mxu0 0.0
        %5648 = vmatprep.subr.mxu0 0.0
        %5649 = vmatpush1.msra.mxu0 0.0
        %5650 = vmatprep.subr.mxu0 0.0
        %5651 = vmatpush1.msra.mxu0 0.0
        %5652 = vmatprep.subr.mxu0 0.0
        %5653 = vmatpush1.msra.mxu0 0.0
        %5654 = vmatprep.subr.mxu0 0.0
        %5655 = vmatpush1.msra.mxu0 0.0
        %5656 = vmatprep.subr.mxu0 0.0
        %5657 = vmatpush1.msra.mxu0 0.0
        %5658 = vmatprep.subr.mxu0 0.0
        %5659 = vmatpush1.msra.mxu0 0.0
        %5660 = vmatprep.subr.mxu0 0.0
        %5661 = vmatpush1.msra.mxu0 0.0
        %5662 = vmatprep.subr.mxu0 0.0
        %5663 = vmatpush1.msra.mxu0 0.0
        %5664 = vmatprep.subr.mxu0 0.0
        %5665 = vmatpush1.msra.mxu0 0.0
        %5666 = vmatprep.subr.mxu0 0.0
        %5667 = vmatpush1.msra.mxu0 0.0
        %5668 = vmatprep.mubr.f32.mxu0 0.0
        %v5669 = vand.u32 %v5503, 4294901760
        %5670 = vmatmul.mubr.f32.gmra.mrb[0].mxu0 %v5669
        %v5671 = vpop.f32.mrb[0].mxu0
        %v5672 = vadd.f32 %v5581, %v5671
        %v5673 = vpop.f32.mrb[0].mxu0
        %5674 = vdwg.mxu0
        %5675 = vmatprep.subr.mxu0 0.0
        %v5676 = vand.u32 %v5493, 4294901760
        %v5677 = vsub.f32 %v5493, %v5676
        %5678 = vmatpush1.msra.mxu0 %v5677
        %5679 = vmatprep.subr.mxu0 0.0
        %v5680 = vand.u32 %v5494, 4294901760
        %v5681 = vsub.f32 %v5494, %v5680
        %5682 = vmatpush1.msra.mxu0 %v5681
        %5683 = vmatprep.subr.mxu0 0.0
        %v5684 = vand.u32 %v5495, 4294901760
        %v5685 = vsub.f32 %v5495, %v5684
        %5686 = vmatpush1.msra.mxu0 %v5685
        %5687 = vmatprep.subr.mxu0 0.0
        %v5688 = vand.u32 %v5496, 4294901760
        %v5689 = vsub.f32 %v5496, %v5688
        %5690 = vmatpush1.msra.mxu0 %v5689
        %5691 = vmatprep.subr.mxu0 0.0
        %5692 = vmatpush1.msra.mxu0 0.0
        %5693 = vmatprep.subr.mxu0 0.0
        %5694 = vmatpush1.msra.mxu0 0.0
        %5695 = vmatprep.subr.mxu0 0.0
        %5696 = vmatpush1.msra.mxu0 0.0
        %5697 = vmatprep.subr.mxu0 0.0
        %5698 = vmatpush1.msra.mxu0 0.0
        %5699 = vmatprep.subr.mxu0 0.0
        %5700 = vmatpush1.msra.mxu0 0.0
        %5701 = vmatprep.subr.mxu0 0.0
        %5702 = vmatpush1.msra.mxu0 0.0
        %5703 = vmatprep.subr.mxu0 0.0
        %5704 = vmatpush1.msra.mxu0 0.0
        %5705 = vmatprep.subr.mxu0 0.0
        %5706 = vmatpush1.msra.mxu0 0.0
        %5707 = vmatprep.subr.mxu0 0.0
        %5708 = vmatpush1.msra.mxu0 0.0
        %5709 = vmatprep.subr.mxu0 0.0
        %5710 = vmatpush1.msra.mxu0 0.0
        %5711 = vmatprep.subr.mxu0 0.0
        %5712 = vmatpush1.msra.mxu0 0.0
        %5713 = vmatprep.subr.mxu0 0.0
        %5714 = vmatpush1.msra.mxu0 0.0
        %5715 = vmatprep.subr.mxu0 0.0
        %5716 = vmatpush1.msra.mxu0 0.0
        %5717 = vmatprep.subr.mxu0 0.0
        %5718 = vmatpush1.msra.mxu0 0.0
        %5719 = vmatprep.subr.mxu0 0.0
        %5720 = vmatpush1.msra.mxu0 0.0
        %5721 = vmatprep.subr.mxu0 0.0
        %5722 = vmatpush1.msra.mxu0 0.0
        %5723 = vmatprep.subr.mxu0 0.0
        %5724 = vmatpush1.msra.mxu0 0.0
        %5725 = vmatprep.subr.mxu0 0.0
        %5726 = vmatpush1.msra.mxu0 0.0
        %5727 = vmatprep.subr.mxu0 0.0
        %5728 = vmatpush1.msra.mxu0 0.0
        %5729 = vmatprep.subr.mxu0 0.0
        %5730 = vmatpush1.msra.mxu0 0.0
        %5731 = vmatprep.subr.mxu0 0.0
        %5732 = vmatpush1.msra.mxu0 0.0
        %5733 = vmatprep.subr.mxu0 0.0
        %5734 = vmatpush1.msra.mxu0 0.0
        %5735 = vmatprep.subr.mxu0 0.0
        %5736 = vmatpush1.msra.mxu0 0.0
        %5737 = vmatprep.subr.mxu0 0.0
        %5738 = vmatpush1.msra.mxu0 0.0
        %5739 = vmatprep.subr.mxu0 0.0
        %5740 = vmatpush1.msra.mxu0 0.0
        %5741 = vmatprep.subr.mxu0 0.0
        %5742 = vmatpush1.msra.mxu0 0.0
        %5743 = vmatprep.subr.mxu0 0.0
        %5744 = vmatpush1.msra.mxu0 0.0
        %5745 = vmatprep.subr.mxu0 0.0
        %5746 = vmatpush1.msra.mxu0 0.0
        %5747 = vmatprep.mubr.f32.mxu0 0.0
        %v5748 = vand.u32 %v5503, 4294901760
        %v5749 = vsub.f32 %v5503, %v5748
        %5750 = vmatmul.mubr.f32.gmra.mrb[0].mxu0 %v5749
        %v5751 = vpop.f32.mrb[0].mxu0
        %v5752 = vadd.f32 %v5672, %v5751
        %v5753 = vpop.f32.mrb[0].mxu0
        %5754 = vdwg.mxu0
        %5755 = vmatprep.subr.mxu0 0.0
        %v5756 = vand.u32 %v5493, 4294901760
        %5757 = vmatpush1.msra.mxu0 %v5756
        %5758 = vmatprep.subr.mxu0 0.0
        %v5759 = vand.u32 %v5494, 4294901760
        %5760 = vmatpush1.msra.mxu0 %v5759
        %5761 = vmatprep.subr.mxu0 0.0
        %v5762 = vand.u32 %v5495, 4294901760
        %5763 = vmatpush1.msra.mxu0 %v5762
        %5764 = vmatprep.subr.mxu0 0.0
        %v5765 = vand.u32 %v5496, 4294901760
        %5766 = vmatpush1.msra.mxu0 %v5765
        %5767 = vmatprep.subr.mxu0 0.0
        %5768 = vmatpush1.msra.mxu0 0.0
        %5769 = vmatprep.subr.mxu0 0.0
        %5770 = vmatpush1.msra.mxu0 0.0
        %5771 = vmatprep.subr.mxu0 0.0
        %5772 = vmatpush1.msra.mxu0 0.0
        %5773 = vmatprep.subr.mxu0 0.0
        %5774 = vmatpush1.msra.mxu0 0.0
        %5775 = vmatprep.subr.mxu0 0.0
        %5776 = vmatpush1.msra.mxu0 0.0
        %5777 = vmatprep.subr.mxu0 0.0
        %5778 = vmatpush1.msra.mxu0 0.0
        %5779 = vmatprep.subr.mxu0 0.0
        %5780 = vmatpush1.msra.mxu0 0.0
        %5781 = vmatprep.subr.mxu0 0.0
        %5782 = vmatpush1.msra.mxu0 0.0
        %5783 = vmatprep.subr.mxu0 0.0
        %5784 = vmatpush1.msra.mxu0 0.0
        %5785 = vmatprep.subr.mxu0 0.0
        %5786 = vmatpush1.msra.mxu0 0.0
        %5787 = vmatprep.subr.mxu0 0.0
        %5788 = vmatpush1.msra.mxu0 0.0
        %5789 = vmatprep.subr.mxu0 0.0
        %5790 = vmatpush1.msra.mxu0 0.0
        %5791 = vmatprep.subr.mxu0 0.0
        %5792 = vmatpush1.msra.mxu0 0.0
        %5793 = vmatprep.subr.mxu0 0.0
        %5794 = vmatpush1.msra.mxu0 0.0
        %5795 = vmatprep.subr.mxu0 0.0
        %5796 = vmatpush1.msra.mxu0 0.0
        %5797 = vmatprep.subr.mxu0 0.0
        %5798 = vmatpush1.msra.mxu0 0.0
        %5799 = vmatprep.subr.mxu0 0.0
        %5800 = vmatpush1.msra.mxu0 0.0
        %5801 = vmatprep.subr.mxu0 0.0
        %5802 = vmatpush1.msra.mxu0 0.0
        %5803 = vmatprep.subr.mxu0 0.0
        %5804 = vmatpush1.msra.mxu0 0.0
        %5805 = vmatprep.subr.mxu0 0.0
        %5806 = vmatpush1.msra.mxu0 0.0
        %5807 = vmatprep.subr.mxu0 0.0
        %5808 = vmatpush1.msra.mxu0 0.0
        %5809 = vmatprep.subr.mxu0 0.0
        %5810 = vmatpush1.msra.mxu0 0.0
        %5811 = vmatprep.subr.mxu0 0.0
        %5812 = vmatpush1.msra.mxu0 0.0
        %5813 = vmatprep.subr.mxu0 0.0
        %5814 = vmatpush1.msra.mxu0 0.0
        %5815 = vmatprep.subr.mxu0 0.0
        %5816 = vmatpush1.msra.mxu0 0.0
        %5817 = vmatprep.subr.mxu0 0.0
        %5818 = vmatpush1.msra.mxu0 0.0
        %5819 = vmatprep.subr.mxu0 0.0
        %5820 = vmatpush1.msra.mxu0 0.0
        %5821 = vmatprep.subr.mxu0 0.0
        %5822 = vmatpush1.msra.mxu0 0.0
        %5823 = vmatprep.mubr.f32.mxu0 0.0
        %v5824 = vand.u32 %v5503, 4294901760
        %v5825 = vsub.f32 %v5503, %v5824
        %v5826 = vand.u32 %v5825, 4294901760
        %5827 = vmatmul.mubr.f32.gmra.mrb[0].mxu0 %v5826
        %v5828 = vpop.f32.mrb[0].mxu0
        %v5829 = vadd.f32 %v5752, %v5828
        %v5830 = vpop.f32.mrb[0].mxu0
        %5831 = vdwg.mxu0
        %5832 = vmatprep.subr.mxu0 0.0
        %v5833 = vand.u32 %v5493, 4294901760
        %v5834 = vsub.f32 %v5493, %v5833
        %v5835 = vand.u32 %v5834, 4294901760
        %5836 = vmatpush1.msra.mxu0 %v5835
        %5837 = vmatprep.subr.mxu0 0.0
        %v5838 = vand.u32 %v5494, 4294901760
        %v5839 = vsub.f32 %v5494, %v5838
        %v5840 = vand.u32 %v5839, 4294901760
        %5841 = vmatpush1.msra.mxu0 %v5840
        %5842 = vmatprep.subr.mxu0 0.0
        %v5843 = vand.u32 %v5495, 4294901760
        %v5844 = vsub.f32 %v5495, %v5843
        %v5845 = vand.u32 %v5844, 4294901760
        %5846 = vmatpush1.msra.mxu0 %v5845
        %5847 = vmatprep.subr.mxu0 0.0
        %v5848 = vand.u32 %v5496, 4294901760
        %v5849 = vsub.f32 %v5496, %v5848
        %v5850 = vand.u32 %v5849, 4294901760
        %5851 = vmatpush1.msra.mxu0 %v5850
        %5852 = vmatprep.subr.mxu0 0.0
        %5853 = vmatpush1.msra.mxu0 0.0
        %5854 = vmatprep.subr.mxu0 0.0
        %5855 = vmatpush1.msra.mxu0 0.0
        %5856 = vmatprep.subr.mxu0 0.0
        %5857 = vmatpush1.msra.mxu0 0.0
        %5858 = vmatprep.subr.mxu0 0.0
        %5859 = vmatpush1.msra.mxu0 0.0
        %5860 = vmatprep.subr.mxu0 0.0
        %5861 = vmatpush1.msra.mxu0 0.0
        %5862 = vmatprep.subr.mxu0 0.0
        %5863 = vmatpush1.msra.mxu0 0.0
        %5864 = vmatprep.subr.mxu0 0.0
        %5865 = vmatpush1.msra.mxu0 0.0
        %5866 = vmatprep.subr.mxu0 0.0
        %5867 = vmatpush1.msra.mxu0 0.0
        %5868 = vmatprep.subr.mxu0 0.0
        %5869 = vmatpush1.msra.mxu0 0.0
        %5870 = vmatprep.subr.mxu0 0.0
        %5871 = vmatpush1.msra.mxu0 0.0
        %5872 = vmatprep.subr.mxu0 0.0
        %5873 = vmatpush1.msra.mxu0 0.0
        %5874 = vmatprep.subr.mxu0 0.0
        %5875 = vmatpush1.msra.mxu0 0.0
        %5876 = vmatprep.subr.mxu0 0.0
        %5877 = vmatpush1.msra.mxu0 0.0
        %5878 = vmatprep.subr.mxu0 0.0
        %5879 = vmatpush1.msra.mxu0 0.0
        %5880 = vmatprep.subr.mxu0 0.0
        %5881 = vmatpush1.msra.mxu0 0.0
        %5882 = vmatprep.subr.mxu0 0.0
        %5883 = vmatpush1.msra.mxu0 0.0
        %5884 = vmatprep.subr.mxu0 0.0
        %5885 = vmatpush1.msra.mxu0 0.0
        %5886 = vmatprep.subr.mxu0 0.0
        %5887 = vmatpush1.msra.mxu0 0.0
        %5888 = vmatprep.subr.mxu0 0.0
        %5889 = vmatpush1.msra.mxu0 0.0
        %5890 = vmatprep.subr.mxu0 0.0
        %5891 = vmatpush1.msra.mxu0 0.0
        %5892 = vmatprep.subr.mxu0 0.0
        %5893 = vmatpush1.msra.mxu0 0.0
        %5894 = vmatprep.subr.mxu0 0.0
        %5895 = vmatpush1.msra.mxu0 0.0
        %5896 = vmatprep.subr.mxu0 0.0
        %5897 = vmatpush1.msra.mxu0 0.0
        %5898 = vmatprep.subr.mxu0 0.0
        %5899 = vmatpush1.msra.mxu0 0.0
        %5900 = vmatprep.subr.mxu0 0.0
        %5901 = vmatpush1.msra.mxu0 0.0
        %5902 = vmatprep.subr.mxu0 0.0
        %5903 = vmatpush1.msra.mxu0 0.0
        %5904 = vmatprep.subr.mxu0 0.0
        %5905 = vmatpush1.msra.mxu0 0.0
        %5906 = vmatprep.subr.mxu0 0.0
        %5907 = vmatpush1.msra.mxu0 0.0
        %5908 = vmatprep.mubr.f32.mxu0 0.0
        %v5909 = vand.u32 %v5503, 4294901760
        %5910 = vmatmul.mubr.f32.gmra.mrb[0].mxu0 %v5909
        %v5911 = vpop.f32.mrb[0].mxu0
        %v5912 = vadd.f32 %v5829, %v5911
        %v5913 = vpop.f32.mrb[0].mxu0
        %5914 = vdwg.mxu0
        %5915 = vmatprep.subr.mxu0 0.0
        %v5916 = vand.u32 %v5493, 4294901760
        %5917 = vmatpush1.msra.mxu0 %v5916
        %5918 = vmatprep.subr.mxu0 0.0
        %v5919 = vand.u32 %v5494, 4294901760
        %5920 = vmatpush1.msra.mxu0 %v5919
        %5921 = vmatprep.subr.mxu0 0.0
        %v5922 = vand.u32 %v5495, 4294901760
        %5923 = vmatpush1.msra.mxu0 %v5922
        %5924 = vmatprep.subr.mxu0 0.0
        %v5925 = vand.u32 %v5496, 4294901760
        %5926 = vmatpush1.msra.mxu0 %v5925
        %5927 = vmatprep.subr.mxu0 0.0
        %5928 = vmatpush1.msra.mxu0 0.0
        %5929 = vmatprep.subr.mxu0 0.0
        %5930 = vmatpush1.msra.mxu0 0.0
        %5931 = vmatprep.subr.mxu0 0.0
        %5932 = vmatpush1.msra.mxu0 0.0
        %5933 = vmatprep.subr.mxu0 0.0
        %5934 = vmatpush1.msra.mxu0 0.0
        %5935 = vmatprep.subr.mxu0 0.0
        %5936 = vmatpush1.msra.mxu0 0.0
        %5937 = vmatprep.subr.mxu0 0.0
        %5938 = vmatpush1.msra.mxu0 0.0
        %5939 = vmatprep.subr.mxu0 0.0
        %5940 = vmatpush1.msra.mxu0 0.0
        %5941 = vmatprep.subr.mxu0 0.0
        %5942 = vmatpush1.msra.mxu0 0.0
        %5943 = vmatprep.subr.mxu0 0.0
        %5944 = vmatpush1.msra.mxu0 0.0
        %5945 = vmatprep.subr.mxu0 0.0
        %5946 = vmatpush1.msra.mxu0 0.0
        %5947 = vmatprep.subr.mxu0 0.0
        %5948 = vmatpush1.msra.mxu0 0.0
        %5949 = vmatprep.subr.mxu0 0.0
        %5950 = vmatpush1.msra.mxu0 0.0
        %5951 = vmatprep.subr.mxu0 0.0
        %5952 = vmatpush1.msra.mxu0 0.0
        %5953 = vmatprep.subr.mxu0 0.0
        %5954 = vmatpush1.msra.mxu0 0.0
        %5955 = vmatprep.subr.mxu0 0.0
        %5956 = vmatpush1.msra.mxu0 0.0
        %5957 = vmatprep.subr.mxu0 0.0
        %5958 = vmatpush1.msra.mxu0 0.0
        %5959 = vmatprep.subr.mxu0 0.0
        %5960 = vmatpush1.msra.mxu0 0.0
        %5961 = vmatprep.subr.mxu0 0.0
        %5962 = vmatpush1.msra.mxu0 0.0
        %5963 = vmatprep.subr.mxu0 0.0
        %5964 = vmatpush1.msra.mxu0 0.0
        %5965 = vmatprep.subr.mxu0 0.0
        %5966 = vmatpush1.msra.mxu0 0.0
        %5967 = vmatprep.subr.mxu0 0.0
        %5968 = vmatpush1.msra.mxu0 0.0
        %5969 = vmatprep.subr.mxu0 0.0
        %5970 = vmatpush1.msra.mxu0 0.0
        %5971 = vmatprep.subr.mxu0 0.0
        %5972 = vmatpush1.msra.mxu0 0.0
        %5973 = vmatprep.subr.mxu0 0.0
        %5974 = vmatpush1.msra.mxu0 0.0
        %5975 = vmatprep.subr.mxu0 0.0
        %5976 = vmatpush1.msra.mxu0 0.0
        %5977 = vmatprep.subr.mxu0 0.0
        %5978 = vmatpush1.msra.mxu0 0.0
        %5979 = vmatprep.subr.mxu0 0.0
        %5980 = vmatpush1.msra.mxu0 0.0
        %5981 = vmatprep.subr.mxu0 0.0
        %5982 = vmatpush1.msra.mxu0 0.0
        %5983 = vmatprep.mubr.f32.mxu0 0.0
        %v5984 = vand.u32 %v5503, 4294901760
        %5985 = vmatmul.mubr.f32.gmra.mrb[0].mxu0 %v5984
        %v5986 = vpop.f32.mrb[0].mxu0
        %v5987 = vadd.f32 %v5912, %v5986
        %v5988 = vpop.f32.mrb[0].mxu0
        %5989 = vdwg.mxu0
        %5990 = vst [vmem:[%s234] sm:$0x3] %v5987
        %s5991 = sand.u32 %s117, 1
        %s5992 = scalar_lea.sflag [#allocation5], %s5991
        %s5993 = sand.u32 %s117, 1
        %s5994 = smul.addr %s5993, 2
        %s5995 = scalar_lea.vmem [#allocation9], %s5994
        // Predicated region
        $region49: #{lstm_net_pallas.1} parent=35 // pred_check
          %p5996 = pneg %p127
        $region50: #{lstm_net_pallas.1} parent=35 // pred_check_branch
          %5998 = sbr.rel (%p5996) target = $region52
        $region51: #{lstm_net_pallas.1} parent=35 // pred_region
          %s6000 = ssub.s32 32, 32
          %6001 = vsyncadd %s5992, %s6000
          %s6002 = smul.addr %s20, 32
          %s6003 = scalar_lea.hbm %s4, %s6002
          %s6005 = sshll.u32 %s5995, 4
          %s6006 = int_to_ptr.vmem [resolvable:$true] %s6005
          %6008 = dma.vmem_to_hbm [thread:$0]  %s6006, 32, %s6003, %s5992
        $region52: #{lstm_net_pallas.1} parent=35 // pred_fallthru
          _
      $region36: #{lstm_net_pallas.1} parent=5 // pred_fallthru
        _
      %p6009 = scmp.le.s32.totalorder 2, %s15
      // Predicated region
      $region53: #{lstm_net_pallas.1} parent=5 // pred_check
        %p6010 = pneg %p6009
      $region54: #{lstm_net_pallas.1} parent=5 // pred_check_branch
        %6012 = sbr.rel (%p6010) target = $region56
      $region55: #{lstm_net_pallas.1} parent=5 // pred_region
        %s6013 = ssub.s32 %s15, 2
        // Predicated region
        $region57: #{lstm_net_pallas.1} parent=55 // pred_check
          %p6014 = pneg %p133
        $region58: #{lstm_net_pallas.1} parent=55 // pred_check_branch
          %6016 = sbr.rel (%p6014) target = $region60
        $region59: #{lstm_net_pallas.1} parent=55 // pred_region
          %s6017 = sand.u32 %s118, 1
          %s6018 = scalar_lea.sflag [#allocation5], %s6017
          %s6019 = sand.u32 %s118, 1
          %s6020 = smul.addr %s6019, 2
          %s6021 = scalar_lea.vmem [#allocation9], %s6020
          %6022 = dma.done %s6018, 32
        $region60: #{lstm_net_pallas.1} parent=55 // pred_fallthru
          _
      $region56: #{lstm_net_pallas.1} parent=5 // pred_fallthru
        _
    $region6: #{lstm_net_pallas.1} parent=1 // loop_footer
      %s19 = sadd.s32 1, %s15
    $region7: #{lstm_net_pallas.1} parent=1 // loop_footer_branch
      %14 = sbr.rel target = $region3
    $region8: #{lstm_net_pallas.1} parent=1 // loop_exit
      _
    %6023 = vsyncpa [#allocation4], 1
    %s6024 = scalar_lea.sflag [#allocation4], 1
    %6025 = vsyncpa %s6024, 1
    %6026 = vsyncpa [#allocation7], 1
    %6027 = vsyncpa [#allocation5], 1
    %s6028 = scalar_lea.sflag [#allocation5], 1
    %6029 = vsyncpa %s6028, 1

</llo_original>
